<compile_context>
chip_gen: v7x
topology: tpu7x:2x2x1
jax: 0.10.0
libtpu: 0.0.40
codegen_flags: <defaults>
</compile_context>

<pallas_src>
import jax
import jax.numpy as jnp
from jax.experimental import pallas as pl
from jax.experimental.pallas import tpu as pltpu

NEG_SLOPE = 0.2
MASK_VALUE = -1e30


def _use_bf16_score_path():
    """bf16 VPU exists on v6e and later; avoid the cast on v5e/v5p/v4/older."""
    try:
        kind = jax.devices()[0].device_kind.lower()
    except Exception:
        return False
    return not any(tag in kind for tag in ("v2", "v3", "v4", "v5"))


# ----------------------------------------------------------------------------
# Fused Pallas kernel builder: GATv2 x2 + folded readout, all VMEM-resident.
# ----------------------------------------------------------------------------
def build_gat_kernel(layout, n_gat_layers, use_bf16_scores):
    """layout: name -> (row_start, n_rows, n_cols) inside the (R,128) param slab."""

    def gat_fused_kernel(x_ref, adj_bias_ref, params_ref, out_ref):
        # x_ref        : (N, D0)   node features
        # adj_bias_ref : (N, N)    additive mask, adj_bias[dst, src] in {0, -1e30}
        # params_ref   : (R, 128)  packed parameter slab (see pack_all_params)
        # out_ref      : (1, Dlast)
        adj_bias = adj_bias_ref[...]          # loaded once, reused by both layers

        def getp(name):
            r0, nr, nc = layout[name]
            return params_ref[r0:r0 + nr, 0:nc]

        def gatv2_layer(h, wcat, bcat, attn_row):
            d_out = wcat.shape[1] // 2
            # fused fc_src / fc_dst projection: one MXU pass, then slice.
            feat = jnp.dot(h, wcat, preferred_element_type=jnp.float32) + bcat
            el = feat[:, :d_out]      # fc_src(h)  (source / message features)
            er = feat[:, d_out:]      # fc_dst(h)  (destination features)

            if use_bf16_scores:       # v6e/v7x: bf16 VPU, halves vreg pressure
                el_s = el.astype(jnp.bfloat16)
                er_s = er.astype(jnp.bfloat16)
                a_s = attn_row.astype(jnp.bfloat16)
            else:                     # v5e: keep f32 (no bf16 VALU)
                el_s, er_s, a_s = el, er, attn_row

            # e[i, j, :] = leaky_relu(el[src=j] + er[dst=i])   (DGL u_add_v)
            e = el_s[None, :, :] + er_s[:, None, :]            # (N_dst, N_src, D)
            e = jnp.where(e > 0, e, NEG_SLOPE * e)
            # contraction over D in f32 (XLU lane reduce)
            scores = jnp.sum((e * a_s[None, :, :]).astype(jnp.float32), axis=-1)

            # additive-mask softmax over incoming (source) axis
            masked = scores + adj_bias                          # masked -> ~ -1e30
            m = jnp.max(masked, axis=-1, keepdims=True)
            p = jnp.exp(masked - m)                             # masked entries -> 0
            denom = jnp.sum(p, axis=-1, keepdims=True)
            denom = jnp.maximum(denom, jnp.float32(1e-20))      # zero in-degree guard
            alpha = p * pl.reciprocal(denom, approx=True)       # EUP divide

            # aggregate messages: sum_j alpha[i, j] * el[j]  (f32 el)
            return jnp.dot(alpha, el, preferred_element_type=jnp.float32)

        h = x_ref[...]
        for li in range(n_gat_layers):
            h = gatv2_layer(h, getp(f"wcat{li}"), getp(f"bcat{li}"), getp(f"attn{li}"))

        # readout: sigmoid(mean over nodes) -> folded Linear -> sigmoid
        n = h.shape[0]
        g = jnp.sum(h, axis=0, keepdims=True) * jnp.float32(1.0 / n)   # (1, D)
        g = jax.nn.sigmoid(g)
        g = jnp.dot(g, getp("wlin"), preferred_element_type=jnp.float32) + getp("blin")
        out_ref[...] = jax.nn.sigmoid(g)

    return gat_fused_kernel


# ----------------------------------------------------------------------------
# Wrapper
# ----------------------------------------------------------------------------
def _cost_estimate(n, gat_dims, lin_dim, bytes_in, bytes_out):
    flops = 0
    transcendentals = 0
    for din, dout in gat_dims:
        flops += 2 * n * din * (2 * dout) + 2 * n * dout   # fused projection + bias
        flops += 6 * n * n * dout                          # e add, lrelu, score mul+acc
        flops += 6 * n * n                                  # mask add + softmax
        flops += 2 * n * n * dout                           # aggregation matmul
        transcendentals += n * n                             # exp
    d_last = gat_dims[-1][1]
    flops += n * d_last                                      # node mean
    transcendentals += d_last                                # sigmoid
    din, dout = lin_dim
    flops += 2 * din * dout + dout                           # folded readout linear
    transcendentals += dout                                  # final sigmoid
    return pl.CostEstimate(flops=int(flops),
                           transcendentals=int(transcendentals),
                           bytes_accessed=int(bytes_in + bytes_out))


def make_gat_forward(layout, n_gat_layers, gat_dims, out_dim, use_bf16_scores):
    kernel = build_gat_kernel(layout, n_gat_layers, use_bf16_scores)
    vmem_spec = pl.BlockSpec(memory_space=pltpu.MemorySpace.VMEM)

    def fwd(x, adj_bias, params_slab):
        n = x.shape[0]
        bytes_in = sum(int(a.size) * a.dtype.itemsize
                       for a in (x, adj_bias, params_slab))
        cost = _cost_estimate(n, gat_dims, (gat_dims[-1][1], out_dim),
                              bytes_in, out_dim * 4)
        out = pl.pallas_call(
            kernel,
            out_shape=jax.ShapeDtypeStruct((1, out_dim), jnp.float32),
            in_specs=[vmem_spec, vmem_spec, vmem_spec],
            out_specs=vmem_spec,
            cost_estimate=cost,
            compiler_params=pltpu.CompilerParams(vmem_limit_bytes=2 * 1024 * 1024),
        )(x, adj_bias, params_slab)
        # restore the singleton head dim carried by the PyTorch forward (num_heads==1)
        return out.reshape(1, 1, out_dim)

    return jax.jit(fwd)


# ----------------------------------------------------------------------------
# Deterministic parameter / input construction and parameter packing
# ----------------------------------------------------------------------------
def make_params(key, layers, linears):
    raw_gat = []
    keys = jax.random.split(key, 16)
    k_idx = 0

    def nxt():
        nonlocal k_idx
        k = keys[k_idx]
        k_idx += 1
        return k

    for i in range(len(layers) - 1):
        din, dout = layers[i], layers[i + 1]
        scale = 1.0 / jnp.sqrt(jnp.float32(din))
        w_src = jax.random.normal(nxt(), (din, dout), jnp.float32) * scale
        b_src = jax.random.normal(nxt(), (1, dout), jnp.float32) * 0.01
        w_dst = jax.random.normal(nxt(), (din, dout), jnp.float32) * scale
        b_dst = jax.random.normal(nxt(), (1, dout), jnp.float32) * 0.01
        attn = jax.random.normal(nxt(), (1, dout), jnp.float32) * scale
        raw_gat.append((w_src, b_src, w_dst, b_dst, attn))

    lin_params = []
    dims = [layers[-1]] + list(linears)
    for i in range(len(dims) - 1):
        din, dout = dims[i], dims[i + 1]
        scale = 1.0 / jnp.sqrt(jnp.float32(din))
        w = jax.random.normal(nxt(), (din, dout), jnp.float32) * scale
        b = jax.random.normal(nxt(), (1, dout), jnp.float32) * 0.01
        lin_params.append((w, b))
    return raw_gat, lin_params


def pack_all_params(raw_gat, lin_params):
    """Pack all parameters into one f32 (R, 128) slab (single DMA).

    Weight matrices are placed first at sublane(8)-aligned row offsets;
    1-row vectors (biases / attention vectors) follow.  Also folds the two
    bias-only readout Linears into one:  y = x @ (lw1 @ lw2) + (lb1 @ lw2 + lb2).
    """
    (lw1, lb1), (lw2, lb2) = lin_params
    w_fold = lw1 @ lw2
    b_fold = lb1 @ lw2 + lb2

    mats, vecs = [], []
    for li, (w_src, b_src, w_dst, b_dst, attn) in enumerate(raw_gat):
        mats.append((f"wcat{li}", jnp.concatenate([w_src, w_dst], axis=1)))
        vecs.append((f"bcat{li}", jnp.concatenate([b_src, b_dst], axis=1)))
        vecs.append((f"attn{li}", attn))
    mats.append(("wlin", w_fold))
    vecs.append(("blin", b_fold))

    def _align8(r):
        return ((r + 7) // 8) * 8

    layout = {}
    chunks = []
    row = 0
    for name, arr in mats:
        row = _align8(row)
        layout[name] = (row, arr.shape[0], arr.shape[1])
        chunks.append((row, arr))
        row += arr.shape[0]
    for name, arr in vecs:
        layout[name] = (row, arr.shape[0], arr.shape[1])
        chunks.append((row, arr))
        row += arr.shape[0]
    total_rows = _align8(row)

    slab = jnp.zeros((total_rows, 128), jnp.float32)
    for r0, arr in chunks:
        slab = slab.at[r0:r0 + arr.shape[0], :arr.shape[1]].set(arr)
    return slab, layout


def make_ring_adj(n):
    # adj[dst, src] = 1.0 for ring edges i -> (i+1) % n, plus self loops.
    adj = jnp.zeros((n, n), jnp.float32)
    idx = jnp.arange(n)
    adj = adj.at[(idx + 1) % n, idx].set(1.0)
    adj = adj.at[idx, idx].set(1.0)
    return adj


# ----------------------------------------------------------------------------
# Pure-JAX reference (unfolded linears, exact division softmax).  Mirrors the
# kernel's bf16 score-path choice so the comparison is apples-to-apples.
# ----------------------------------------------------------------------------
def reference_forward(x, adj, raw_gat, lin_params, use_bf16_scores=False):
    h = x
    for (w_src, b_src, w_dst, b_dst, attn) in raw_gat:
        el = h @ w_src + b_src
        er = h @ w_dst + b_dst
        if use_bf16_scores:
            el_s = el.astype(jnp.bfloat16)
            er_s = er.astype(jnp.bfloat16)
            a_s = attn.astype(jnp.bfloat16)
        else:
            el_s, er_s, a_s = el, er, attn
        e = el_s[None, :, :] + er_s[:, None, :]
        e = jnp.where(e > 0, e, NEG_SLOPE * e)
        scores = jnp.sum((e * a_s[None, :, :]).astype(jnp.float32), axis=-1)
        masked = jnp.where(adj > 0, scores, MASK_VALUE)
        m = jnp.max(masked, axis=-1, keepdims=True)
        p = jnp.where(adj > 0, jnp.exp(masked - m), 0.0)
        alpha = p / jnp.sum(p, axis=-1, keepdims=True)
        h = alpha @ el
    g = jax.nn.sigmoid(jnp.mean(h, axis=0, keepdims=True))
    for (w, b) in lin_params:
        g = g @ w + b
    return jax.nn.sigmoid(g).reshape(1, 1, -1)


if __name__ == "__main__":
    N_NODES = 16
    LAYERS = [8, 16, 16]
    LINEARS = [8, 4]

    use_bf16 = _use_bf16_score_path()

    key = jax.random.PRNGKey(0)
    k_x, k_p = jax.random.split(key)

    x = jax.random.normal(k_x, (N_NODES, LAYERS[0]), jnp.float32)
    adj = make_ring_adj(N_NODES)
    adj_bias = jnp.where(adj > 0, jnp.float32(0.0), jnp.float32(MASK_VALUE))

    raw_gat, lin_params = make_params(k_p, LAYERS, LINEARS)
    params_slab, layout = pack_all_params(raw_gat, lin_params)

    gat_dims = [(w.shape[0], w.shape[1]) for (w, _, _, _, _) in raw_gat]
    gat_forward = make_gat_forward(layout,
                                   n_gat_layers=len(raw_gat),
                                   gat_dims=gat_dims,
                                   out_dim=LINEARS[-1],
                                   use_bf16_scores=use_bf16)

    out = gat_forward(x, adj_bias, params_slab)
    out = jax.block_until_ready(out)

    assert out.shape == (1, 1, LINEARS[-1]), out.shape
    assert bool(jnp.all(jnp.isfinite(out)))

    ref = reference_forward(x, adj, raw_gat, lin_params, use_bf16_scores=use_bf16)
    assert bool(jnp.allclose(out, ref, atol=5e-3, rtol=5e-3)), (out, ref)

    print("KERNEL_OK")
</pallas_src>

<mosaic_0001>
module attributes {stable_mosaic.version = 11 : i64} {
  func.func @gat_fused_kernel(%arg0: memref<16x8xf32, #tpu.memory_space<vmem>>, %arg1: memref<16x16xf32, #tpu.memory_space<vmem>>, %arg2: memref<48x128xf32, #tpu.memory_space<vmem>>, %arg3: memref<1x4xf32, #tpu.memory_space<vmem>>) attributes {dimension_semantics = [], scalar_prefetch = 0 : i64, scratch_operands = 0 : i64, tpu.core_type = #tpu.core_type<tc>} {
    %c0 = arith.constant 0 : index
    %c0_0 = arith.constant 0 : index
    %0 = vector.load %arg1[%c0, %c0_0] : memref<16x16xf32, #tpu.memory_space<vmem>>, vector<16x16xf32>
    %c0_1 = arith.constant 0 : index
    %c0_2 = arith.constant 0 : index
    %1 = vector.load %arg0[%c0_1, %c0_2] : memref<16x8xf32, #tpu.memory_space<vmem>>, vector<16x8xf32>
    %c0_3 = arith.constant 0 : index
    %c0_4 = arith.constant 0 : index
    %2 = vector.load %arg2[%c0_3, %c0_4] : memref<48x128xf32, #tpu.memory_space<vmem>>, vector<8x32xf32>
    %c40 = arith.constant 40 : index
    %c0_5 = arith.constant 0 : index
    %3 = vector.load %arg2[%c40, %c0_5] : memref<48x128xf32, #tpu.memory_space<vmem>>, vector<1x32xf32>
    %c41 = arith.constant 41 : index
    %c0_6 = arith.constant 0 : index
    %4 = vector.load %arg2[%c41, %c0_6] : memref<48x128xf32, #tpu.memory_space<vmem>>, vector<1x16xf32>
    %cst = arith.constant dense<0.000000e+00> : vector<16x32xf32>
    %5 = tpu.matmul %1, %2, %cst {dimension_numbers = #tpu.dot_dimension_numbers<[1], [0], [0], [1], [0, 0, 1, 1], [], []>} : vector<16x8xf32>, vector<8x32xf32>, vector<16x32xf32> -> vector<16x32xf32>
    %6 = vector.broadcast %3 : vector<1x32xf32> to vector<16x32xf32>
    %7 = arith.addf %5, %6 : vector<16x32xf32>
    %8 = vector.extract_strided_slice %7 {offsets = [0, 0], sizes = [16, 16], strides = [1, 1]} : vector<16x32xf32> to vector<16x16xf32>
    %9 = vector.extract_strided_slice %7 {offsets = [0, 16], sizes = [16, 16], strides = [1, 1]} : vector<16x32xf32> to vector<16x16xf32>
    %10 = arith.truncf %8 : vector<16x16xf32> to vector<16x16xbf16>
    %11 = arith.truncf %9 : vector<16x16xf32> to vector<16x16xbf16>
    %12 = arith.truncf %4 : vector<1x16xf32> to vector<1x16xbf16>
    %13 = vector.shape_cast %10 : vector<16x16xbf16> to vector<1x16x16xbf16>
    %14 = vector.shape_cast %11 : vector<16x16xbf16> to vector<16x1x16xbf16>
    %15 = vector.broadcast %13 : vector<1x16x16xbf16> to vector<16x16x16xbf16>
    %16 = vector.broadcast %14 : vector<16x1x16xbf16> to vector<16x16x16xbf16>
    %17 = arith.addf %15, %16 : vector<16x16x16xbf16>
    %cst_7 = arith.constant 0.000000e+00 : bf16
    %18 = vector.broadcast %cst_7 : bf16 to vector<16x16x16xbf16>
    %19 = arith.cmpf ogt, %17, %18 : vector<16x16x16xbf16>
    %cst_8 = arith.constant 2.001950e-01 : bf16
    %20 = vector.broadcast %cst_8 : bf16 to vector<16x16x16xbf16>
    %21 = arith.mulf %20, %17 : vector<16x16x16xbf16>
    %22 = arith.select %19, %17, %21 : vector<16x16x16xi1>, vector<16x16x16xbf16>
    %23 = vector.shape_cast %12 : vector<1x16xbf16> to vector<1x1x16xbf16>
    %24 = vector.broadcast %23 : vector<1x1x16xbf16> to vector<16x16x16xbf16>
    %25 = arith.mulf %22, %24 : vector<16x16x16xbf16>
    %26 = arith.extf %25 : vector<16x16x16xbf16> to vector<16x16x16xf32>
    %cst_9 = arith.constant dense<0.000000e+00> : vector<16x16xf32>
    %27 = vector.multi_reduction <add>, %26, %cst_9 [2] : vector<16x16x16xf32> to vector<16x16xf32>
    %28 = arith.addf %27, %0 : vector<16x16xf32>
    %cst_10 = arith.constant dense<0xFF800000> : vector<16xf32>
    %29 = vector.multi_reduction <maximumf>, %28, %cst_10 [1] : vector<16x16xf32> to vector<16xf32>
    %30 = vector.shape_cast %29 : vector<16xf32> to vector<16x1xf32>
    %31 = vector.broadcast %30 : vector<16x1xf32> to vector<16x16xf32>
    %32 = arith.subf %28, %31 : vector<16x16xf32>
    %33 = math.exp %32 : vector<16x16xf32>
    %cst_11 = arith.constant dense<0.000000e+00> : vector<16xf32>
    %34 = vector.multi_reduction <add>, %33, %cst_11 [1] : vector<16x16xf32> to vector<16xf32>
    %35 = vector.shape_cast %34 : vector<16xf32> to vector<16x1xf32>
    %cst_12 = arith.constant 9.99999968E-21 : f32
    %36 = vector.broadcast %cst_12 : f32 to vector<16x1xf32>
    %37 = arith.maximumf %35, %36 : vector<16x1xf32>
    %38 = tpu.reciprocal %37 {approx = true} : vector<16x1xf32> -> vector<16x1xf32>
    %39 = vector.broadcast %38 : vector<16x1xf32> to vector<16x16xf32>
    %40 = arith.mulf %33, %39 : vector<16x16xf32>
    %cst_13 = arith.constant dense<0.000000e+00> : vector<16x16xf32>
    %41 = tpu.matmul %40, %8, %cst_13 {dimension_numbers = #tpu.dot_dimension_numbers<[1], [0], [0], [1], [0, 0, 1, 1], [], []>} : vector<16x16xf32>, vector<16x16xf32>, vector<16x16xf32> -> vector<16x16xf32>
    %c8 = arith.constant 8 : index
    %c0_14 = arith.constant 0 : index
    %42 = vector.load %arg2[%c8, %c0_14] : memref<48x128xf32, #tpu.memory_space<vmem>>, vector<16x32xf32>
    %c42 = arith.constant 42 : index
    %c0_15 = arith.constant 0 : index
    %43 = vector.load %arg2[%c42, %c0_15] : memref<48x128xf32, #tpu.memory_space<vmem>>, vector<1x32xf32>
    %c43 = arith.constant 43 : index
    %c0_16 = arith.constant 0 : index
    %44 = vector.load %arg2[%c43, %c0_16] : memref<48x128xf32, #tpu.memory_space<vmem>>, vector<1x16xf32>
    %cst_17 = arith.constant dense<0.000000e+00> : vector<16x32xf32>
    %45 = tpu.matmul %41, %42, %cst_17 {dimension_numbers = #tpu.dot_dimension_numbers<[1], [0], [0], [1], [0, 0, 1, 1], [], []>} : vector<16x16xf32>, vector<16x32xf32>, vector<16x32xf32> -> vector<16x32xf32>
    %46 = vector.broadcast %43 : vector<1x32xf32> to vector<16x32xf32>
    %47 = arith.addf %45, %46 : vector<16x32xf32>
    %48 = vector.extract_strided_slice %47 {offsets = [0, 0], sizes = [16, 16], strides = [1, 1]} : vector<16x32xf32> to vector<16x16xf32>
    %49 = vector.extract_strided_slice %47 {offsets = [0, 16], sizes = [16, 16], strides = [1, 1]} : vector<16x32xf32> to vector<16x16xf32>
    %50 = arith.truncf %48 : vector<16x16xf32> to vector<16x16xbf16>
    %51 = arith.truncf %49 : vector<16x16xf32> to vector<16x16xbf16>
    %52 = arith.truncf %44 : vector<1x16xf32> to vector<1x16xbf16>
    %53 = vector.shape_cast %50 : vector<16x16xbf16> to vector<1x16x16xbf16>
    %54 = vector.shape_cast %51 : vector<16x16xbf16> to vector<16x1x16xbf16>
    %55 = vector.broadcast %53 : vector<1x16x16xbf16> to vector<16x16x16xbf16>
    %56 = vector.broadcast %54 : vector<16x1x16xbf16> to vector<16x16x16xbf16>
    %57 = arith.addf %55, %56 : vector<16x16x16xbf16>
    %cst_18 = arith.constant 0.000000e+00 : bf16
    %58 = vector.broadcast %cst_18 : bf16 to vector<16x16x16xbf16>
    %59 = arith.cmpf ogt, %57, %58 : vector<16x16x16xbf16>
    %cst_19 = arith.constant 2.001950e-01 : bf16
    %60 = vector.broadcast %cst_19 : bf16 to vector<16x16x16xbf16>
    %61 = arith.mulf %60, %57 : vector<16x16x16xbf16>
    %62 = arith.select %59, %57, %61 : vector<16x16x16xi1>, vector<16x16x16xbf16>
    %63 = vector.shape_cast %52 : vector<1x16xbf16> to vector<1x1x16xbf16>
    %64 = vector.broadcast %63 : vector<1x1x16xbf16> to vector<16x16x16xbf16>
    %65 = arith.mulf %62, %64 : vector<16x16x16xbf16>
    %66 = arith.extf %65 : vector<16x16x16xbf16> to vector<16x16x16xf32>
    %cst_20 = arith.constant dense<0.000000e+00> : vector<16x16xf32>
    %67 = vector.multi_reduction <add>, %66, %cst_20 [2] : vector<16x16x16xf32> to vector<16x16xf32>
    %68 = arith.addf %67, %0 : vector<16x16xf32>
    %cst_21 = arith.constant dense<0xFF800000> : vector<16xf32>
    %69 = vector.multi_reduction <maximumf>, %68, %cst_21 [1] : vector<16x16xf32> to vector<16xf32>
    %70 = vector.shape_cast %69 : vector<16xf32> to vector<16x1xf32>
    %71 = vector.broadcast %70 : vector<16x1xf32> to vector<16x16xf32>
    %72 = arith.subf %68, %71 : vector<16x16xf32>
    %73 = math.exp %72 : vector<16x16xf32>
    %cst_22 = arith.constant dense<0.000000e+00> : vector<16xf32>
    %74 = vector.multi_reduction <add>, %73, %cst_22 [1] : vector<16x16xf32> to vector<16xf32>
    %75 = vector.shape_cast %74 : vector<16xf32> to vector<16x1xf32>
    %cst_23 = arith.constant 9.99999968E-21 : f32
    %76 = vector.broadcast %cst_23 : f32 to vector<16x1xf32>
    %77 = arith.maximumf %75, %76 : vector<16x1xf32>
    %78 = tpu.reciprocal %77 {approx = true} : vector<16x1xf32> -> vector<16x1xf32>
    %79 = vector.broadcast %78 : vector<16x1xf32> to vector<16x16xf32>
    %80 = arith.mulf %73, %79 : vector<16x16xf32>
    %cst_24 = arith.constant dense<0.000000e+00> : vector<16x16xf32>
    %81 = tpu.matmul %80, %48, %cst_24 {dimension_numbers = #tpu.dot_dimension_numbers<[1], [0], [0], [1], [0, 0, 1, 1], [], []>} : vector<16x16xf32>, vector<16x16xf32>, vector<16x16xf32> -> vector<16x16xf32>
    %cst_25 = arith.constant dense<0.000000e+00> : vector<16xf32>
    %82 = vector.multi_reduction <add>, %81, %cst_25 [0] : vector<16x16xf32> to vector<16xf32>
    %83 = vector.shape_cast %82 : vector<16xf32> to vector<1x16xf32>
    %cst_26 = arith.constant 6.250000e-02 : f32
    %84 = vector.broadcast %cst_26 : f32 to vector<1x16xf32>
    %85 = arith.mulf %83, %84 : vector<1x16xf32>
    %86 = arith.negf %85 : vector<1x16xf32>
    %87 = math.exp %86 : vector<1x16xf32>
    %cst_27 = arith.constant 1.000000e+00 : f32
    %88 = vector.broadcast %cst_27 : f32 to vector<1x16xf32>
    %89 = arith.addf %88, %87 : vector<1x16xf32>
    %90 = arith.divf %88, %89 : vector<1x16xf32>
    %c24 = arith.constant 24 : index
    %c0_28 = arith.constant 0 : index
    %91 = vector.load %arg2[%c24, %c0_28] : memref<48x128xf32, #tpu.memory_space<vmem>>, vector<16x4xf32>
    %cst_29 = arith.constant dense<0.000000e+00> : vector<1x4xf32>
    %92 = tpu.matmul %90, %91, %cst_29 {dimension_numbers = #tpu.dot_dimension_numbers<[1], [0], [0], [1], [0, 0, 1, 1], [], []>} : vector<1x16xf32>, vector<16x4xf32>, vector<1x4xf32> -> vector<1x4xf32>
    %c44 = arith.constant 44 : index
    %c0_30 = arith.constant 0 : index
    %93 = vector.load %arg2[%c44, %c0_30] : memref<48x128xf32, #tpu.memory_space<vmem>>, vector<1x4xf32>
    %94 = arith.addf %92, %93 : vector<1x4xf32>
    %95 = arith.negf %94 : vector<1x4xf32>
    %96 = math.exp %95 : vector<1x4xf32>
    %cst_31 = arith.constant 1.000000e+00 : f32
    %97 = vector.broadcast %cst_31 : f32 to vector<1x4xf32>
    %98 = arith.addf %97, %96 : vector<1x4xf32>
    %99 = arith.divf %97, %98 : vector<1x4xf32>
    %c0_32 = arith.constant 0 : index
    %c0_33 = arith.constant 0 : index
    %100 = vector.load %arg3[%c0_32, %c0_33] : memref<1x4xf32, #tpu.memory_space<vmem>>, vector<1x4xf32>
    tpu.vector_store %arg3[%c0_32, %c0_33], %99 {strides = array<i32>} : memref<1x4xf32, #tpu.memory_space<vmem>>, vector<1x4xf32>,
    return
  }
}

</mosaic_0001>

<llo_original>
// kernel: fwd.1
$region0: #{fwd.1}
  #allocation0 [shape = 'u32[]', space=smem, size = 0x4, offset = 0x4, fixed_abs, tag = 'smem constant byte address 0x4 - core index']
  #allocation1 [shape = 'u32[144,128]{1,0:T(1,128)}', space=vmem, size = 0x12000, scoped, tag = 'internal scratch']
  %s0 = inlined_call_operand.vmem [shape: f32[16,8], index: 0, kind: input, shape index: {}]
  %s1 = inlined_call_operand.vmem [shape: f32[16,16], index: 1, kind: input, shape index: {}]
  %s2 = inlined_call_operand.hbm [shape: f32[48,128], index: 2, kind: input, shape index: {}]
  %s3 = inlined_call_operand.hbm [shape: f32[1,4], index: 3, kind: output, shape index: {}]
  %s4 = sld [smem:[#allocation0]]
  $region26: #{fwd.1} parent=0
    _
  %s6 = ssub.s32 1, %s4
  %s7 = scalar_select 0, %s6, %s4
  $region1: #{fwd.1} parent=0
    #allocation2 [shape = 'u8[24576]{0}', space=vmem, size = 0x6000, scoped, tag = 'input window, operand 2, single buffered']
    #allocation3 [shape = 's32[1]{0}', space=sflag, size = 0x4, scoped, tag = 'scoped memory for fwd.1']
    #allocation4 [shape = 's32[1]{0}', space=sflag, size = 0x4, scoped, tag = 'scoped memory for fwd.1']
    #allocation5 [shape = 'u8[512]{0}', space=vmem, size = 0x400, scoped, tag = 'output window, operand 0, single buffered']
    %8 = vsyncpa [#allocation3], 0
    %9 = vsyncpa [#allocation4], 0
    // Predicated region
    $region2: #{fwd.1} parent=1 // pred_check
      _
    $region3: #{fwd.1} parent=1 // pred_check_branch
      %11 = sbr.rel (0) target = $region5
    $region4: #{fwd.1} parent=1 // pred_region
      _
    $region5: #{fwd.1} parent=1 // pred_fallthru
      _
    // Predicated region
    $region6: #{fwd.1} parent=1 // pred_check
      _
    $region7: #{fwd.1} parent=1 // pred_check_branch
      %13 = sbr.rel (0) target = $region9
    $region8: #{fwd.1} parent=1 // pred_region
      _
    $region9: #{fwd.1} parent=1 // pred_fallthru
      _
    // Predicated region
    $region10: #{fwd.1} parent=1 // pred_check
      _
    $region11: #{fwd.1} parent=1 // pred_check_branch
      %15 = sbr.rel (0) target = $region13
    $region12: #{fwd.1} parent=1 // pred_region
      %s17 = ssub.s32 768, 768
      %18 = vsyncadd [#allocation3], %s17
      %s19 = sshll.u32 [#allocation2], 4
      %s20 = int_to_ptr.vmem [resolvable:$true] %s19
      %25 = dma.hbm_to_vmem [thread:$0]  %s2, 768, %s20, [#allocation3], 128, 128, 8
    $region13: #{fwd.1} parent=1 // pred_fallthru
      _
    // Predicated region
    $region14: #{fwd.1} parent=1 // pred_check
      _
    $region15: #{fwd.1} parent=1 // pred_check_branch
      %27 = sbr.rel (0) target = $region17
    $region16: #{fwd.1} parent=1 // pred_region
      %28 = dma.done [#allocation3], 768
    $region17: #{fwd.1} parent=1 // pred_fallthru
      _
    %v31 = vld [vmem:[%s1] sm:$0xff]
    %v32 = vld [vmem:[%s1 + $0x8] sm:$0xff]
    %v33 = vld [vmem:[%s0] sm:$0xff]
    %v34 = vld [vmem:[%s0 + $0x8] sm:$0xff]
    %v35 = vld [vmem:[#allocation2] sm:$0xff]
    %v36 = vld [vmem:[#allocation2 + $0x28] sm:$0x1]
    %v37 = vld [vmem:[#allocation2 + $0x29] sm:$0x1]
    %v38 = vlaneseq
    %v39 = vshrl.u32 %v38, 7
    %v40 = vsub.s32 0, %v39
    %v41 = vrot.slane %v36, %v40
    %vm42 = vcmask 64512
    %v44 = vsel %vm42, %v33, 0
    %v47 = vsel %vm42, %v34, 0
    %49 = vmatprep.subr.mxu0 0.0
    %50 = vmatpush1.msra.mxu0 %v35
    %51 = vmatprep.subr.mxu0 0.0
    %52 = vmatpush1.msra.mxu0 0.0
    %53 = vmatprep.subr.mxu0 0.0
    %54 = vmatpush1.msra.mxu0 0.0
    %55 = vmatprep.subr.mxu0 0.0
    %56 = vmatpush1.msra.mxu0 0.0
    %57 = vmatprep.subr.mxu0 0.0
    %58 = vmatpush1.msra.mxu0 0.0
    %59 = vmatprep.subr.mxu0 0.0
    %60 = vmatpush1.msra.mxu0 0.0
    %61 = vmatprep.subr.mxu0 0.0
    %62 = vmatpush1.msra.mxu0 0.0
    %63 = vmatprep.subr.mxu0 0.0
    %64 = vmatpush1.msra.mxu0 0.0
    %65 = vmatprep.subr.mxu0 0.0
    %66 = vmatpush1.msra.mxu0 0.0
    %67 = vmatprep.subr.mxu0 0.0
    %68 = vmatpush1.msra.mxu0 0.0
    %69 = vmatprep.subr.mxu0 0.0
    %70 = vmatpush1.msra.mxu0 0.0
    %71 = vmatprep.subr.mxu0 0.0
    %72 = vmatpush1.msra.mxu0 0.0
    %73 = vmatprep.subr.mxu0 0.0
    %74 = vmatpush1.msra.mxu0 0.0
    %75 = vmatprep.subr.mxu0 0.0
    %76 = vmatpush1.msra.mxu0 0.0
    %77 = vmatprep.subr.mxu0 0.0
    %78 = vmatpush1.msra.mxu0 0.0
    %79 = vmatprep.subr.mxu0 0.0
    %80 = vmatpush1.msra.mxu0 0.0
    %81 = vmatprep.subr.mxu0 0.0
    %82 = vmatpush1.msra.mxu0 0.0
    %83 = vmatprep.subr.mxu0 0.0
    %84 = vmatpush1.msra.mxu0 0.0
    %85 = vmatprep.subr.mxu0 0.0
    %86 = vmatpush1.msra.mxu0 0.0
    %87 = vmatprep.subr.mxu0 0.0
    %88 = vmatpush1.msra.mxu0 0.0
    %89 = vmatprep.subr.mxu0 0.0
    %90 = vmatpush1.msra.mxu0 0.0
    %91 = vmatprep.subr.mxu0 0.0
    %92 = vmatpush1.msra.mxu0 0.0
    %93 = vmatprep.subr.mxu0 0.0
    %94 = vmatpush1.msra.mxu0 0.0
    %95 = vmatprep.subr.mxu0 0.0
    %96 = vmatpush1.msra.mxu0 0.0
    %97 = vmatprep.subr.mxu0 0.0
    %98 = vmatpush1.msra.mxu0 0.0
    %99 = vmatprep.subr.mxu0 0.0
    %100 = vmatpush1.msra.mxu0 0.0
    %101 = vmatprep.subr.mxu0 0.0
    %102 = vmatpush1.msra.mxu0 0.0
    %103 = vmatprep.subr.mxu0 0.0
    %104 = vmatpush1.msra.mxu0 0.0
    %105 = vmatprep.subr.mxu0 0.0
    %106 = vmatpush1.msra.mxu0 0.0
    %107 = vmatprep.subr.mxu0 0.0
    %108 = vmatpush1.msra.mxu0 0.0
    %109 = vmatprep.subr.mxu0 0.0
    %110 = vmatpush1.msra.mxu0 0.0
    %111 = vmatprep.subr.mxu0 0.0
    %112 = vmatpush1.msra.mxu0 0.0
    %113 = vmatprep.mubr.f32.mxu0 0.0
    %114 = vmatmul.mubr.f32.gmra.mrb[0].mxu0 %v44
    %v115 = vpop.f32.mrb[0].mxu0
    %v116 = vadd.f32 %v41, %v115
    %v117 = vpop.f32.mrb[0].mxu0
    %118 = vmatprep.mubr.f32.mxu0 0.0
    %119 = vmatmul.mubr.f32.gmra.mrb[0].mxu0 %v47
    %v120 = vpop.f32.mrb[0].mxu0
    %v121 = vadd.f32 %v41, %v120
    %v122 = vpop.f32.mrb[0].mxu0
    %123 = vdwg.mxu0
    %v124 = vpack.c.bf16 %v121, %v116
    %v125 = vpack.c.bf16 %v37, %v37
    %v127 = vcombine.high %v124, %v124
    %v129 = vunpack.c.l.s4 1966171168
    %v130 = vunpack.c.0.s8 %v129
    %v131 = vlaneseq
    %v132 = vshrl.u32 %v131, 7
    %v133 = vsub.s32 %v130, %v132
    %v134 = vrot.slane %v124, %v133
    %v136 = vunpack.c.l.s4 1966171168
    %v137 = vunpack.c.0.s8 %v136
    %v138 = vlaneseq
    %v139 = vshrl.u32 %v138, 7
    %v140 = vsub.s32 %v137, %v139
    %v141 = vrot.slane %v127, %v140
    %v142 = vcombine.high %v134, %v134
    %v143 = vcombine.high %v141, %v141
    %v145 = vunpack.c.l.s4 1966171168
    %v146 = vunpack.c.0.s8 %v145
    %v147 = vlaneseq
    %v148 = vshrl.u32 %v147, 7
    %v149 = vsub.s32 %v146, %v148
    %v150 = vrot.slane %v134, %v149
    %v152 = vunpack.c.l.s4 1966171168
    %v153 = vunpack.c.0.s8 %v152
    %v154 = vlaneseq
    %v155 = vshrl.u32 %v154, 7
    %v156 = vsub.s32 %v153, %v155
    %v157 = vrot.slane %v141, %v156
    %v159 = vunpack.c.l.s4 1966171168
    %v160 = vunpack.c.0.s8 %v159
    %v161 = vlaneseq
    %v162 = vshrl.u32 %v161, 7
    %v163 = vsub.s32 %v160, %v162
    %v164 = vrot.slane %v142, %v163
    %v166 = vunpack.c.l.s4 1966171168
    %v167 = vunpack.c.0.s8 %v166
    %v168 = vlaneseq
    %v169 = vshrl.u32 %v168, 7
    %v170 = vsub.s32 %v167, %v169
    %v171 = vrot.slane %v143, %v170
    %v172 = vcombine.high %v150, %v150
    %v173 = vcombine.high %v157, %v157
    %v174 = vcombine.high %v164, %v164
    %v175 = vcombine.high %v171, %v171
    %v176 = vunpack.i.l.s16 %v150
    %v177 = vunpack.i.h.s16 %v150
    %v178 = vunpack.i.l.s16 %v164
    %v179 = vunpack.i.h.s16 %v164
    %v180 = vunpack.i.l.s16 %v172
    %v181 = vunpack.i.h.s16 %v172
    %v182 = vunpack.i.l.s16 %v174
    %v183 = vunpack.i.h.s16 %v174
    %v184 = vunpack.i.l.s16 %v157
    %v185 = vunpack.i.h.s16 %v157
    %v186 = vunpack.i.l.s16 %v171
    %v187 = vunpack.i.h.s16 %v171
    %v188 = vunpack.i.l.s16 %v173
    %v189 = vunpack.i.h.s16 %v173
    %v190 = vunpack.i.l.s16 %v175
    %v191 = vunpack.i.h.s16 %v175
    %v192 = vpack.i.b16 %v176, %v176
    %v193 = vpack.i.b16 %v177, %v177
    %v194 = vpack.i.b16 %v178, %v178
    %v195 = vpack.i.b16 %v179, %v179
    %v196 = vpack.i.b16 %v180, %v180
    %v197 = vpack.i.b16 %v181, %v181
    %v198 = vpack.i.b16 %v182, %v182
    %v199 = vpack.i.b16 %v183, %v183
    %v200 = vpack.i.b16 %v184, %v184
    %v201 = vpack.i.b16 %v185, %v185
    %v202 = vpack.i.b16 %v186, %v186
    %v203 = vpack.i.b16 %v187, %v187
    %v204 = vpack.i.b16 %v188, %v188
    %v205 = vpack.i.b16 %v189, %v189
    %v206 = vpack.i.b16 %v190, %v190
    %v207 = vpack.i.b16 %v191, %v191
    %v208 = vlaneseq
    %v209 = vshrl.u32 %v208, 7
    %v210 = vsub.s32 0, %v209
    %v211 = vrot.slane %v192, %v210
    %v212 = vlaneseq
    %v213 = vshrl.u32 %v212, 7
    %v214 = vsub.s32 0, %v213
    %v215 = vrot.slane %v193, %v214
    %v216 = vlaneseq
    %v217 = vshrl.u32 %v216, 7
    %v218 = vsub.s32 0, %v217
    %v219 = vrot.slane %v194, %v218
    %v220 = vlaneseq
    %v221 = vshrl.u32 %v220, 7
    %v222 = vsub.s32 0, %v221
    %v223 = vrot.slane %v195, %v222
    %v224 = vlaneseq
    %v225 = vshrl.u32 %v224, 7
    %v226 = vsub.s32 0, %v225
    %v227 = vrot.slane %v196, %v226
    %v228 = vlaneseq
    %v229 = vshrl.u32 %v228, 7
    %v230 = vsub.s32 0, %v229
    %v231 = vrot.slane %v197, %v230
    %v232 = vlaneseq
    %v233 = vshrl.u32 %v232, 7
    %v234 = vsub.s32 0, %v233
    %v235 = vrot.slane %v198, %v234
    %v236 = vlaneseq
    %v237 = vshrl.u32 %v236, 7
    %v238 = vsub.s32 0, %v237
    %v239 = vrot.slane %v199, %v238
    %v240 = vlaneseq
    %v241 = vshrl.u32 %v240, 7
    %v242 = vsub.s32 0, %v241
    %v243 = vrot.slane %v200, %v242
    %v244 = vlaneseq
    %v245 = vshrl.u32 %v244, 7
    %v246 = vsub.s32 0, %v245
    %v247 = vrot.slane %v201, %v246
    %v248 = vlaneseq
    %v249 = vshrl.u32 %v248, 7
    %v250 = vsub.s32 0, %v249
    %v251 = vrot.slane %v202, %v250
    %v252 = vlaneseq
    %v253 = vshrl.u32 %v252, 7
    %v254 = vsub.s32 0, %v253
    %v255 = vrot.slane %v203, %v254
    %v256 = vlaneseq
    %v257 = vshrl.u32 %v256, 7
    %v258 = vsub.s32 0, %v257
    %v259 = vrot.slane %v204, %v258
    %v260 = vlaneseq
    %v261 = vshrl.u32 %v260, 7
    %v262 = vsub.s32 0, %v261
    %v263 = vrot.slane %v205, %v262
    %v264 = vlaneseq
    %v265 = vshrl.u32 %v264, 7
    %v266 = vsub.s32 0, %v265
    %v267 = vrot.slane %v206, %v266
    %v268 = vlaneseq
    %v269 = vshrl.u32 %v268, 7
    %v270 = vsub.s32 0, %v269
    %v271 = vrot.slane %v207, %v270
    %v273 = vpack.i.b16 %v211, %v211
    %v275 = vlaneseq
    %v276 = vshrl.u32 %v275, 7
    %v277 = vsub.s32 0, %v276
    %v278 = vrot.slane %v273, %v277
    %v280 = vpack.i.b16 %v215, %v215
    %v282 = vlaneseq
    %v283 = vshrl.u32 %v282, 7
    %v284 = vsub.s32 0, %v283
    %v285 = vrot.slane %v280, %v284
    %v287 = vpack.i.b16 %v219, %v219
    %v289 = vlaneseq
    %v290 = vshrl.u32 %v289, 7
    %v291 = vsub.s32 0, %v290
    %v292 = vrot.slane %v287, %v291
    %v294 = vpack.i.b16 %v223, %v223
    %v296 = vlaneseq
    %v297 = vshrl.u32 %v296, 7
    %v298 = vsub.s32 0, %v297
    %v299 = vrot.slane %v294, %v298
    %v301 = vpack.i.b16 %v227, %v227
    %v303 = vlaneseq
    %v304 = vshrl.u32 %v303, 7
    %v305 = vsub.s32 0, %v304
    %v306 = vrot.slane %v301, %v305
    %v308 = vpack.i.b16 %v231, %v231
    %v310 = vlaneseq
    %v311 = vshrl.u32 %v310, 7
    %v312 = vsub.s32 0, %v311
    %v313 = vrot.slane %v308, %v312
    %v315 = vpack.i.b16 %v235, %v235
    %v317 = vlaneseq
    %v318 = vshrl.u32 %v317, 7
    %v319 = vsub.s32 0, %v318
    %v320 = vrot.slane %v315, %v319
    %v322 = vpack.i.b16 %v239, %v239
    %v324 = vlaneseq
    %v325 = vshrl.u32 %v324, 7
    %v326 = vsub.s32 0, %v325
    %v327 = vrot.slane %v322, %v326
    %v329 = vpack.i.b16 %v243, %v243
    %v331 = vlaneseq
    %v332 = vshrl.u32 %v331, 7
    %v333 = vsub.s32 0, %v332
    %v334 = vrot.slane %v329, %v333
    %v336 = vpack.i.b16 %v247, %v247
    %v338 = vlaneseq
    %v339 = vshrl.u32 %v338, 7
    %v340 = vsub.s32 0, %v339
    %v341 = vrot.slane %v336, %v340
    %v343 = vpack.i.b16 %v251, %v251
    %v345 = vlaneseq
    %v346 = vshrl.u32 %v345, 7
    %v347 = vsub.s32 0, %v346
    %v348 = vrot.slane %v343, %v347
    %v350 = vpack.i.b16 %v255, %v255
    %v352 = vlaneseq
    %v353 = vshrl.u32 %v352, 7
    %v354 = vsub.s32 0, %v353
    %v355 = vrot.slane %v350, %v354
    %v357 = vpack.i.b16 %v259, %v259
    %v359 = vlaneseq
    %v360 = vshrl.u32 %v359, 7
    %v361 = vsub.s32 0, %v360
    %v362 = vrot.slane %v357, %v361
    %v364 = vpack.i.b16 %v263, %v263
    %v366 = vlaneseq
    %v367 = vshrl.u32 %v366, 7
    %v368 = vsub.s32 0, %v367
    %v369 = vrot.slane %v364, %v368
    %v371 = vpack.i.b16 %v267, %v267
    %v373 = vlaneseq
    %v374 = vshrl.u32 %v373, 7
    %v375 = vsub.s32 0, %v374
    %v376 = vrot.slane %v371, %v375
    %v378 = vpack.i.b16 %v271, %v271
    %v380 = vlaneseq
    %v381 = vshrl.u32 %v380, 7
    %v382 = vsub.s32 0, %v381
    %v383 = vrot.slane %v378, %v382
    %400 = vrot.lane.b32.xlu0 %v278, 112
    %v401 = vpop.permute.xlu0 %400
    %402 = vrot.lane.b32.xlu0 %v285, 112
    %v403 = vpop.permute.xlu0 %402
    %404 = vrot.lane.b32.xlu0 %v292, 112
    %v405 = vpop.permute.xlu0 %404
    %406 = vrot.lane.b32.xlu0 %v299, 112
    %v407 = vpop.permute.xlu0 %406
    %408 = vrot.lane.b32.xlu0 %v306, 112
    %v409 = vpop.permute.xlu0 %408
    %410 = vrot.lane.b32.xlu0 %v313, 112
    %v411 = vpop.permute.xlu0 %410
    %412 = vrot.lane.b32.xlu0 %v320, 112
    %v413 = vpop.permute.xlu0 %412
    %414 = vrot.lane.b32.xlu0 %v327, 112
    %v415 = vpop.permute.xlu0 %414
    %416 = vrot.lane.b32.xlu0 %v334, 112
    %v417 = vpop.permute.xlu0 %416
    %418 = vrot.lane.b32.xlu0 %v341, 112
    %v419 = vpop.permute.xlu0 %418
    %420 = vrot.lane.b32.xlu0 %v348, 112
    %v421 = vpop.permute.xlu0 %420
    %422 = vrot.lane.b32.xlu0 %v355, 112
    %v423 = vpop.permute.xlu0 %422
    %424 = vrot.lane.b32.xlu0 %v362, 112
    %v425 = vpop.permute.xlu0 %424
    %426 = vrot.lane.b32.xlu0 %v369, 112
    %v427 = vpop.permute.xlu0 %426
    %428 = vrot.lane.b32.xlu0 %v376, 112
    %v429 = vpop.permute.xlu0 %428
    %430 = vrot.lane.b32.xlu0 %v383, 112
    %v431 = vpop.permute.xlu0 %430
    %v448 = vadd.bf16 %v124, %v401
    %v449 = vadd.bf16 %v124, %v403
    %v450 = vadd.bf16 %v124, %v405
    %v451 = vadd.bf16 %v124, %v407
    %v452 = vadd.bf16 %v124, %v409
    %v453 = vadd.bf16 %v124, %v411
    %v454 = vadd.bf16 %v124, %v413
    %v455 = vadd.bf16 %v124, %v415
    %v456 = vadd.bf16 %v124, %v417
    %v457 = vadd.bf16 %v124, %v419
    %v458 = vadd.bf16 %v124, %v421
    %v459 = vadd.bf16 %v124, %v423
    %v460 = vadd.bf16 %v124, %v425
    %v461 = vadd.bf16 %v124, %v427
    %v462 = vadd.bf16 %v124, %v429
    %v463 = vadd.bf16 %v124, %v431
    %vm464 = vcmp.gt.bf16.partialorder %v448, 0
    %vm465 = vcmp.gt.bf16.partialorder %v449, 0
    %vm466 = vcmp.gt.bf16.partialorder %v450, 0
    %vm467 = vcmp.gt.bf16.partialorder %v451, 0
    %vm468 = vcmp.gt.bf16.partialorder %v452, 0
    %vm469 = vcmp.gt.bf16.partialorder %v453, 0
    %vm470 = vcmp.gt.bf16.partialorder %v454, 0
    %vm471 = vcmp.gt.bf16.partialorder %v455, 0
    %vm472 = vcmp.gt.bf16.partialorder %v456, 0
    %vm473 = vcmp.gt.bf16.partialorder %v457, 0
    %vm474 = vcmp.gt.bf16.partialorder %v458, 0
    %vm475 = vcmp.gt.bf16.partialorder %v459, 0
    %vm476 = vcmp.gt.bf16.partialorder %v460, 0
    %vm477 = vcmp.gt.bf16.partialorder %v461, 0
    %vm478 = vcmp.gt.bf16.partialorder %v462, 0
    %vm479 = vcmp.gt.bf16.partialorder %v463, 0
    %v480 = vmul.bf16 %v448, 1045249613
    %v481 = vmul.bf16 %v449, 1045249613
    %v482 = vmul.bf16 %v450, 1045249613
    %v483 = vmul.bf16 %v451, 1045249613
    %v484 = vmul.bf16 %v452, 1045249613
    %v485 = vmul.bf16 %v453, 1045249613
    %v486 = vmul.bf16 %v454, 1045249613
    %v487 = vmul.bf16 %v455, 1045249613
    %v488 = vmul.bf16 %v456, 1045249613
    %v489 = vmul.bf16 %v457, 1045249613
    %v490 = vmul.bf16 %v458, 1045249613
    %v491 = vmul.bf16 %v459, 1045249613
    %v492 = vmul.bf16 %v460, 1045249613
    %v493 = vmul.bf16 %v461, 1045249613
    %v494 = vmul.bf16 %v462, 1045249613
    %v495 = vmul.bf16 %v463, 1045249613
    %v496 = vsel %vm464, %v448, %v480
    %v497 = vsel %vm465, %v449, %v481
    %v498 = vsel %vm466, %v450, %v482
    %v499 = vsel %vm467, %v451, %v483
    %v500 = vsel %vm468, %v452, %v484
    %v501 = vsel %vm469, %v453, %v485
    %v502 = vsel %vm470, %v454, %v486
    %v503 = vsel %vm471, %v455, %v487
    %v504 = vsel %vm472, %v456, %v488
    %v505 = vsel %vm473, %v457, %v489
    %v506 = vsel %vm474, %v458, %v490
    %v507 = vsel %vm475, %v459, %v491
    %v508 = vsel %vm476, %v460, %v492
    %v509 = vsel %vm477, %v461, %v493
    %v510 = vsel %vm478, %v462, %v494
    %v511 = vsel %vm479, %v463, %v495
    %v513 = vpack.i.b16 %v125, %v125
    %v515 = vlaneseq
    %v516 = vshrl.u32 %v515, 7
    %v517 = vsub.s32 0, %v516
    %v518 = vrot.slane %v513, %v517
    %v519 = vmul.bf16 %v496, %v518
    %v520 = vmul.bf16 %v497, %v518
    %v521 = vmul.bf16 %v498, %v518
    %v522 = vmul.bf16 %v499, %v518
    %v523 = vmul.bf16 %v500, %v518
    %v524 = vmul.bf16 %v501, %v518
    %v525 = vmul.bf16 %v502, %v518
    %v526 = vmul.bf16 %v503, %v518
    %v527 = vmul.bf16 %v504, %v518
    %v528 = vmul.bf16 %v505, %v518
    %v529 = vmul.bf16 %v506, %v518
    %v530 = vmul.bf16 %v507, %v518
    %v531 = vmul.bf16 %v508, %v518
    %v532 = vmul.bf16 %v509, %v518
    %v533 = vmul.bf16 %v510, %v518
    %v534 = vmul.bf16 %v511, %v518
    %v535 = vunpack.c.l.bf16 %v519
    %v536 = vunpack.c.h.bf16 %v519
    %v537 = vunpack.c.l.bf16 %v520
    %v538 = vunpack.c.h.bf16 %v520
    %v539 = vunpack.c.l.bf16 %v521
    %v540 = vunpack.c.h.bf16 %v521
    %v541 = vunpack.c.l.bf16 %v522
    %v542 = vunpack.c.h.bf16 %v522
    %v543 = vunpack.c.l.bf16 %v523
    %v544 = vunpack.c.h.bf16 %v523
    %v545 = vunpack.c.l.bf16 %v524
    %v546 = vunpack.c.h.bf16 %v524
    %v547 = vunpack.c.l.bf16 %v525
    %v548 = vunpack.c.h.bf16 %v525
    %v549 = vunpack.c.l.bf16 %v526
    %v550 = vunpack.c.h.bf16 %v526
    %v551 = vunpack.c.l.bf16 %v527
    %v552 = vunpack.c.h.bf16 %v527
    %v553 = vunpack.c.l.bf16 %v528
    %v554 = vunpack.c.h.bf16 %v528
    %v555 = vunpack.c.l.bf16 %v529
    %v556 = vunpack.c.h.bf16 %v529
    %v557 = vunpack.c.l.bf16 %v530
    %v558 = vunpack.c.h.bf16 %v530
    %v559 = vunpack.c.l.bf16 %v531
    %v560 = vunpack.c.h.bf16 %v531
    %v561 = vunpack.c.l.bf16 %v532
    %v562 = vunpack.c.h.bf16 %v532
    %v563 = vunpack.c.l.bf16 %v533
    %v564 = vunpack.c.h.bf16 %v533
    %v565 = vunpack.c.l.bf16 %v534
    %v566 = vunpack.c.h.bf16 %v534
    %vm567 = vcmask 130048
    %v568 = vsel %vm567, %v535, 0.0
    %569 = vadd.xlane.f32.xlu0 %v568
    %v570 = vpop.xlane.xlu0 %569
    %v571 = vsel %vm567, %v536, 0.0
    %572 = vadd.xlane.f32.xlu0 %v571
    %v573 = vpop.xlane.xlu0 %572
    %v574 = vsel %vm567, %v537, 0.0
    %575 = vadd.xlane.f32.xlu0 %v574
    %v576 = vpop.xlane.xlu0 %575
    %v577 = vsel %vm567, %v538, 0.0
    %578 = vadd.xlane.f32.xlu0 %v577
    %v579 = vpop.xlane.xlu0 %578
    %v580 = vsel %vm567, %v539, 0.0
    %581 = vadd.xlane.f32.xlu0 %v580
    %v582 = vpop.xlane.xlu0 %581
    %v583 = vsel %vm567, %v540, 0.0
    %584 = vadd.xlane.f32.xlu0 %v583
    %v585 = vpop.xlane.xlu0 %584
    %v586 = vsel %vm567, %v541, 0.0
    %587 = vadd.xlane.f32.xlu0 %v586
    %v588 = vpop.xlane.xlu0 %587
    %v589 = vsel %vm567, %v542, 0.0
    %590 = vadd.xlane.f32.xlu0 %v589
    %v591 = vpop.xlane.xlu0 %590
    %v592 = vsel %vm567, %v543, 0.0
    %593 = vadd.xlane.f32.xlu0 %v592
    %v594 = vpop.xlane.xlu0 %593
    %v595 = vsel %vm567, %v544, 0.0
    %596 = vadd.xlane.f32.xlu0 %v595
    %v597 = vpop.xlane.xlu0 %596
    %v598 = vsel %vm567, %v545, 0.0
    %599 = vadd.xlane.f32.xlu0 %v598
    %v600 = vpop.xlane.xlu0 %599
    %v601 = vsel %vm567, %v546, 0.0
    %602 = vadd.xlane.f32.xlu0 %v601
    %v603 = vpop.xlane.xlu0 %602
    %v604 = vsel %vm567, %v547, 0.0
    %605 = vadd.xlane.f32.xlu0 %v604
    %v606 = vpop.xlane.xlu0 %605
    %v607 = vsel %vm567, %v548, 0.0
    %608 = vadd.xlane.f32.xlu0 %v607
    %v609 = vpop.xlane.xlu0 %608
    %v610 = vsel %vm567, %v549, 0.0
    %611 = vadd.xlane.f32.xlu0 %v610
    %v612 = vpop.xlane.xlu0 %611
    %v613 = vsel %vm567, %v550, 0.0
    %614 = vadd.xlane.f32.xlu0 %v613
    %v615 = vpop.xlane.xlu0 %614
    %v616 = vsel %vm567, %v551, 0.0
    %617 = vadd.xlane.f32.xlu0 %v616
    %v618 = vpop.xlane.xlu0 %617
    %v619 = vsel %vm567, %v552, 0.0
    %620 = vadd.xlane.f32.xlu0 %v619
    %v621 = vpop.xlane.xlu0 %620
    %v622 = vsel %vm567, %v553, 0.0
    %623 = vadd.xlane.f32.xlu0 %v622
    %v624 = vpop.xlane.xlu0 %623
    %v625 = vsel %vm567, %v554, 0.0
    %626 = vadd.xlane.f32.xlu0 %v625
    %v627 = vpop.xlane.xlu0 %626
    %v628 = vsel %vm567, %v555, 0.0
    %629 = vadd.xlane.f32.xlu0 %v628
    %v630 = vpop.xlane.xlu0 %629
    %v631 = vsel %vm567, %v556, 0.0
    %632 = vadd.xlane.f32.xlu0 %v631
    %v633 = vpop.xlane.xlu0 %632
    %v634 = vsel %vm567, %v557, 0.0
    %635 = vadd.xlane.f32.xlu0 %v634
    %v636 = vpop.xlane.xlu0 %635
    %v637 = vsel %vm567, %v558, 0.0
    %638 = vadd.xlane.f32.xlu0 %v637
    %v639 = vpop.xlane.xlu0 %638
    %v640 = vsel %vm567, %v559, 0.0
    %641 = vadd.xlane.f32.xlu0 %v640
    %v642 = vpop.xlane.xlu0 %641
    %v643 = vsel %vm567, %v560, 0.0
    %644 = vadd.xlane.f32.xlu0 %v643
    %v645 = vpop.xlane.xlu0 %644
    %v646 = vsel %vm567, %v561, 0.0
    %647 = vadd.xlane.f32.xlu0 %v646
    %v648 = vpop.xlane.xlu0 %647
    %v649 = vsel %vm567, %v562, 0.0
    %650 = vadd.xlane.f32.xlu0 %v649
    %v651 = vpop.xlane.xlu0 %650
    %v652 = vsel %vm567, %v563, 0.0
    %653 = vadd.xlane.f32.xlu0 %v652
    %v654 = vpop.xlane.xlu0 %653
    %v655 = vsel %vm567, %v564, 0.0
    %656 = vadd.xlane.f32.xlu0 %v655
    %v657 = vpop.xlane.xlu0 %656
    %v658 = vsel %vm567, %v565, 0.0
    %659 = vadd.xlane.f32.xlu0 %v658
    %v660 = vpop.xlane.xlu0 %659
    %v661 = vsel %vm567, %v566, 0.0
    %662 = vadd.xlane.f32.xlu0 %v661
    %v663 = vpop.xlane.xlu0 %662
    %v666 = vlaneseq
    %v667 = vshrl.u32 %v666, 7
    %v668 = vsub.s32 0, %v667
    %v669 = vrot.slane %v31, %v668
    %671 = vbcast.lane.b32.xlu0 %v669, 256
    %v672 = vpop.permute.xlu0 %671
    %s674 = sor.u32 256, 8
    %675 = vbcast.lane.b32.xlu0 %v669, %s674
    %v676 = vpop.permute.xlu0 %675
    %v677 = vlaneseq
    %v678 = vshrl.u32 %v677, 7
    %v679 = vsub.s32 1, %v678
    %v680 = vrot.slane %v31, %v679
    %682 = vbcast.lane.b32.xlu0 %v680, 256
    %v683 = vpop.permute.xlu0 %682
    %s685 = sor.u32 256, 8
    %686 = vbcast.lane.b32.xlu0 %v680, %s685
    %v687 = vpop.permute.xlu0 %686
    %v688 = vlaneseq
    %v689 = vshrl.u32 %v688, 7
    %v690 = vsub.s32 2, %v689
    %v691 = vrot.slane %v31, %v690
    %693 = vbcast.lane.b32.xlu0 %v691, 256
    %v694 = vpop.permute.xlu0 %693
    %s696 = sor.u32 256, 8
    %697 = vbcast.lane.b32.xlu0 %v691, %s696
    %v698 = vpop.permute.xlu0 %697
    %v699 = vlaneseq
    %v700 = vshrl.u32 %v699, 7
    %v701 = vsub.s32 3, %v700
    %v702 = vrot.slane %v31, %v701
    %704 = vbcast.lane.b32.xlu0 %v702, 256
    %v705 = vpop.permute.xlu0 %704
    %s707 = sor.u32 256, 8
    %708 = vbcast.lane.b32.xlu0 %v702, %s707
    %v709 = vpop.permute.xlu0 %708
    %v710 = vlaneseq
    %v711 = vshrl.u32 %v710, 7
    %v712 = vsub.s32 4, %v711
    %v713 = vrot.slane %v31, %v712
    %715 = vbcast.lane.b32.xlu0 %v713, 256
    %v716 = vpop.permute.xlu0 %715
    %s718 = sor.u32 256, 8
    %719 = vbcast.lane.b32.xlu0 %v713, %s718
    %v720 = vpop.permute.xlu0 %719
    %v721 = vlaneseq
    %v722 = vshrl.u32 %v721, 7
    %v723 = vsub.s32 5, %v722
    %v724 = vrot.slane %v31, %v723
    %726 = vbcast.lane.b32.xlu0 %v724, 256
    %v727 = vpop.permute.xlu0 %726
    %s729 = sor.u32 256, 8
    %730 = vbcast.lane.b32.xlu0 %v724, %s729
    %v731 = vpop.permute.xlu0 %730
    %v732 = vlaneseq
    %v733 = vshrl.u32 %v732, 7
    %v734 = vsub.s32 6, %v733
    %v735 = vrot.slane %v31, %v734
    %737 = vbcast.lane.b32.xlu0 %v735, 256
    %v738 = vpop.permute.xlu0 %737
    %s740 = sor.u32 256, 8
    %741 = vbcast.lane.b32.xlu0 %v735, %s740
    %v742 = vpop.permute.xlu0 %741
    %v743 = vlaneseq
    %v744 = vshrl.u32 %v743, 7
    %v745 = vsub.s32 7, %v744
    %v746 = vrot.slane %v31, %v745
    %748 = vbcast.lane.b32.xlu0 %v746, 256
    %v749 = vpop.permute.xlu0 %748
    %s751 = sor.u32 256, 8
    %752 = vbcast.lane.b32.xlu0 %v746, %s751
    %v753 = vpop.permute.xlu0 %752
    %v754 = vlaneseq
    %v755 = vshrl.u32 %v754, 7
    %v756 = vsub.s32 0, %v755
    %v757 = vrot.slane %v32, %v756
    %759 = vbcast.lane.b32.xlu0 %v757, 256
    %v760 = vpop.permute.xlu0 %759
    %s762 = sor.u32 256, 8
    %763 = vbcast.lane.b32.xlu0 %v757, %s762
    %v764 = vpop.permute.xlu0 %763
    %v765 = vlaneseq
    %v766 = vshrl.u32 %v765, 7
    %v767 = vsub.s32 1, %v766
    %v768 = vrot.slane %v32, %v767
    %770 = vbcast.lane.b32.xlu0 %v768, 256
    %v771 = vpop.permute.xlu0 %770
    %s773 = sor.u32 256, 8
    %774 = vbcast.lane.b32.xlu0 %v768, %s773
    %v775 = vpop.permute.xlu0 %774
    %v776 = vlaneseq
    %v777 = vshrl.u32 %v776, 7
    %v778 = vsub.s32 2, %v777
    %v779 = vrot.slane %v32, %v778
    %781 = vbcast.lane.b32.xlu0 %v779, 256
    %v782 = vpop.permute.xlu0 %781
    %s784 = sor.u32 256, 8
    %785 = vbcast.lane.b32.xlu0 %v779, %s784
    %v786 = vpop.permute.xlu0 %785
    %v787 = vlaneseq
    %v788 = vshrl.u32 %v787, 7
    %v789 = vsub.s32 3, %v788
    %v790 = vrot.slane %v32, %v789
    %792 = vbcast.lane.b32.xlu0 %v790, 256
    %v793 = vpop.permute.xlu0 %792
    %s795 = sor.u32 256, 8
    %796 = vbcast.lane.b32.xlu0 %v790, %s795
    %v797 = vpop.permute.xlu0 %796
    %v798 = vlaneseq
    %v799 = vshrl.u32 %v798, 7
    %v800 = vsub.s32 4, %v799
    %v801 = vrot.slane %v32, %v800
    %803 = vbcast.lane.b32.xlu0 %v801, 256
    %v804 = vpop.permute.xlu0 %803
    %s806 = sor.u32 256, 8
    %807 = vbcast.lane.b32.xlu0 %v801, %s806
    %v808 = vpop.permute.xlu0 %807
    %v809 = vlaneseq
    %v810 = vshrl.u32 %v809, 7
    %v811 = vsub.s32 5, %v810
    %v812 = vrot.slane %v32, %v811
    %814 = vbcast.lane.b32.xlu0 %v812, 256
    %v815 = vpop.permute.xlu0 %814
    %s817 = sor.u32 256, 8
    %818 = vbcast.lane.b32.xlu0 %v812, %s817
    %v819 = vpop.permute.xlu0 %818
    %v820 = vlaneseq
    %v821 = vshrl.u32 %v820, 7
    %v822 = vsub.s32 6, %v821
    %v823 = vrot.slane %v32, %v822
    %825 = vbcast.lane.b32.xlu0 %v823, 256
    %v826 = vpop.permute.xlu0 %825
    %s828 = sor.u32 256, 8
    %829 = vbcast.lane.b32.xlu0 %v823, %s828
    %v830 = vpop.permute.xlu0 %829
    %v831 = vlaneseq
    %v832 = vshrl.u32 %v831, 7
    %v833 = vsub.s32 7, %v832
    %v834 = vrot.slane %v32, %v833
    %836 = vbcast.lane.b32.xlu0 %v834, 256
    %v837 = vpop.permute.xlu0 %836
    %s839 = sor.u32 256, 8
    %840 = vbcast.lane.b32.xlu0 %v834, %s839
    %v841 = vpop.permute.xlu0 %840
    %v874 = vadd.f32 %v570, %v672
    %v875 = vadd.f32 %v573, %v676
    %v876 = vadd.f32 %v576, %v683
    %v877 = vadd.f32 %v579, %v687
    %v878 = vadd.f32 %v582, %v694
    %v879 = vadd.f32 %v585, %v698
    %v880 = vadd.f32 %v588, %v705
    %v881 = vadd.f32 %v591, %v709
    %v882 = vadd.f32 %v594, %v716
    %v883 = vadd.f32 %v597, %v720
    %v884 = vadd.f32 %v600, %v727
    %v885 = vadd.f32 %v603, %v731
    %v886 = vadd.f32 %v606, %v738
    %v887 = vadd.f32 %v609, %v742
    %v888 = vadd.f32 %v612, %v749
    %v889 = vadd.f32 %v615, %v753
    %v890 = vadd.f32 %v618, %v760
    %v891 = vadd.f32 %v621, %v764
    %v892 = vadd.f32 %v624, %v771
    %v893 = vadd.f32 %v627, %v775
    %v894 = vadd.f32 %v630, %v782
    %v895 = vadd.f32 %v633, %v786
    %v896 = vadd.f32 %v636, %v793
    %v897 = vadd.f32 %v639, %v797
    %v898 = vadd.f32 %v642, %v804
    %v899 = vadd.f32 %v645, %v808
    %v900 = vadd.f32 %v648, %v815
    %v901 = vadd.f32 %v651, %v819
    %v902 = vadd.f32 %v654, %v826
    %v903 = vadd.f32 %v657, %v830
    %v904 = vadd.f32 %v660, %v837
    %v905 = vadd.f32 %v663, %v841
    %938 = vset.pattern.permute.xlu0 0
    %939 = vperm.xlu0 %938, %v874
    %v940 = vpop.permute.xlu0 %939
    %941 = vset.pattern.permute.xlu0 0
    %942 = vperm.xlu0 %941, %v875
    %v943 = vpop.permute.xlu0 %942
    %944 = vset.pattern.permute.xlu0 0
    %945 = vperm.xlu0 %944, %v876
    %v946 = vpop.permute.xlu0 %945
    %947 = vset.pattern.permute.xlu0 0
    %948 = vperm.xlu0 %947, %v877
    %v949 = vpop.permute.xlu0 %948
    %950 = vset.pattern.permute.xlu0 0
    %951 = vperm.xlu0 %950, %v878
    %v952 = vpop.permute.xlu0 %951
    %953 = vset.pattern.permute.xlu0 0
    %954 = vperm.xlu0 %953, %v879
    %v955 = vpop.permute.xlu0 %954
    %956 = vset.pattern.permute.xlu0 0
    %957 = vperm.xlu0 %956, %v880
    %v958 = vpop.permute.xlu0 %957
    %959 = vset.pattern.permute.xlu0 0
    %960 = vperm.xlu0 %959, %v881
    %v961 = vpop.permute.xlu0 %960
    %962 = vset.pattern.permute.xlu0 0
    %963 = vperm.xlu0 %962, %v882
    %v964 = vpop.permute.xlu0 %963
    %965 = vset.pattern.permute.xlu0 0
    %966 = vperm.xlu0 %965, %v883
    %v967 = vpop.permute.xlu0 %966
    %968 = vset.pattern.permute.xlu0 0
    %969 = vperm.xlu0 %968, %v884
    %v970 = vpop.permute.xlu0 %969
    %971 = vset.pattern.permute.xlu0 0
    %972 = vperm.xlu0 %971, %v885
    %v973 = vpop.permute.xlu0 %972
    %974 = vset.pattern.permute.xlu0 0
    %975 = vperm.xlu0 %974, %v886
    %v976 = vpop.permute.xlu0 %975
    %977 = vset.pattern.permute.xlu0 0
    %978 = vperm.xlu0 %977, %v887
    %v979 = vpop.permute.xlu0 %978
    %980 = vset.pattern.permute.xlu0 0
    %981 = vperm.xlu0 %980, %v888
    %v982 = vpop.permute.xlu0 %981
    %983 = vset.pattern.permute.xlu0 0
    %984 = vperm.xlu0 %983, %v889
    %v985 = vpop.permute.xlu0 %984
    %986 = vset.pattern.permute.xlu0 0
    %987 = vperm.xlu0 %986, %v890
    %v988 = vpop.permute.xlu0 %987
    %989 = vset.pattern.permute.xlu0 0
    %990 = vperm.xlu0 %989, %v891
    %v991 = vpop.permute.xlu0 %990
    %992 = vset.pattern.permute.xlu0 0
    %993 = vperm.xlu0 %992, %v892
    %v994 = vpop.permute.xlu0 %993
    %995 = vset.pattern.permute.xlu0 0
    %996 = vperm.xlu0 %995, %v893
    %v997 = vpop.permute.xlu0 %996
    %998 = vset.pattern.permute.xlu0 0
    %999 = vperm.xlu0 %998, %v894
    %v1000 = vpop.permute.xlu0 %999
    %1001 = vset.pattern.permute.xlu0 0
    %1002 = vperm.xlu0 %1001, %v895
    %v1003 = vpop.permute.xlu0 %1002
    %1004 = vset.pattern.permute.xlu0 0
    %1005 = vperm.xlu0 %1004, %v896
    %v1006 = vpop.permute.xlu0 %1005
    %1007 = vset.pattern.permute.xlu0 0
    %1008 = vperm.xlu0 %1007, %v897
    %v1009 = vpop.permute.xlu0 %1008
    %1010 = vset.pattern.permute.xlu0 0
    %1011 = vperm.xlu0 %1010, %v898
    %v1012 = vpop.permute.xlu0 %1011
    %1013 = vset.pattern.permute.xlu0 0
    %1014 = vperm.xlu0 %1013, %v899
    %v1015 = vpop.permute.xlu0 %1014
    %1016 = vset.pattern.permute.xlu0 0
    %1017 = vperm.xlu0 %1016, %v900
    %v1018 = vpop.permute.xlu0 %1017
    %1019 = vset.pattern.permute.xlu0 0
    %1020 = vperm.xlu0 %1019, %v901
    %v1021 = vpop.permute.xlu0 %1020
    %1022 = vset.pattern.permute.xlu0 0
    %1023 = vperm.xlu0 %1022, %v902
    %v1024 = vpop.permute.xlu0 %1023
    %1025 = vset.pattern.permute.xlu0 0
    %1026 = vperm.xlu0 %1025, %v903
    %v1027 = vpop.permute.xlu0 %1026
    %1028 = vset.pattern.permute.xlu0 0
    %1029 = vperm.xlu0 %1028, %v904
    %v1030 = vpop.permute.xlu0 %1029
    %1031 = vset.pattern.permute.xlu0 0
    %1032 = vperm.xlu0 %1031, %v905
    %v1033 = vpop.permute.xlu0 %1032
    %v1034 = vlaneseq
    %v1035 = vand.u32 %v1034, 127
    %v1036 = vlaneseq
    %v1037 = vshrl.u32 %v1036, 7
    %v1038 = vsub.s32 %v1035, %v1037
    %v1039 = vrot.slane %v940, %v1038
    %v1040 = vadd.s32 %v1035, 4294967288
    %v1041 = vlaneseq
    %v1042 = vshrl.u32 %v1041, 7
    %v1043 = vsub.s32 %v1040, %v1042
    %v1044 = vrot.slane %v943, %v1043
    %vm1045 = vcmask 130112
    %v1046 = vsel %vm1045, %v1044, %v1039
    %v1047 = vlaneseq
    %v1048 = vshrl.u32 %v1047, 7
    %v1049 = vsub.s32 %v1035, %v1048
    %v1050 = vrot.slane %v946, %v1049
    %v1051 = vlaneseq
    %v1052 = vshrl.u32 %v1051, 7
    %v1053 = vsub.s32 %v1040, %v1052
    %v1054 = vrot.slane %v949, %v1053
    %v1055 = vsel %vm1045, %v1054, %v1050
    %v1056 = vlaneseq
    %v1057 = vshrl.u32 %v1056, 7
    %v1058 = vsub.s32 %v1035, %v1057
    %v1059 = vrot.slane %v952, %v1058
    %v1060 = vlaneseq
    %v1061 = vshrl.u32 %v1060, 7
    %v1062 = vsub.s32 %v1040, %v1061
    %v1063 = vrot.slane %v955, %v1062
    %v1064 = vsel %vm1045, %v1063, %v1059
    %v1065 = vlaneseq
    %v1066 = vshrl.u32 %v1065, 7
    %v1067 = vsub.s32 %v1035, %v1066
    %v1068 = vrot.slane %v958, %v1067
    %v1069 = vlaneseq
    %v1070 = vshrl.u32 %v1069, 7
    %v1071 = vsub.s32 %v1040, %v1070
    %v1072 = vrot.slane %v961, %v1071
    %v1073 = vsel %vm1045, %v1072, %v1068
    %v1074 = vlaneseq
    %v1075 = vshrl.u32 %v1074, 7
    %v1076 = vsub.s32 %v1035, %v1075
    %v1077 = vrot.slane %v964, %v1076
    %v1078 = vlaneseq
    %v1079 = vshrl.u32 %v1078, 7
    %v1080 = vsub.s32 %v1040, %v1079
    %v1081 = vrot.slane %v967, %v1080
    %v1082 = vsel %vm1045, %v1081, %v1077
    %v1083 = vlaneseq
    %v1084 = vshrl.u32 %v1083, 7
    %v1085 = vsub.s32 %v1035, %v1084
    %v1086 = vrot.slane %v970, %v1085
    %v1087 = vlaneseq
    %v1088 = vshrl.u32 %v1087, 7
    %v1089 = vsub.s32 %v1040, %v1088
    %v1090 = vrot.slane %v973, %v1089
    %v1091 = vsel %vm1045, %v1090, %v1086
    %v1092 = vlaneseq
    %v1093 = vshrl.u32 %v1092, 7
    %v1094 = vsub.s32 %v1035, %v1093
    %v1095 = vrot.slane %v976, %v1094
    %v1096 = vlaneseq
    %v1097 = vshrl.u32 %v1096, 7
    %v1098 = vsub.s32 %v1040, %v1097
    %v1099 = vrot.slane %v979, %v1098
    %v1100 = vsel %vm1045, %v1099, %v1095
    %v1101 = vlaneseq
    %v1102 = vshrl.u32 %v1101, 7
    %v1103 = vsub.s32 %v1035, %v1102
    %v1104 = vrot.slane %v982, %v1103
    %v1105 = vlaneseq
    %v1106 = vshrl.u32 %v1105, 7
    %v1107 = vsub.s32 %v1040, %v1106
    %v1108 = vrot.slane %v985, %v1107
    %v1109 = vsel %vm1045, %v1108, %v1104
    %v1110 = vlaneseq
    %v1111 = vshrl.u32 %v1110, 7
    %v1112 = vsub.s32 %v1035, %v1111
    %v1113 = vrot.slane %v988, %v1112
    %v1114 = vlaneseq
    %v1115 = vshrl.u32 %v1114, 7
    %v1116 = vsub.s32 %v1040, %v1115
    %v1117 = vrot.slane %v991, %v1116
    %v1118 = vsel %vm1045, %v1117, %v1113
    %v1119 = vlaneseq
    %v1120 = vshrl.u32 %v1119, 7
    %v1121 = vsub.s32 %v1035, %v1120
    %v1122 = vrot.slane %v994, %v1121
    %v1123 = vlaneseq
    %v1124 = vshrl.u32 %v1123, 7
    %v1125 = vsub.s32 %v1040, %v1124
    %v1126 = vrot.slane %v997, %v1125
    %v1127 = vsel %vm1045, %v1126, %v1122
    %v1128 = vlaneseq
    %v1129 = vshrl.u32 %v1128, 7
    %v1130 = vsub.s32 %v1035, %v1129
    %v1131 = vrot.slane %v1000, %v1130
    %v1132 = vlaneseq
    %v1133 = vshrl.u32 %v1132, 7
    %v1134 = vsub.s32 %v1040, %v1133
    %v1135 = vrot.slane %v1003, %v1134
    %v1136 = vsel %vm1045, %v1135, %v1131
    %v1137 = vlaneseq
    %v1138 = vshrl.u32 %v1137, 7
    %v1139 = vsub.s32 %v1035, %v1138
    %v1140 = vrot.slane %v1006, %v1139
    %v1141 = vlaneseq
    %v1142 = vshrl.u32 %v1141, 7
    %v1143 = vsub.s32 %v1040, %v1142
    %v1144 = vrot.slane %v1009, %v1143
    %v1145 = vsel %vm1045, %v1144, %v1140
    %v1146 = vlaneseq
    %v1147 = vshrl.u32 %v1146, 7
    %v1148 = vsub.s32 %v1035, %v1147
    %v1149 = vrot.slane %v1012, %v1148
    %v1150 = vlaneseq
    %v1151 = vshrl.u32 %v1150, 7
    %v1152 = vsub.s32 %v1040, %v1151
    %v1153 = vrot.slane %v1015, %v1152
    %v1154 = vsel %vm1045, %v1153, %v1149
    %v1155 = vlaneseq
    %v1156 = vshrl.u32 %v1155, 7
    %v1157 = vsub.s32 %v1035, %v1156
    %v1158 = vrot.slane %v1018, %v1157
    %v1159 = vlaneseq
    %v1160 = vshrl.u32 %v1159, 7
    %v1161 = vsub.s32 %v1040, %v1160
    %v1162 = vrot.slane %v1021, %v1161
    %v1163 = vsel %vm1045, %v1162, %v1158
    %v1164 = vlaneseq
    %v1165 = vshrl.u32 %v1164, 7
    %v1166 = vsub.s32 %v1035, %v1165
    %v1167 = vrot.slane %v1024, %v1166
    %v1168 = vlaneseq
    %v1169 = vshrl.u32 %v1168, 7
    %v1170 = vsub.s32 %v1040, %v1169
    %v1171 = vrot.slane %v1027, %v1170
    %v1172 = vsel %vm1045, %v1171, %v1167
    %v1173 = vlaneseq
    %v1174 = vshrl.u32 %v1173, 7
    %v1175 = vsub.s32 %v1035, %v1174
    %v1176 = vrot.slane %v1030, %v1175
    %v1177 = vlaneseq
    %v1178 = vshrl.u32 %v1177, 7
    %v1179 = vsub.s32 %v1040, %v1178
    %v1180 = vrot.slane %v1033, %v1179
    %v1181 = vsel %vm1045, %v1180, %v1176
    %vm1182 = vcmask 1041409
    %v1183 = vsel %vm1182, %v1055, %v1046
    %vm1184 = vcmask 1042434
    %v1185 = vsel %vm1184, %v1064, %v1183
    %vm1186 = vcmask 1043459
    %v1187 = vsel %vm1186, %v1073, %v1185
    %vm1188 = vcmask 1044484
    %v1189 = vsel %vm1188, %v1082, %v1187
    %vm1190 = vcmask 1045509
    %v1191 = vsel %vm1190, %v1091, %v1189
    %vm1192 = vcmask 1046534
    %v1193 = vsel %vm1192, %v1100, %v1191
    %vm1194 = vcmask 1047559
    %v1195 = vsel %vm1194, %v1109, %v1193
    %v1196 = vsel %vm1182, %v1127, %v1118
    %v1197 = vsel %vm1184, %v1136, %v1196
    %v1198 = vsel %vm1186, %v1145, %v1197
    %v1199 = vsel %vm1188, %v1154, %v1198
    %v1200 = vsel %vm1190, %v1163, %v1199
    %v1201 = vsel %vm1192, %v1172, %v1200
    %v1202 = vsel %vm1194, %v1181, %v1201
    %v1205 = vsel %vm567, %v1195, -inf
    %1206 = vmax.xlane.f32.xlu0 %v1205
    %v1207 = vpop.xlane.xlu0 %1206
    %v1208 = vsel %vm567, %v1202, -inf
    %1209 = vmax.xlane.f32.xlu0 %v1208
    %v1210 = vpop.xlane.xlu0 %1209
    %v1213 = vlaneseq
    %v1214 = vshrl.u32 %v1213, 7
    %v1215 = vsub.s32 0, %v1214
    %v1216 = vrot.slane %v1207, %v1215
    %v1217 = vlaneseq
    %v1218 = vshrl.u32 %v1217, 7
    %v1219 = vsub.s32 1, %v1218
    %v1220 = vrot.slane %v1207, %v1219
    %v1221 = vlaneseq
    %v1222 = vshrl.u32 %v1221, 7
    %v1223 = vsub.s32 2, %v1222
    %v1224 = vrot.slane %v1207, %v1223
    %v1225 = vlaneseq
    %v1226 = vshrl.u32 %v1225, 7
    %v1227 = vsub.s32 3, %v1226
    %v1228 = vrot.slane %v1207, %v1227
    %v1229 = vlaneseq
    %v1230 = vshrl.u32 %v1229, 7
    %v1231 = vsub.s32 4, %v1230
    %v1232 = vrot.slane %v1207, %v1231
    %v1233 = vlaneseq
    %v1234 = vshrl.u32 %v1233, 7
    %v1235 = vsub.s32 5, %v1234
    %v1236 = vrot.slane %v1207, %v1235
    %v1237 = vlaneseq
    %v1238 = vshrl.u32 %v1237, 7
    %v1239 = vsub.s32 6, %v1238
    %v1240 = vrot.slane %v1207, %v1239
    %v1241 = vlaneseq
    %v1242 = vshrl.u32 %v1241, 7
    %v1243 = vsub.s32 7, %v1242
    %v1244 = vrot.slane %v1207, %v1243
    %v1245 = vlaneseq
    %v1246 = vshrl.u32 %v1245, 7
    %v1247 = vsub.s32 0, %v1246
    %v1248 = vrot.slane %v1210, %v1247
    %v1249 = vlaneseq
    %v1250 = vshrl.u32 %v1249, 7
    %v1251 = vsub.s32 1, %v1250
    %v1252 = vrot.slane %v1210, %v1251
    %v1253 = vlaneseq
    %v1254 = vshrl.u32 %v1253, 7
    %v1255 = vsub.s32 2, %v1254
    %v1256 = vrot.slane %v1210, %v1255
    %v1257 = vlaneseq
    %v1258 = vshrl.u32 %v1257, 7
    %v1259 = vsub.s32 3, %v1258
    %v1260 = vrot.slane %v1210, %v1259
    %v1261 = vlaneseq
    %v1262 = vshrl.u32 %v1261, 7
    %v1263 = vsub.s32 4, %v1262
    %v1264 = vrot.slane %v1210, %v1263
    %v1265 = vlaneseq
    %v1266 = vshrl.u32 %v1265, 7
    %v1267 = vsub.s32 5, %v1266
    %v1268 = vrot.slane %v1210, %v1267
    %v1269 = vlaneseq
    %v1270 = vshrl.u32 %v1269, 7
    %v1271 = vsub.s32 6, %v1270
    %v1272 = vrot.slane %v1210, %v1271
    %v1273 = vlaneseq
    %v1274 = vshrl.u32 %v1273, 7
    %v1275 = vsub.s32 7, %v1274
    %v1276 = vrot.slane %v1210, %v1275
    %v1293 = vsub.f32 %v874, %v1216
    %v1294 = vsub.f32 %v875, %v1216
    %v1295 = vsub.f32 %v876, %v1220
    %v1296 = vsub.f32 %v877, %v1220
    %v1297 = vsub.f32 %v878, %v1224
    %v1298 = vsub.f32 %v879, %v1224
    %v1299 = vsub.f32 %v880, %v1228
    %v1300 = vsub.f32 %v881, %v1228
    %v1301 = vsub.f32 %v882, %v1232
    %v1302 = vsub.f32 %v883, %v1232
    %v1303 = vsub.f32 %v884, %v1236
    %v1304 = vsub.f32 %v885, %v1236
    %v1305 = vsub.f32 %v886, %v1240
    %v1306 = vsub.f32 %v887, %v1240
    %v1307 = vsub.f32 %v888, %v1244
    %v1308 = vsub.f32 %v889, %v1244
    %v1309 = vsub.f32 %v890, %v1248
    %v1310 = vsub.f32 %v891, %v1248
    %v1311 = vsub.f32 %v892, %v1252
    %v1312 = vsub.f32 %v893, %v1252
    %v1313 = vsub.f32 %v894, %v1256
    %v1314 = vsub.f32 %v895, %v1256
    %v1315 = vsub.f32 %v896, %v1260
    %v1316 = vsub.f32 %v897, %v1260
    %v1317 = vsub.f32 %v898, %v1264
    %v1318 = vsub.f32 %v899, %v1264
    %v1319 = vsub.f32 %v900, %v1268
    %v1320 = vsub.f32 %v901, %v1268
    %v1321 = vsub.f32 %v902, %v1272
    %v1322 = vsub.f32 %v903, %v1272
    %v1323 = vsub.f32 %v904, %v1276
    %v1324 = vsub.f32 %v905, %v1276
    %v1325 = vmul.f32 %v1293, 1.442695
    %v1326 = vpow.pop %v1325
    %v1327 = vmul.f32 %v1294, 1.442695
    %v1328 = vpow.pop %v1327
    %v1329 = vmul.f32 %v1295, 1.442695
    %v1330 = vpow.pop %v1329
    %v1331 = vmul.f32 %v1296, 1.442695
    %v1332 = vpow.pop %v1331
    %v1333 = vmul.f32 %v1297, 1.442695
    %v1334 = vpow.pop %v1333
    %v1335 = vmul.f32 %v1298, 1.442695
    %v1336 = vpow.pop %v1335
    %v1337 = vmul.f32 %v1299, 1.442695
    %v1338 = vpow.pop %v1337
    %v1339 = vmul.f32 %v1300, 1.442695
    %v1340 = vpow.pop %v1339
    %v1341 = vmul.f32 %v1301, 1.442695
    %v1342 = vpow.pop %v1341
    %v1343 = vmul.f32 %v1302, 1.442695
    %v1344 = vpow.pop %v1343
    %v1345 = vmul.f32 %v1303, 1.442695
    %v1346 = vpow.pop %v1345
    %v1347 = vmul.f32 %v1304, 1.442695
    %v1348 = vpow.pop %v1347
    %v1349 = vmul.f32 %v1305, 1.442695
    %v1350 = vpow.pop %v1349
    %v1351 = vmul.f32 %v1306, 1.442695
    %v1352 = vpow.pop %v1351
    %v1353 = vmul.f32 %v1307, 1.442695
    %v1354 = vpow.pop %v1353
    %v1355 = vmul.f32 %v1308, 1.442695
    %v1356 = vpow.pop %v1355
    %v1357 = vmul.f32 %v1309, 1.442695
    %v1358 = vpow.pop %v1357
    %v1359 = vmul.f32 %v1310, 1.442695
    %v1360 = vpow.pop %v1359
    %v1361 = vmul.f32 %v1311, 1.442695
    %v1362 = vpow.pop %v1361
    %v1363 = vmul.f32 %v1312, 1.442695
    %v1364 = vpow.pop %v1363
    %v1365 = vmul.f32 %v1313, 1.442695
    %v1366 = vpow.pop %v1365
    %v1367 = vmul.f32 %v1314, 1.442695
    %v1368 = vpow.pop %v1367
    %v1369 = vmul.f32 %v1315, 1.442695
    %v1370 = vpow.pop %v1369
    %v1371 = vmul.f32 %v1316, 1.442695
    %v1372 = vpow.pop %v1371
    %v1373 = vmul.f32 %v1317, 1.442695
    %v1374 = vpow.pop %v1373
    %v1375 = vmul.f32 %v1318, 1.442695
    %v1376 = vpow.pop %v1375
    %v1377 = vmul.f32 %v1319, 1.442695
    %v1378 = vpow.pop %v1377
    %v1379 = vmul.f32 %v1320, 1.442695
    %v1380 = vpow.pop %v1379
    %v1381 = vmul.f32 %v1321, 1.442695
    %v1382 = vpow.pop %v1381
    %v1383 = vmul.f32 %v1322, 1.442695
    %v1384 = vpow.pop %v1383
    %v1385 = vmul.f32 %v1323, 1.442695
    %v1386 = vpow.pop %v1385
    %v1387 = vmul.f32 %v1324, 1.442695
    %v1388 = vpow.pop %v1387
    %1421 = vset.pattern.permute.xlu0 0
    %1422 = vperm.xlu0 %1421, %v1326
    %v1423 = vpop.permute.xlu0 %1422
    %1424 = vset.pattern.permute.xlu0 0
    %1425 = vperm.xlu0 %1424, %v1328
    %v1426 = vpop.permute.xlu0 %1425
    %1427 = vset.pattern.permute.xlu0 0
    %1428 = vperm.xlu0 %1427, %v1330
    %v1429 = vpop.permute.xlu0 %1428
    %1430 = vset.pattern.permute.xlu0 0
    %1431 = vperm.xlu0 %1430, %v1332
    %v1432 = vpop.permute.xlu0 %1431
    %1433 = vset.pattern.permute.xlu0 0
    %1434 = vperm.xlu0 %1433, %v1334
    %v1435 = vpop.permute.xlu0 %1434
    %1436 = vset.pattern.permute.xlu0 0
    %1437 = vperm.xlu0 %1436, %v1336
    %v1438 = vpop.permute.xlu0 %1437
    %1439 = vset.pattern.permute.xlu0 0
    %1440 = vperm.xlu0 %1439, %v1338
    %v1441 = vpop.permute.xlu0 %1440
    %1442 = vset.pattern.permute.xlu0 0
    %1443 = vperm.xlu0 %1442, %v1340
    %v1444 = vpop.permute.xlu0 %1443
    %1445 = vset.pattern.permute.xlu0 0
    %1446 = vperm.xlu0 %1445, %v1342
    %v1447 = vpop.permute.xlu0 %1446
    %1448 = vset.pattern.permute.xlu0 0
    %1449 = vperm.xlu0 %1448, %v1344
    %v1450 = vpop.permute.xlu0 %1449
    %1451 = vset.pattern.permute.xlu0 0
    %1452 = vperm.xlu0 %1451, %v1346
    %v1453 = vpop.permute.xlu0 %1452
    %1454 = vset.pattern.permute.xlu0 0
    %1455 = vperm.xlu0 %1454, %v1348
    %v1456 = vpop.permute.xlu0 %1455
    %1457 = vset.pattern.permute.xlu0 0
    %1458 = vperm.xlu0 %1457, %v1350
    %v1459 = vpop.permute.xlu0 %1458
    %1460 = vset.pattern.permute.xlu0 0
    %1461 = vperm.xlu0 %1460, %v1352
    %v1462 = vpop.permute.xlu0 %1461
    %1463 = vset.pattern.permute.xlu0 0
    %1464 = vperm.xlu0 %1463, %v1354
    %v1465 = vpop.permute.xlu0 %1464
    %1466 = vset.pattern.permute.xlu0 0
    %1467 = vperm.xlu0 %1466, %v1356
    %v1468 = vpop.permute.xlu0 %1467
    %1469 = vset.pattern.permute.xlu0 0
    %1470 = vperm.xlu0 %1469, %v1358
    %v1471 = vpop.permute.xlu0 %1470
    %1472 = vset.pattern.permute.xlu0 0
    %1473 = vperm.xlu0 %1472, %v1360
    %v1474 = vpop.permute.xlu0 %1473
    %1475 = vset.pattern.permute.xlu0 0
    %1476 = vperm.xlu0 %1475, %v1362
    %v1477 = vpop.permute.xlu0 %1476
    %1478 = vset.pattern.permute.xlu0 0
    %1479 = vperm.xlu0 %1478, %v1364
    %v1480 = vpop.permute.xlu0 %1479
    %1481 = vset.pattern.permute.xlu0 0
    %1482 = vperm.xlu0 %1481, %v1366
    %v1483 = vpop.permute.xlu0 %1482
    %1484 = vset.pattern.permute.xlu0 0
    %1485 = vperm.xlu0 %1484, %v1368
    %v1486 = vpop.permute.xlu0 %1485
    %1487 = vset.pattern.permute.xlu0 0
    %1488 = vperm.xlu0 %1487, %v1370
    %v1489 = vpop.permute.xlu0 %1488
    %1490 = vset.pattern.permute.xlu0 0
    %1491 = vperm.xlu0 %1490, %v1372
    %v1492 = vpop.permute.xlu0 %1491
    %1493 = vset.pattern.permute.xlu0 0
    %1494 = vperm.xlu0 %1493, %v1374
    %v1495 = vpop.permute.xlu0 %1494
    %1496 = vset.pattern.permute.xlu0 0
    %1497 = vperm.xlu0 %1496, %v1376
    %v1498 = vpop.permute.xlu0 %1497
    %1499 = vset.pattern.permute.xlu0 0
    %1500 = vperm.xlu0 %1499, %v1378
    %v1501 = vpop.permute.xlu0 %1500
    %1502 = vset.pattern.permute.xlu0 0
    %1503 = vperm.xlu0 %1502, %v1380
    %v1504 = vpop.permute.xlu0 %1503
    %1505 = vset.pattern.permute.xlu0 0
    %1506 = vperm.xlu0 %1505, %v1382
    %v1507 = vpop.permute.xlu0 %1506
    %1508 = vset.pattern.permute.xlu0 0
    %1509 = vperm.xlu0 %1508, %v1384
    %v1510 = vpop.permute.xlu0 %1509
    %1511 = vset.pattern.permute.xlu0 0
    %1512 = vperm.xlu0 %1511, %v1386
    %v1513 = vpop.permute.xlu0 %1512
    %1514 = vset.pattern.permute.xlu0 0
    %1515 = vperm.xlu0 %1514, %v1388
    %v1516 = vpop.permute.xlu0 %1515
    %v1517 = vlaneseq
    %v1518 = vshrl.u32 %v1517, 7
    %v1519 = vsub.s32 %v1035, %v1518
    %v1520 = vrot.slane %v1423, %v1519
    %v1521 = vlaneseq
    %v1522 = vshrl.u32 %v1521, 7
    %v1523 = vsub.s32 %v1040, %v1522
    %v1524 = vrot.slane %v1426, %v1523
    %v1525 = vsel %vm1045, %v1524, %v1520
    %v1526 = vlaneseq
    %v1527 = vshrl.u32 %v1526, 7
    %v1528 = vsub.s32 %v1035, %v1527
    %v1529 = vrot.slane %v1429, %v1528
    %v1530 = vlaneseq
    %v1531 = vshrl.u32 %v1530, 7
    %v1532 = vsub.s32 %v1040, %v1531
    %v1533 = vrot.slane %v1432, %v1532
    %v1534 = vsel %vm1045, %v1533, %v1529
    %v1535 = vlaneseq
    %v1536 = vshrl.u32 %v1535, 7
    %v1537 = vsub.s32 %v1035, %v1536
    %v1538 = vrot.slane %v1435, %v1537
    %v1539 = vlaneseq
    %v1540 = vshrl.u32 %v1539, 7
    %v1541 = vsub.s32 %v1040, %v1540
    %v1542 = vrot.slane %v1438, %v1541
    %v1543 = vsel %vm1045, %v1542, %v1538
    %v1544 = vlaneseq
    %v1545 = vshrl.u32 %v1544, 7
    %v1546 = vsub.s32 %v1035, %v1545
    %v1547 = vrot.slane %v1441, %v1546
    %v1548 = vlaneseq
    %v1549 = vshrl.u32 %v1548, 7
    %v1550 = vsub.s32 %v1040, %v1549
    %v1551 = vrot.slane %v1444, %v1550
    %v1552 = vsel %vm1045, %v1551, %v1547
    %v1553 = vlaneseq
    %v1554 = vshrl.u32 %v1553, 7
    %v1555 = vsub.s32 %v1035, %v1554
    %v1556 = vrot.slane %v1447, %v1555
    %v1557 = vlaneseq
    %v1558 = vshrl.u32 %v1557, 7
    %v1559 = vsub.s32 %v1040, %v1558
    %v1560 = vrot.slane %v1450, %v1559
    %v1561 = vsel %vm1045, %v1560, %v1556
    %v1562 = vlaneseq
    %v1563 = vshrl.u32 %v1562, 7
    %v1564 = vsub.s32 %v1035, %v1563
    %v1565 = vrot.slane %v1453, %v1564
    %v1566 = vlaneseq
    %v1567 = vshrl.u32 %v1566, 7
    %v1568 = vsub.s32 %v1040, %v1567
    %v1569 = vrot.slane %v1456, %v1568
    %v1570 = vsel %vm1045, %v1569, %v1565
    %v1571 = vlaneseq
    %v1572 = vshrl.u32 %v1571, 7
    %v1573 = vsub.s32 %v1035, %v1572
    %v1574 = vrot.slane %v1459, %v1573
    %v1575 = vlaneseq
    %v1576 = vshrl.u32 %v1575, 7
    %v1577 = vsub.s32 %v1040, %v1576
    %v1578 = vrot.slane %v1462, %v1577
    %v1579 = vsel %vm1045, %v1578, %v1574
    %v1580 = vlaneseq
    %v1581 = vshrl.u32 %v1580, 7
    %v1582 = vsub.s32 %v1035, %v1581
    %v1583 = vrot.slane %v1465, %v1582
    %v1584 = vlaneseq
    %v1585 = vshrl.u32 %v1584, 7
    %v1586 = vsub.s32 %v1040, %v1585
    %v1587 = vrot.slane %v1468, %v1586
    %v1588 = vsel %vm1045, %v1587, %v1583
    %v1589 = vlaneseq
    %v1590 = vshrl.u32 %v1589, 7
    %v1591 = vsub.s32 %v1035, %v1590
    %v1592 = vrot.slane %v1471, %v1591
    %v1593 = vlaneseq
    %v1594 = vshrl.u32 %v1593, 7
    %v1595 = vsub.s32 %v1040, %v1594
    %v1596 = vrot.slane %v1474, %v1595
    %v1597 = vsel %vm1045, %v1596, %v1592
    %v1598 = vlaneseq
    %v1599 = vshrl.u32 %v1598, 7
    %v1600 = vsub.s32 %v1035, %v1599
    %v1601 = vrot.slane %v1477, %v1600
    %v1602 = vlaneseq
    %v1603 = vshrl.u32 %v1602, 7
    %v1604 = vsub.s32 %v1040, %v1603
    %v1605 = vrot.slane %v1480, %v1604
    %v1606 = vsel %vm1045, %v1605, %v1601
    %v1607 = vlaneseq
    %v1608 = vshrl.u32 %v1607, 7
    %v1609 = vsub.s32 %v1035, %v1608
    %v1610 = vrot.slane %v1483, %v1609
    %v1611 = vlaneseq
    %v1612 = vshrl.u32 %v1611, 7
    %v1613 = vsub.s32 %v1040, %v1612
    %v1614 = vrot.slane %v1486, %v1613
    %v1615 = vsel %vm1045, %v1614, %v1610
    %v1616 = vlaneseq
    %v1617 = vshrl.u32 %v1616, 7
    %v1618 = vsub.s32 %v1035, %v1617
    %v1619 = vrot.slane %v1489, %v1618
    %v1620 = vlaneseq
    %v1621 = vshrl.u32 %v1620, 7
    %v1622 = vsub.s32 %v1040, %v1621
    %v1623 = vrot.slane %v1492, %v1622
    %v1624 = vsel %vm1045, %v1623, %v1619
    %v1625 = vlaneseq
    %v1626 = vshrl.u32 %v1625, 7
    %v1627 = vsub.s32 %v1035, %v1626
    %v1628 = vrot.slane %v1495, %v1627
    %v1629 = vlaneseq
    %v1630 = vshrl.u32 %v1629, 7
    %v1631 = vsub.s32 %v1040, %v1630
    %v1632 = vrot.slane %v1498, %v1631
    %v1633 = vsel %vm1045, %v1632, %v1628
    %v1634 = vlaneseq
    %v1635 = vshrl.u32 %v1634, 7
    %v1636 = vsub.s32 %v1035, %v1635
    %v1637 = vrot.slane %v1501, %v1636
    %v1638 = vlaneseq
    %v1639 = vshrl.u32 %v1638, 7
    %v1640 = vsub.s32 %v1040, %v1639
    %v1641 = vrot.slane %v1504, %v1640
    %v1642 = vsel %vm1045, %v1641, %v1637
    %v1643 = vlaneseq
    %v1644 = vshrl.u32 %v1643, 7
    %v1645 = vsub.s32 %v1035, %v1644
    %v1646 = vrot.slane %v1507, %v1645
    %v1647 = vlaneseq
    %v1648 = vshrl.u32 %v1647, 7
    %v1649 = vsub.s32 %v1040, %v1648
    %v1650 = vrot.slane %v1510, %v1649
    %v1651 = vsel %vm1045, %v1650, %v1646
    %v1652 = vlaneseq
    %v1653 = vshrl.u32 %v1652, 7
    %v1654 = vsub.s32 %v1035, %v1653
    %v1655 = vrot.slane %v1513, %v1654
    %v1656 = vlaneseq
    %v1657 = vshrl.u32 %v1656, 7
    %v1658 = vsub.s32 %v1040, %v1657
    %v1659 = vrot.slane %v1516, %v1658
    %v1660 = vsel %vm1045, %v1659, %v1655
    %v1661 = vsel %vm1182, %v1534, %v1525
    %v1662 = vsel %vm1184, %v1543, %v1661
    %v1663 = vsel %vm1186, %v1552, %v1662
    %v1664 = vsel %vm1188, %v1561, %v1663
    %v1665 = vsel %vm1190, %v1570, %v1664
    %v1666 = vsel %vm1192, %v1579, %v1665
    %v1667 = vsel %vm1194, %v1588, %v1666
    %v1668 = vsel %vm1182, %v1606, %v1597
    %v1669 = vsel %vm1184, %v1615, %v1668
    %v1670 = vsel %vm1186, %v1624, %v1669
    %v1671 = vsel %vm1188, %v1633, %v1670
    %v1672 = vsel %vm1190, %v1642, %v1671
    %v1673 = vsel %vm1192, %v1651, %v1672
    %v1674 = vsel %vm1194, %v1660, %v1673
    %v1677 = vsel %vm567, %v1667, 0.0
    %1678 = vadd.xlane.f32.xlu0 %v1677
    %v1679 = vpop.xlane.xlu0 %1678
    %v1680 = vsel %vm567, %v1674, 0.0
    %1681 = vadd.xlane.f32.xlu0 %v1680
    %v1682 = vpop.xlane.xlu0 %1681
    %v1683 = vmax.f32 %v1679, 1e-20
    %v1684 = vmax.f32 %v1682, 1e-20
    %v1685 = vrcp.pop %v1683
    %v1686 = vrcp.pop %v1684
    %v1689 = vlaneseq
    %v1690 = vshrl.u32 %v1689, 7
    %v1691 = vsub.s32 0, %v1690
    %v1692 = vrot.slane %v1685, %v1691
    %v1693 = vlaneseq
    %v1694 = vshrl.u32 %v1693, 7
    %v1695 = vsub.s32 1, %v1694
    %v1696 = vrot.slane %v1685, %v1695
    %v1697 = vlaneseq
    %v1698 = vshrl.u32 %v1697, 7
    %v1699 = vsub.s32 2, %v1698
    %v1700 = vrot.slane %v1685, %v1699
    %v1701 = vlaneseq
    %v1702 = vshrl.u32 %v1701, 7
    %v1703 = vsub.s32 3, %v1702
    %v1704 = vrot.slane %v1685, %v1703
    %v1705 = vlaneseq
    %v1706 = vshrl.u32 %v1705, 7
    %v1707 = vsub.s32 4, %v1706
    %v1708 = vrot.slane %v1685, %v1707
    %v1709 = vlaneseq
    %v1710 = vshrl.u32 %v1709, 7
    %v1711 = vsub.s32 5, %v1710
    %v1712 = vrot.slane %v1685, %v1711
    %v1713 = vlaneseq
    %v1714 = vshrl.u32 %v1713, 7
    %v1715 = vsub.s32 6, %v1714
    %v1716 = vrot.slane %v1685, %v1715
    %v1717 = vlaneseq
    %v1718 = vshrl.u32 %v1717, 7
    %v1719 = vsub.s32 7, %v1718
    %v1720 = vrot.slane %v1685, %v1719
    %v1721 = vlaneseq
    %v1722 = vshrl.u32 %v1721, 7
    %v1723 = vsub.s32 0, %v1722
    %v1724 = vrot.slane %v1686, %v1723
    %v1725 = vlaneseq
    %v1726 = vshrl.u32 %v1725, 7
    %v1727 = vsub.s32 1, %v1726
    %v1728 = vrot.slane %v1686, %v1727
    %v1729 = vlaneseq
    %v1730 = vshrl.u32 %v1729, 7
    %v1731 = vsub.s32 2, %v1730
    %v1732 = vrot.slane %v1686, %v1731
    %v1733 = vlaneseq
    %v1734 = vshrl.u32 %v1733, 7
    %v1735 = vsub.s32 3, %v1734
    %v1736 = vrot.slane %v1686, %v1735
    %v1737 = vlaneseq
    %v1738 = vshrl.u32 %v1737, 7
    %v1739 = vsub.s32 4, %v1738
    %v1740 = vrot.slane %v1686, %v1739
    %v1741 = vlaneseq
    %v1742 = vshrl.u32 %v1741, 7
    %v1743 = vsub.s32 5, %v1742
    %v1744 = vrot.slane %v1686, %v1743
    %v1745 = vlaneseq
    %v1746 = vshrl.u32 %v1745, 7
    %v1747 = vsub.s32 6, %v1746
    %v1748 = vrot.slane %v1686, %v1747
    %v1749 = vlaneseq
    %v1750 = vshrl.u32 %v1749, 7
    %v1751 = vsub.s32 7, %v1750
    %v1752 = vrot.slane %v1686, %v1751
    %v1769 = vmul.f32 %v1326, %v1692
    %v1770 = vmul.f32 %v1328, %v1692
    %v1771 = vmul.f32 %v1330, %v1696
    %v1772 = vmul.f32 %v1332, %v1696
    %v1773 = vmul.f32 %v1334, %v1700
    %v1774 = vmul.f32 %v1336, %v1700
    %v1775 = vmul.f32 %v1338, %v1704
    %v1776 = vmul.f32 %v1340, %v1704
    %v1777 = vmul.f32 %v1342, %v1708
    %v1778 = vmul.f32 %v1344, %v1708
    %v1779 = vmul.f32 %v1346, %v1712
    %v1780 = vmul.f32 %v1348, %v1712
    %v1781 = vmul.f32 %v1350, %v1716
    %v1782 = vmul.f32 %v1352, %v1716
    %v1783 = vmul.f32 %v1354, %v1720
    %v1784 = vmul.f32 %v1356, %v1720
    %v1785 = vmul.f32 %v1358, %v1724
    %v1786 = vmul.f32 %v1360, %v1724
    %v1787 = vmul.f32 %v1362, %v1728
    %v1788 = vmul.f32 %v1364, %v1728
    %v1789 = vmul.f32 %v1366, %v1732
    %v1790 = vmul.f32 %v1368, %v1732
    %v1791 = vmul.f32 %v1370, %v1736
    %v1792 = vmul.f32 %v1372, %v1736
    %v1793 = vmul.f32 %v1374, %v1740
    %v1794 = vmul.f32 %v1376, %v1740
    %v1795 = vmul.f32 %v1378, %v1744
    %v1796 = vmul.f32 %v1380, %v1744
    %v1797 = vmul.f32 %v1382, %v1748
    %v1798 = vmul.f32 %v1384, %v1748
    %v1799 = vmul.f32 %v1386, %v1752
    %v1800 = vmul.f32 %v1388, %v1752
    %1833 = vset.pattern.permute.xlu0 0
    %1834 = vperm.xlu0 %1833, %v1769
    %v1835 = vpop.permute.xlu0 %1834
    %1836 = vset.pattern.permute.xlu0 0
    %1837 = vperm.xlu0 %1836, %v1770
    %v1838 = vpop.permute.xlu0 %1837
    %1839 = vset.pattern.permute.xlu0 0
    %1840 = vperm.xlu0 %1839, %v1771
    %v1841 = vpop.permute.xlu0 %1840
    %1842 = vset.pattern.permute.xlu0 0
    %1843 = vperm.xlu0 %1842, %v1772
    %v1844 = vpop.permute.xlu0 %1843
    %1845 = vset.pattern.permute.xlu0 0
    %1846 = vperm.xlu0 %1845, %v1773
    %v1847 = vpop.permute.xlu0 %1846
    %1848 = vset.pattern.permute.xlu0 0
    %1849 = vperm.xlu0 %1848, %v1774
    %v1850 = vpop.permute.xlu0 %1849
    %1851 = vset.pattern.permute.xlu0 0
    %1852 = vperm.xlu0 %1851, %v1775
    %v1853 = vpop.permute.xlu0 %1852
    %1854 = vset.pattern.permute.xlu0 0
    %1855 = vperm.xlu0 %1854, %v1776
    %v1856 = vpop.permute.xlu0 %1855
    %1857 = vset.pattern.permute.xlu0 0
    %1858 = vperm.xlu0 %1857, %v1777
    %v1859 = vpop.permute.xlu0 %1858
    %1860 = vset.pattern.permute.xlu0 0
    %1861 = vperm.xlu0 %1860, %v1778
    %v1862 = vpop.permute.xlu0 %1861
    %1863 = vset.pattern.permute.xlu0 0
    %1864 = vperm.xlu0 %1863, %v1779
    %v1865 = vpop.permute.xlu0 %1864
    %1866 = vset.pattern.permute.xlu0 0
    %1867 = vperm.xlu0 %1866, %v1780
    %v1868 = vpop.permute.xlu0 %1867
    %1869 = vset.pattern.permute.xlu0 0
    %1870 = vperm.xlu0 %1869, %v1781
    %v1871 = vpop.permute.xlu0 %1870
    %1872 = vset.pattern.permute.xlu0 0
    %1873 = vperm.xlu0 %1872, %v1782
    %v1874 = vpop.permute.xlu0 %1873
    %1875 = vset.pattern.permute.xlu0 0
    %1876 = vperm.xlu0 %1875, %v1783
    %v1877 = vpop.permute.xlu0 %1876
    %1878 = vset.pattern.permute.xlu0 0
    %1879 = vperm.xlu0 %1878, %v1784
    %v1880 = vpop.permute.xlu0 %1879
    %1881 = vset.pattern.permute.xlu0 0
    %1882 = vperm.xlu0 %1881, %v1785
    %v1883 = vpop.permute.xlu0 %1882
    %1884 = vset.pattern.permute.xlu0 0
    %1885 = vperm.xlu0 %1884, %v1786
    %v1886 = vpop.permute.xlu0 %1885
    %1887 = vset.pattern.permute.xlu0 0
    %1888 = vperm.xlu0 %1887, %v1787
    %v1889 = vpop.permute.xlu0 %1888
    %1890 = vset.pattern.permute.xlu0 0
    %1891 = vperm.xlu0 %1890, %v1788
    %v1892 = vpop.permute.xlu0 %1891
    %1893 = vset.pattern.permute.xlu0 0
    %1894 = vperm.xlu0 %1893, %v1789
    %v1895 = vpop.permute.xlu0 %1894
    %1896 = vset.pattern.permute.xlu0 0
    %1897 = vperm.xlu0 %1896, %v1790
    %v1898 = vpop.permute.xlu0 %1897
    %1899 = vset.pattern.permute.xlu0 0
    %1900 = vperm.xlu0 %1899, %v1791
    %v1901 = vpop.permute.xlu0 %1900
    %1902 = vset.pattern.permute.xlu0 0
    %1903 = vperm.xlu0 %1902, %v1792
    %v1904 = vpop.permute.xlu0 %1903
    %1905 = vset.pattern.permute.xlu0 0
    %1906 = vperm.xlu0 %1905, %v1793
    %v1907 = vpop.permute.xlu0 %1906
    %1908 = vset.pattern.permute.xlu0 0
    %1909 = vperm.xlu0 %1908, %v1794
    %v1910 = vpop.permute.xlu0 %1909
    %1911 = vset.pattern.permute.xlu0 0
    %1912 = vperm.xlu0 %1911, %v1795
    %v1913 = vpop.permute.xlu0 %1912
    %1914 = vset.pattern.permute.xlu0 0
    %1915 = vperm.xlu0 %1914, %v1796
    %v1916 = vpop.permute.xlu0 %1915
    %1917 = vset.pattern.permute.xlu0 0
    %1918 = vperm.xlu0 %1917, %v1797
    %v1919 = vpop.permute.xlu0 %1918
    %1920 = vset.pattern.permute.xlu0 0
    %1921 = vperm.xlu0 %1920, %v1798
    %v1922 = vpop.permute.xlu0 %1921
    %1923 = vset.pattern.permute.xlu0 0
    %1924 = vperm.xlu0 %1923, %v1799
    %v1925 = vpop.permute.xlu0 %1924
    %1926 = vset.pattern.permute.xlu0 0
    %1927 = vperm.xlu0 %1926, %v1800
    %v1928 = vpop.permute.xlu0 %1927
    %v1929 = vlaneseq
    %v1930 = vshrl.u32 %v1929, 7
    %v1931 = vsub.s32 %v1035, %v1930
    %v1932 = vrot.slane %v1835, %v1931
    %v1933 = vlaneseq
    %v1934 = vshrl.u32 %v1933, 7
    %v1935 = vsub.s32 %v1040, %v1934
    %v1936 = vrot.slane %v1838, %v1935
    %v1937 = vsel %vm1045, %v1936, %v1932
    %v1938 = vlaneseq
    %v1939 = vshrl.u32 %v1938, 7
    %v1940 = vsub.s32 %v1035, %v1939
    %v1941 = vrot.slane %v1841, %v1940
    %v1942 = vlaneseq
    %v1943 = vshrl.u32 %v1942, 7
    %v1944 = vsub.s32 %v1040, %v1943
    %v1945 = vrot.slane %v1844, %v1944
    %v1946 = vsel %vm1045, %v1945, %v1941
    %v1947 = vlaneseq
    %v1948 = vshrl.u32 %v1947, 7
    %v1949 = vsub.s32 %v1035, %v1948
    %v1950 = vrot.slane %v1847, %v1949
    %v1951 = vlaneseq
    %v1952 = vshrl.u32 %v1951, 7
    %v1953 = vsub.s32 %v1040, %v1952
    %v1954 = vrot.slane %v1850, %v1953
    %v1955 = vsel %vm1045, %v1954, %v1950
    %v1956 = vlaneseq
    %v1957 = vshrl.u32 %v1956, 7
    %v1958 = vsub.s32 %v1035, %v1957
    %v1959 = vrot.slane %v1853, %v1958
    %v1960 = vlaneseq
    %v1961 = vshrl.u32 %v1960, 7
    %v1962 = vsub.s32 %v1040, %v1961
    %v1963 = vrot.slane %v1856, %v1962
    %v1964 = vsel %vm1045, %v1963, %v1959
    %v1965 = vlaneseq
    %v1966 = vshrl.u32 %v1965, 7
    %v1967 = vsub.s32 %v1035, %v1966
    %v1968 = vrot.slane %v1859, %v1967
    %v1969 = vlaneseq
    %v1970 = vshrl.u32 %v1969, 7
    %v1971 = vsub.s32 %v1040, %v1970
    %v1972 = vrot.slane %v1862, %v1971
    %v1973 = vsel %vm1045, %v1972, %v1968
    %v1974 = vlaneseq
    %v1975 = vshrl.u32 %v1974, 7
    %v1976 = vsub.s32 %v1035, %v1975
    %v1977 = vrot.slane %v1865, %v1976
    %v1978 = vlaneseq
    %v1979 = vshrl.u32 %v1978, 7
    %v1980 = vsub.s32 %v1040, %v1979
    %v1981 = vrot.slane %v1868, %v1980
    %v1982 = vsel %vm1045, %v1981, %v1977
    %v1983 = vlaneseq
    %v1984 = vshrl.u32 %v1983, 7
    %v1985 = vsub.s32 %v1035, %v1984
    %v1986 = vrot.slane %v1871, %v1985
    %v1987 = vlaneseq
    %v1988 = vshrl.u32 %v1987, 7
    %v1989 = vsub.s32 %v1040, %v1988
    %v1990 = vrot.slane %v1874, %v1989
    %v1991 = vsel %vm1045, %v1990, %v1986
    %v1992 = vlaneseq
    %v1993 = vshrl.u32 %v1992, 7
    %v1994 = vsub.s32 %v1035, %v1993
    %v1995 = vrot.slane %v1877, %v1994
    %v1996 = vlaneseq
    %v1997 = vshrl.u32 %v1996, 7
    %v1998 = vsub.s32 %v1040, %v1997
    %v1999 = vrot.slane %v1880, %v1998
    %v2000 = vsel %vm1045, %v1999, %v1995
    %v2001 = vlaneseq
    %v2002 = vshrl.u32 %v2001, 7
    %v2003 = vsub.s32 %v1035, %v2002
    %v2004 = vrot.slane %v1883, %v2003
    %v2005 = vlaneseq
    %v2006 = vshrl.u32 %v2005, 7
    %v2007 = vsub.s32 %v1040, %v2006
    %v2008 = vrot.slane %v1886, %v2007
    %v2009 = vsel %vm1045, %v2008, %v2004
    %v2010 = vlaneseq
    %v2011 = vshrl.u32 %v2010, 7
    %v2012 = vsub.s32 %v1035, %v2011
    %v2013 = vrot.slane %v1889, %v2012
    %v2014 = vlaneseq
    %v2015 = vshrl.u32 %v2014, 7
    %v2016 = vsub.s32 %v1040, %v2015
    %v2017 = vrot.slane %v1892, %v2016
    %v2018 = vsel %vm1045, %v2017, %v2013
    %v2019 = vlaneseq
    %v2020 = vshrl.u32 %v2019, 7
    %v2021 = vsub.s32 %v1035, %v2020
    %v2022 = vrot.slane %v1895, %v2021
    %v2023 = vlaneseq
    %v2024 = vshrl.u32 %v2023, 7
    %v2025 = vsub.s32 %v1040, %v2024
    %v2026 = vrot.slane %v1898, %v2025
    %v2027 = vsel %vm1045, %v2026, %v2022
    %v2028 = vlaneseq
    %v2029 = vshrl.u32 %v2028, 7
    %v2030 = vsub.s32 %v1035, %v2029
    %v2031 = vrot.slane %v1901, %v2030
    %v2032 = vlaneseq
    %v2033 = vshrl.u32 %v2032, 7
    %v2034 = vsub.s32 %v1040, %v2033
    %v2035 = vrot.slane %v1904, %v2034
    %v2036 = vsel %vm1045, %v2035, %v2031
    %v2037 = vlaneseq
    %v2038 = vshrl.u32 %v2037, 7
    %v2039 = vsub.s32 %v1035, %v2038
    %v2040 = vrot.slane %v1907, %v2039
    %v2041 = vlaneseq
    %v2042 = vshrl.u32 %v2041, 7
    %v2043 = vsub.s32 %v1040, %v2042
    %v2044 = vrot.slane %v1910, %v2043
    %v2045 = vsel %vm1045, %v2044, %v2040
    %v2046 = vlaneseq
    %v2047 = vshrl.u32 %v2046, 7
    %v2048 = vsub.s32 %v1035, %v2047
    %v2049 = vrot.slane %v1913, %v2048
    %v2050 = vlaneseq
    %v2051 = vshrl.u32 %v2050, 7
    %v2052 = vsub.s32 %v1040, %v2051
    %v2053 = vrot.slane %v1916, %v2052
    %v2054 = vsel %vm1045, %v2053, %v2049
    %v2055 = vlaneseq
    %v2056 = vshrl.u32 %v2055, 7
    %v2057 = vsub.s32 %v1035, %v2056
    %v2058 = vrot.slane %v1919, %v2057
    %v2059 = vlaneseq
    %v2060 = vshrl.u32 %v2059, 7
    %v2061 = vsub.s32 %v1040, %v2060
    %v2062 = vrot.slane %v1922, %v2061
    %v2063 = vsel %vm1045, %v2062, %v2058
    %v2064 = vlaneseq
    %v2065 = vshrl.u32 %v2064, 7
    %v2066 = vsub.s32 %v1035, %v2065
    %v2067 = vrot.slane %v1925, %v2066
    %v2068 = vlaneseq
    %v2069 = vshrl.u32 %v2068, 7
    %v2070 = vsub.s32 %v1040, %v2069
    %v2071 = vrot.slane %v1928, %v2070
    %v2072 = vsel %vm1045, %v2071, %v2067
    %v2073 = vsel %vm1182, %v1946, %v1937
    %v2074 = vsel %vm1184, %v1955, %v2073
    %v2075 = vsel %vm1186, %v1964, %v2074
    %v2076 = vsel %vm1188, %v1973, %v2075
    %v2077 = vsel %vm1190, %v1982, %v2076
    %v2078 = vsel %vm1192, %v1991, %v2077
    %v2079 = vsel %vm1194, %v2000, %v2078
    %v2080 = vsel %vm1182, %v2018, %v2009
    %v2081 = vsel %vm1184, %v2027, %v2080
    %v2082 = vsel %vm1186, %v2036, %v2081
    %v2083 = vsel %vm1188, %v2045, %v2082
    %v2084 = vsel %vm1190, %v2054, %v2083
    %v2085 = vsel %vm1192, %v2063, %v2084
    %v2086 = vsel %vm1194, %v2072, %v2085
    %v2087 = vsel %vm567, %v2079, 0
    %v2089 = vsel %vm567, %v2086, 0
    %2091 = vmatprep.subr.mxu0 0.0
    %2092 = vmatpush1.msra.mxu0 %v116
    %2093 = vmatprep.subr.mxu0 0.0
    %2094 = vmatpush1.msra.mxu0 %v121
    %2095 = vmatprep.subr.mxu0 0.0
    %2096 = vmatpush1.msra.mxu0 0.0
    %2097 = vmatprep.subr.mxu0 0.0
    %2098 = vmatpush1.msra.mxu0 0.0
    %2099 = vmatprep.subr.mxu0 0.0
    %2100 = vmatpush1.msra.mxu0 0.0
    %2101 = vmatprep.subr.mxu0 0.0
    %2102 = vmatpush1.msra.mxu0 0.0
    %2103 = vmatprep.subr.mxu0 0.0
    %2104 = vmatpush1.msra.mxu0 0.0
    %2105 = vmatprep.subr.mxu0 0.0
    %2106 = vmatpush1.msra.mxu0 0.0
    %2107 = vmatprep.subr.mxu0 0.0
    %2108 = vmatpush1.msra.mxu0 0.0
    %2109 = vmatprep.subr.mxu0 0.0
    %2110 = vmatpush1.msra.mxu0 0.0
    %2111 = vmatprep.subr.mxu0 0.0
    %2112 = vmatpush1.msra.mxu0 0.0
    %2113 = vmatprep.subr.mxu0 0.0
    %2114 = vmatpush1.msra.mxu0 0.0
    %2115 = vmatprep.subr.mxu0 0.0
    %2116 = vmatpush1.msra.mxu0 0.0
    %2117 = vmatprep.subr.mxu0 0.0
    %2118 = vmatpush1.msra.mxu0 0.0
    %2119 = vmatprep.subr.mxu0 0.0
    %2120 = vmatpush1.msra.mxu0 0.0
    %2121 = vmatprep.subr.mxu0 0.0
    %2122 = vmatpush1.msra.mxu0 0.0
    %2123 = vmatprep.subr.mxu0 0.0
    %2124 = vmatpush1.msra.mxu0 0.0
    %2125 = vmatprep.subr.mxu0 0.0
    %2126 = vmatpush1.msra.mxu0 0.0
    %2127 = vmatprep.subr.mxu0 0.0
    %2128 = vmatpush1.msra.mxu0 0.0
    %2129 = vmatprep.subr.mxu0 0.0
    %2130 = vmatpush1.msra.mxu0 0.0
    %2131 = vmatprep.subr.mxu0 0.0
    %2132 = vmatpush1.msra.mxu0 0.0
    %2133 = vmatprep.subr.mxu0 0.0
    %2134 = vmatpush1.msra.mxu0 0.0
    %2135 = vmatprep.subr.mxu0 0.0
    %2136 = vmatpush1.msra.mxu0 0.0
    %2137 = vmatprep.subr.mxu0 0.0
    %2138 = vmatpush1.msra.mxu0 0.0
    %2139 = vmatprep.subr.mxu0 0.0
    %2140 = vmatpush1.msra.mxu0 0.0
    %2141 = vmatprep.subr.mxu0 0.0
    %2142 = vmatpush1.msra.mxu0 0.0
    %2143 = vmatprep.subr.mxu0 0.0
    %2144 = vmatpush1.msra.mxu0 0.0
    %2145 = vmatprep.subr.mxu0 0.0
    %2146 = vmatpush1.msra.mxu0 0.0
    %2147 = vmatprep.subr.mxu0 0.0
    %2148 = vmatpush1.msra.mxu0 0.0
    %2149 = vmatprep.subr.mxu0 0.0
    %2150 = vmatpush1.msra.mxu0 0.0
    %2151 = vmatprep.subr.mxu0 0.0
    %2152 = vmatpush1.msra.mxu0 0.0
    %2153 = vmatprep.subr.mxu0 0.0
    %2154 = vmatpush1.msra.mxu0 0.0
    %2155 = vmatprep.mubr.f32.mxu0 0.0
    %2156 = vmatmul.mubr.f32.gmra.mrb[0].mxu0 %v2087
    %v2157 = vpop.f32.mrb[0].mxu0
    %v2158 = vadd.f32 0.0, %v2157
    %v2159 = vpop.f32.mrb[0].mxu0
    %2160 = vmatprep.mubr.f32.mxu0 0.0
    %2161 = vmatmul.mubr.f32.gmra.mrb[0].mxu0 %v2089
    %v2162 = vpop.f32.mrb[0].mxu0
    %v2163 = vadd.f32 0.0, %v2162
    %v2164 = vpop.f32.mrb[0].mxu0
    %2165 = vdwg.mxu0
    %v2166 = vld [vmem:[#allocation2 + $0x8] sm:$0xff]
    %v2167 = vld [vmem:[#allocation2 + $0x10] sm:$0xff]
    %v2168 = vld [vmem:[#allocation2 + $0x2a] sm:$0x1]
    %v2169 = vld [vmem:[#allocation2 + $0x2b] sm:$0x1]
    %v2170 = vlaneseq
    %v2171 = vshrl.u32 %v2170, 7
    %v2172 = vsub.s32 0, %v2171
    %v2173 = vrot.slane %v2168, %v2172
    %v2175 = vsel %vm567, %v2158, 0
    %v2178 = vsel %vm567, %v2163, 0
    %2180 = vmatprep.subr.mxu0 0.0
    %2181 = vmatpush1.msra.mxu0 %v2166
    %2182 = vmatprep.subr.mxu0 0.0
    %2183 = vmatpush1.msra.mxu0 %v2167
    %2184 = vmatprep.subr.mxu0 0.0
    %2185 = vmatpush1.msra.mxu0 0.0
    %2186 = vmatprep.subr.mxu0 0.0
    %2187 = vmatpush1.msra.mxu0 0.0
    %2188 = vmatprep.subr.mxu0 0.0
    %2189 = vmatpush1.msra.mxu0 0.0
    %2190 = vmatprep.subr.mxu0 0.0
    %2191 = vmatpush1.msra.mxu0 0.0
    %2192 = vmatprep.subr.mxu0 0.0
    %2193 = vmatpush1.msra.mxu0 0.0
    %2194 = vmatprep.subr.mxu0 0.0
    %2195 = vmatpush1.msra.mxu0 0.0
    %2196 = vmatprep.subr.mxu0 0.0
    %2197 = vmatpush1.msra.mxu0 0.0
    %2198 = vmatprep.subr.mxu0 0.0
    %2199 = vmatpush1.msra.mxu0 0.0
    %2200 = vmatprep.subr.mxu0 0.0
    %2201 = vmatpush1.msra.mxu0 0.0
    %2202 = vmatprep.subr.mxu0 0.0
    %2203 = vmatpush1.msra.mxu0 0.0
    %2204 = vmatprep.subr.mxu0 0.0
    %2205 = vmatpush1.msra.mxu0 0.0
    %2206 = vmatprep.subr.mxu0 0.0
    %2207 = vmatpush1.msra.mxu0 0.0
    %2208 = vmatprep.subr.mxu0 0.0
    %2209 = vmatpush1.msra.mxu0 0.0
    %2210 = vmatprep.subr.mxu0 0.0
    %2211 = vmatpush1.msra.mxu0 0.0
    %2212 = vmatprep.subr.mxu0 0.0
    %2213 = vmatpush1.msra.mxu0 0.0
    %2214 = vmatprep.subr.mxu0 0.0
    %2215 = vmatpush1.msra.mxu0 0.0
    %2216 = vmatprep.subr.mxu0 0.0
    %2217 = vmatpush1.msra.mxu0 0.0
    %2218 = vmatprep.subr.mxu0 0.0
    %2219 = vmatpush1.msra.mxu0 0.0
    %2220 = vmatprep.subr.mxu0 0.0
    %2221 = vmatpush1.msra.mxu0 0.0
    %2222 = vmatprep.subr.mxu0 0.0
    %2223 = vmatpush1.msra.mxu0 0.0
    %2224 = vmatprep.subr.mxu0 0.0
    %2225 = vmatpush1.msra.mxu0 0.0
    %2226 = vmatprep.subr.mxu0 0.0
    %2227 = vmatpush1.msra.mxu0 0.0
    %2228 = vmatprep.subr.mxu0 0.0
    %2229 = vmatpush1.msra.mxu0 0.0
    %2230 = vmatprep.subr.mxu0 0.0
    %2231 = vmatpush1.msra.mxu0 0.0
    %2232 = vmatprep.subr.mxu0 0.0
    %2233 = vmatpush1.msra.mxu0 0.0
    %2234 = vmatprep.subr.mxu0 0.0
    %2235 = vmatpush1.msra.mxu0 0.0
    %2236 = vmatprep.subr.mxu0 0.0
    %2237 = vmatpush1.msra.mxu0 0.0
    %2238 = vmatprep.subr.mxu0 0.0
    %2239 = vmatpush1.msra.mxu0 0.0
    %2240 = vmatprep.subr.mxu0 0.0
    %2241 = vmatpush1.msra.mxu0 0.0
    %2242 = vmatprep.subr.mxu0 0.0
    %2243 = vmatpush1.msra.mxu0 0.0
    %2244 = vmatprep.mubr.f32.mxu0 0.0
    %2245 = vmatmul.mubr.f32.gmra.mrb[0].mxu0 %v2175
    %v2246 = vpop.f32.mrb[0].mxu0
    %v2247 = vadd.f32 %v2173, %v2246
    %v2248 = vpop.f32.mrb[0].mxu0
    %2249 = vmatprep.mubr.f32.mxu0 0.0
    %2250 = vmatmul.mubr.f32.gmra.mrb[0].mxu0 %v2178
    %v2251 = vpop.f32.mrb[0].mxu0
    %v2252 = vadd.f32 %v2173, %v2251
    %v2253 = vpop.f32.mrb[0].mxu0
    %2254 = vdwg.mxu0
    %v2255 = vpack.c.bf16 %v2252, %v2247
    %v2256 = vpack.c.bf16 %v2169, %v2169
    %v2258 = vcombine.high %v2255, %v2255
    %v2260 = vunpack.c.l.s4 1966171168
    %v2261 = vunpack.c.0.s8 %v2260
    %v2262 = vlaneseq
    %v2263 = vshrl.u32 %v2262, 7
    %v2264 = vsub.s32 %v2261, %v2263
    %v2265 = vrot.slane %v2255, %v2264
    %v2267 = vunpack.c.l.s4 1966171168
    %v2268 = vunpack.c.0.s8 %v2267
    %v2269 = vlaneseq
    %v2270 = vshrl.u32 %v2269, 7
    %v2271 = vsub.s32 %v2268, %v2270
    %v2272 = vrot.slane %v2258, %v2271
    %v2273 = vcombine.high %v2265, %v2265
    %v2274 = vcombine.high %v2272, %v2272
    %v2276 = vunpack.c.l.s4 1966171168
    %v2277 = vunpack.c.0.s8 %v2276
    %v2278 = vlaneseq
    %v2279 = vshrl.u32 %v2278, 7
    %v2280 = vsub.s32 %v2277, %v2279
    %v2281 = vrot.slane %v2265, %v2280
    %v2283 = vunpack.c.l.s4 1966171168
    %v2284 = vunpack.c.0.s8 %v2283
    %v2285 = vlaneseq
    %v2286 = vshrl.u32 %v2285, 7
    %v2287 = vsub.s32 %v2284, %v2286
    %v2288 = vrot.slane %v2272, %v2287
    %v2290 = vunpack.c.l.s4 1966171168
    %v2291 = vunpack.c.0.s8 %v2290
    %v2292 = vlaneseq
    %v2293 = vshrl.u32 %v2292, 7
    %v2294 = vsub.s32 %v2291, %v2293
    %v2295 = vrot.slane %v2273, %v2294
    %v2297 = vunpack.c.l.s4 1966171168
    %v2298 = vunpack.c.0.s8 %v2297
    %v2299 = vlaneseq
    %v2300 = vshrl.u32 %v2299, 7
    %v2301 = vsub.s32 %v2298, %v2300
    %v2302 = vrot.slane %v2274, %v2301
    %v2303 = vcombine.high %v2281, %v2281
    %v2304 = vcombine.high %v2288, %v2288
    %v2305 = vcombine.high %v2295, %v2295
    %v2306 = vcombine.high %v2302, %v2302
    %v2307 = vunpack.i.l.s16 %v2281
    %v2308 = vunpack.i.h.s16 %v2281
    %v2309 = vunpack.i.l.s16 %v2295
    %v2310 = vunpack.i.h.s16 %v2295
    %v2311 = vunpack.i.l.s16 %v2303
    %v2312 = vunpack.i.h.s16 %v2303
    %v2313 = vunpack.i.l.s16 %v2305
    %v2314 = vunpack.i.h.s16 %v2305
    %v2315 = vunpack.i.l.s16 %v2288
    %v2316 = vunpack.i.h.s16 %v2288
    %v2317 = vunpack.i.l.s16 %v2302
    %v2318 = vunpack.i.h.s16 %v2302
    %v2319 = vunpack.i.l.s16 %v2304
    %v2320 = vunpack.i.h.s16 %v2304
    %v2321 = vunpack.i.l.s16 %v2306
    %v2322 = vunpack.i.h.s16 %v2306
    %v2323 = vpack.i.b16 %v2307, %v2307
    %v2324 = vpack.i.b16 %v2308, %v2308
    %v2325 = vpack.i.b16 %v2309, %v2309
    %v2326 = vpack.i.b16 %v2310, %v2310
    %v2327 = vpack.i.b16 %v2311, %v2311
    %v2328 = vpack.i.b16 %v2312, %v2312
    %v2329 = vpack.i.b16 %v2313, %v2313
    %v2330 = vpack.i.b16 %v2314, %v2314
    %v2331 = vpack.i.b16 %v2315, %v2315
    %v2332 = vpack.i.b16 %v2316, %v2316
    %v2333 = vpack.i.b16 %v2317, %v2317
    %v2334 = vpack.i.b16 %v2318, %v2318
    %v2335 = vpack.i.b16 %v2319, %v2319
    %v2336 = vpack.i.b16 %v2320, %v2320
    %v2337 = vpack.i.b16 %v2321, %v2321
    %v2338 = vpack.i.b16 %v2322, %v2322
    %v2339 = vlaneseq
    %v2340 = vshrl.u32 %v2339, 7
    %v2341 = vsub.s32 0, %v2340
    %v2342 = vrot.slane %v2323, %v2341
    %v2343 = vlaneseq
    %v2344 = vshrl.u32 %v2343, 7
    %v2345 = vsub.s32 0, %v2344
    %v2346 = vrot.slane %v2324, %v2345
    %v2347 = vlaneseq
    %v2348 = vshrl.u32 %v2347, 7
    %v2349 = vsub.s32 0, %v2348
    %v2350 = vrot.slane %v2325, %v2349
    %v2351 = vlaneseq
    %v2352 = vshrl.u32 %v2351, 7
    %v2353 = vsub.s32 0, %v2352
    %v2354 = vrot.slane %v2326, %v2353
    %v2355 = vlaneseq
    %v2356 = vshrl.u32 %v2355, 7
    %v2357 = vsub.s32 0, %v2356
    %v2358 = vrot.slane %v2327, %v2357
    %v2359 = vlaneseq
    %v2360 = vshrl.u32 %v2359, 7
    %v2361 = vsub.s32 0, %v2360
    %v2362 = vrot.slane %v2328, %v2361
    %v2363 = vlaneseq
    %v2364 = vshrl.u32 %v2363, 7
    %v2365 = vsub.s32 0, %v2364
    %v2366 = vrot.slane %v2329, %v2365
    %v2367 = vlaneseq
    %v2368 = vshrl.u32 %v2367, 7
    %v2369 = vsub.s32 0, %v2368
    %v2370 = vrot.slane %v2330, %v2369
    %v2371 = vlaneseq
    %v2372 = vshrl.u32 %v2371, 7
    %v2373 = vsub.s32 0, %v2372
    %v2374 = vrot.slane %v2331, %v2373
    %v2375 = vlaneseq
    %v2376 = vshrl.u32 %v2375, 7
    %v2377 = vsub.s32 0, %v2376
    %v2378 = vrot.slane %v2332, %v2377
    %v2379 = vlaneseq
    %v2380 = vshrl.u32 %v2379, 7
    %v2381 = vsub.s32 0, %v2380
    %v2382 = vrot.slane %v2333, %v2381
    %v2383 = vlaneseq
    %v2384 = vshrl.u32 %v2383, 7
    %v2385 = vsub.s32 0, %v2384
    %v2386 = vrot.slane %v2334, %v2385
    %v2387 = vlaneseq
    %v2388 = vshrl.u32 %v2387, 7
    %v2389 = vsub.s32 0, %v2388
    %v2390 = vrot.slane %v2335, %v2389
    %v2391 = vlaneseq
    %v2392 = vshrl.u32 %v2391, 7
    %v2393 = vsub.s32 0, %v2392
    %v2394 = vrot.slane %v2336, %v2393
    %v2395 = vlaneseq
    %v2396 = vshrl.u32 %v2395, 7
    %v2397 = vsub.s32 0, %v2396
    %v2398 = vrot.slane %v2337, %v2397
    %v2399 = vlaneseq
    %v2400 = vshrl.u32 %v2399, 7
    %v2401 = vsub.s32 0, %v2400
    %v2402 = vrot.slane %v2338, %v2401
    %v2404 = vpack.i.b16 %v2342, %v2342
    %v2406 = vlaneseq
    %v2407 = vshrl.u32 %v2406, 7
    %v2408 = vsub.s32 0, %v2407
    %v2409 = vrot.slane %v2404, %v2408
    %v2411 = vpack.i.b16 %v2346, %v2346
    %v2413 = vlaneseq
    %v2414 = vshrl.u32 %v2413, 7
    %v2415 = vsub.s32 0, %v2414
    %v2416 = vrot.slane %v2411, %v2415
    %v2418 = vpack.i.b16 %v2350, %v2350
    %v2420 = vlaneseq
    %v2421 = vshrl.u32 %v2420, 7
    %v2422 = vsub.s32 0, %v2421
    %v2423 = vrot.slane %v2418, %v2422
    %v2425 = vpack.i.b16 %v2354, %v2354
    %v2427 = vlaneseq
    %v2428 = vshrl.u32 %v2427, 7
    %v2429 = vsub.s32 0, %v2428
    %v2430 = vrot.slane %v2425, %v2429
    %v2432 = vpack.i.b16 %v2358, %v2358
    %v2434 = vlaneseq
    %v2435 = vshrl.u32 %v2434, 7
    %v2436 = vsub.s32 0, %v2435
    %v2437 = vrot.slane %v2432, %v2436
    %v2439 = vpack.i.b16 %v2362, %v2362
    %v2441 = vlaneseq
    %v2442 = vshrl.u32 %v2441, 7
    %v2443 = vsub.s32 0, %v2442
    %v2444 = vrot.slane %v2439, %v2443
    %v2446 = vpack.i.b16 %v2366, %v2366
    %v2448 = vlaneseq
    %v2449 = vshrl.u32 %v2448, 7
    %v2450 = vsub.s32 0, %v2449
    %v2451 = vrot.slane %v2446, %v2450
    %v2453 = vpack.i.b16 %v2370, %v2370
    %v2455 = vlaneseq
    %v2456 = vshrl.u32 %v2455, 7
    %v2457 = vsub.s32 0, %v2456
    %v2458 = vrot.slane %v2453, %v2457
    %v2460 = vpack.i.b16 %v2374, %v2374
    %v2462 = vlaneseq
    %v2463 = vshrl.u32 %v2462, 7
    %v2464 = vsub.s32 0, %v2463
    %v2465 = vrot.slane %v2460, %v2464
    %v2467 = vpack.i.b16 %v2378, %v2378
    %v2469 = vlaneseq
    %v2470 = vshrl.u32 %v2469, 7
    %v2471 = vsub.s32 0, %v2470
    %v2472 = vrot.slane %v2467, %v2471
    %v2474 = vpack.i.b16 %v2382, %v2382
    %v2476 = vlaneseq
    %v2477 = vshrl.u32 %v2476, 7
    %v2478 = vsub.s32 0, %v2477
    %v2479 = vrot.slane %v2474, %v2478
    %v2481 = vpack.i.b16 %v2386, %v2386
    %v2483 = vlaneseq
    %v2484 = vshrl.u32 %v2483, 7
    %v2485 = vsub.s32 0, %v2484
    %v2486 = vrot.slane %v2481, %v2485
    %v2488 = vpack.i.b16 %v2390, %v2390
    %v2490 = vlaneseq
    %v2491 = vshrl.u32 %v2490, 7
    %v2492 = vsub.s32 0, %v2491
    %v2493 = vrot.slane %v2488, %v2492
    %v2495 = vpack.i.b16 %v2394, %v2394
    %v2497 = vlaneseq
    %v2498 = vshrl.u32 %v2497, 7
    %v2499 = vsub.s32 0, %v2498
    %v2500 = vrot.slane %v2495, %v2499
    %v2502 = vpack.i.b16 %v2398, %v2398
    %v2504 = vlaneseq
    %v2505 = vshrl.u32 %v2504, 7
    %v2506 = vsub.s32 0, %v2505
    %v2507 = vrot.slane %v2502, %v2506
    %v2509 = vpack.i.b16 %v2402, %v2402
    %v2511 = vlaneseq
    %v2512 = vshrl.u32 %v2511, 7
    %v2513 = vsub.s32 0, %v2512
    %v2514 = vrot.slane %v2509, %v2513
    %2531 = vrot.lane.b32.xlu0 %v2409, 112
    %v2532 = vpop.permute.xlu0 %2531
    %2533 = vrot.lane.b32.xlu0 %v2416, 112
    %v2534 = vpop.permute.xlu0 %2533
    %2535 = vrot.lane.b32.xlu0 %v2423, 112
    %v2536 = vpop.permute.xlu0 %2535
    %2537 = vrot.lane.b32.xlu0 %v2430, 112
    %v2538 = vpop.permute.xlu0 %2537
    %2539 = vrot.lane.b32.xlu0 %v2437, 112
    %v2540 = vpop.permute.xlu0 %2539
    %2541 = vrot.lane.b32.xlu0 %v2444, 112
    %v2542 = vpop.permute.xlu0 %2541
    %2543 = vrot.lane.b32.xlu0 %v2451, 112
    %v2544 = vpop.permute.xlu0 %2543
    %2545 = vrot.lane.b32.xlu0 %v2458, 112
    %v2546 = vpop.permute.xlu0 %2545
    %2547 = vrot.lane.b32.xlu0 %v2465, 112
    %v2548 = vpop.permute.xlu0 %2547
    %2549 = vrot.lane.b32.xlu0 %v2472, 112
    %v2550 = vpop.permute.xlu0 %2549
    %2551 = vrot.lane.b32.xlu0 %v2479, 112
    %v2552 = vpop.permute.xlu0 %2551
    %2553 = vrot.lane.b32.xlu0 %v2486, 112
    %v2554 = vpop.permute.xlu0 %2553
    %2555 = vrot.lane.b32.xlu0 %v2493, 112
    %v2556 = vpop.permute.xlu0 %2555
    %2557 = vrot.lane.b32.xlu0 %v2500, 112
    %v2558 = vpop.permute.xlu0 %2557
    %2559 = vrot.lane.b32.xlu0 %v2507, 112
    %v2560 = vpop.permute.xlu0 %2559
    %2561 = vrot.lane.b32.xlu0 %v2514, 112
    %v2562 = vpop.permute.xlu0 %2561
    %v2579 = vadd.bf16 %v2255, %v2532
    %v2580 = vadd.bf16 %v2255, %v2534
    %v2581 = vadd.bf16 %v2255, %v2536
    %v2582 = vadd.bf16 %v2255, %v2538
    %v2583 = vadd.bf16 %v2255, %v2540
    %v2584 = vadd.bf16 %v2255, %v2542
    %v2585 = vadd.bf16 %v2255, %v2544
    %v2586 = vadd.bf16 %v2255, %v2546
    %v2587 = vadd.bf16 %v2255, %v2548
    %v2588 = vadd.bf16 %v2255, %v2550
    %v2589 = vadd.bf16 %v2255, %v2552
    %v2590 = vadd.bf16 %v2255, %v2554
    %v2591 = vadd.bf16 %v2255, %v2556
    %v2592 = vadd.bf16 %v2255, %v2558
    %v2593 = vadd.bf16 %v2255, %v2560
    %v2594 = vadd.bf16 %v2255, %v2562
    %vm2595 = vcmp.gt.bf16.partialorder %v2579, 0
    %vm2596 = vcmp.gt.bf16.partialorder %v2580, 0
    %vm2597 = vcmp.gt.bf16.partialorder %v2581, 0
    %vm2598 = vcmp.gt.bf16.partialorder %v2582, 0
    %vm2599 = vcmp.gt.bf16.partialorder %v2583, 0
    %vm2600 = vcmp.gt.bf16.partialorder %v2584, 0
    %vm2601 = vcmp.gt.bf16.partialorder %v2585, 0
    %vm2602 = vcmp.gt.bf16.partialorder %v2586, 0
    %vm2603 = vcmp.gt.bf16.partialorder %v2587, 0
    %vm2604 = vcmp.gt.bf16.partialorder %v2588, 0
    %vm2605 = vcmp.gt.bf16.partialorder %v2589, 0
    %vm2606 = vcmp.gt.bf16.partialorder %v2590, 0
    %vm2607 = vcmp.gt.bf16.partialorder %v2591, 0
    %vm2608 = vcmp.gt.bf16.partialorder %v2592, 0
    %vm2609 = vcmp.gt.bf16.partialorder %v2593, 0
    %vm2610 = vcmp.gt.bf16.partialorder %v2594, 0
    %v2611 = vmul.bf16 %v2579, 1045249613
    %v2612 = vmul.bf16 %v2580, 1045249613
    %v2613 = vmul.bf16 %v2581, 1045249613
    %v2614 = vmul.bf16 %v2582, 1045249613
    %v2615 = vmul.bf16 %v2583, 1045249613
    %v2616 = vmul.bf16 %v2584, 1045249613
    %v2617 = vmul.bf16 %v2585, 1045249613
    %v2618 = vmul.bf16 %v2586, 1045249613
    %v2619 = vmul.bf16 %v2587, 1045249613
    %v2620 = vmul.bf16 %v2588, 1045249613
    %v2621 = vmul.bf16 %v2589, 1045249613
    %v2622 = vmul.bf16 %v2590, 1045249613
    %v2623 = vmul.bf16 %v2591, 1045249613
    %v2624 = vmul.bf16 %v2592, 1045249613
    %v2625 = vmul.bf16 %v2593, 1045249613
    %v2626 = vmul.bf16 %v2594, 1045249613
    %v2627 = vsel %vm2595, %v2579, %v2611
    %v2628 = vsel %vm2596, %v2580, %v2612
    %v2629 = vsel %vm2597, %v2581, %v2613
    %v2630 = vsel %vm2598, %v2582, %v2614
    %v2631 = vsel %vm2599, %v2583, %v2615
    %v2632 = vsel %vm2600, %v2584, %v2616
    %v2633 = vsel %vm2601, %v2585, %v2617
    %v2634 = vsel %vm2602, %v2586, %v2618
    %v2635 = vsel %vm2603, %v2587, %v2619
    %v2636 = vsel %vm2604, %v2588, %v2620
    %v2637 = vsel %vm2605, %v2589, %v2621
    %v2638 = vsel %vm2606, %v2590, %v2622
    %v2639 = vsel %vm2607, %v2591, %v2623
    %v2640 = vsel %vm2608, %v2592, %v2624
    %v2641 = vsel %vm2609, %v2593, %v2625
    %v2642 = vsel %vm2610, %v2594, %v2626
    %v2644 = vpack.i.b16 %v2256, %v2256
    %v2646 = vlaneseq
    %v2647 = vshrl.u32 %v2646, 7
    %v2648 = vsub.s32 0, %v2647
    %v2649 = vrot.slane %v2644, %v2648
    %v2650 = vmul.bf16 %v2627, %v2649
    %v2651 = vmul.bf16 %v2628, %v2649
    %v2652 = vmul.bf16 %v2629, %v2649
    %v2653 = vmul.bf16 %v2630, %v2649
    %v2654 = vmul.bf16 %v2631, %v2649
    %v2655 = vmul.bf16 %v2632, %v2649
    %v2656 = vmul.bf16 %v2633, %v2649
    %v2657 = vmul.bf16 %v2634, %v2649
    %v2658 = vmul.bf16 %v2635, %v2649
    %v2659 = vmul.bf16 %v2636, %v2649
    %v2660 = vmul.bf16 %v2637, %v2649
    %v2661 = vmul.bf16 %v2638, %v2649
    %v2662 = vmul.bf16 %v2639, %v2649
    %v2663 = vmul.bf16 %v2640, %v2649
    %v2664 = vmul.bf16 %v2641, %v2649
    %v2665 = vmul.bf16 %v2642, %v2649
    %v2666 = vunpack.c.l.bf16 %v2650
    %v2667 = vunpack.c.h.bf16 %v2650
    %v2668 = vunpack.c.l.bf16 %v2651
    %v2669 = vunpack.c.h.bf16 %v2651
    %v2670 = vunpack.c.l.bf16 %v2652
    %v2671 = vunpack.c.h.bf16 %v2652
    %v2672 = vunpack.c.l.bf16 %v2653
    %v2673 = vunpack.c.h.bf16 %v2653
    %v2674 = vunpack.c.l.bf16 %v2654
    %v2675 = vunpack.c.h.bf16 %v2654
    %v2676 = vunpack.c.l.bf16 %v2655
    %v2677 = vunpack.c.h.bf16 %v2655
    %v2678 = vunpack.c.l.bf16 %v2656
    %v2679 = vunpack.c.h.bf16 %v2656
    %v2680 = vunpack.c.l.bf16 %v2657
    %v2681 = vunpack.c.h.bf16 %v2657
    %v2682 = vunpack.c.l.bf16 %v2658
    %v2683 = vunpack.c.h.bf16 %v2658
    %v2684 = vunpack.c.l.bf16 %v2659
    %v2685 = vunpack.c.h.bf16 %v2659
    %v2686 = vunpack.c.l.bf16 %v2660
    %v2687 = vunpack.c.h.bf16 %v2660
    %v2688 = vunpack.c.l.bf16 %v2661
    %v2689 = vunpack.c.h.bf16 %v2661
    %v2690 = vunpack.c.l.bf16 %v2662
    %v2691 = vunpack.c.h.bf16 %v2662
    %v2692 = vunpack.c.l.bf16 %v2663
    %v2693 = vunpack.c.h.bf16 %v2663
    %v2694 = vunpack.c.l.bf16 %v2664
    %v2695 = vunpack.c.h.bf16 %v2664
    %v2696 = vunpack.c.l.bf16 %v2665
    %v2697 = vunpack.c.h.bf16 %v2665
    %v2698 = vsel %vm567, %v2666, 0.0
    %2699 = vadd.xlane.f32.xlu0 %v2698
    %v2700 = vpop.xlane.xlu0 %2699
    %v2701 = vsel %vm567, %v2667, 0.0
    %2702 = vadd.xlane.f32.xlu0 %v2701
    %v2703 = vpop.xlane.xlu0 %2702
    %v2704 = vsel %vm567, %v2668, 0.0
    %2705 = vadd.xlane.f32.xlu0 %v2704
    %v2706 = vpop.xlane.xlu0 %2705
    %v2707 = vsel %vm567, %v2669, 0.0
    %2708 = vadd.xlane.f32.xlu0 %v2707
    %v2709 = vpop.xlane.xlu0 %2708
    %v2710 = vsel %vm567, %v2670, 0.0
    %2711 = vadd.xlane.f32.xlu0 %v2710
    %v2712 = vpop.xlane.xlu0 %2711
    %v2713 = vsel %vm567, %v2671, 0.0
    %2714 = vadd.xlane.f32.xlu0 %v2713
    %v2715 = vpop.xlane.xlu0 %2714
    %v2716 = vsel %vm567, %v2672, 0.0
    %2717 = vadd.xlane.f32.xlu0 %v2716
    %v2718 = vpop.xlane.xlu0 %2717
    %v2719 = vsel %vm567, %v2673, 0.0
    %2720 = vadd.xlane.f32.xlu0 %v2719
    %v2721 = vpop.xlane.xlu0 %2720
    %v2722 = vsel %vm567, %v2674, 0.0
    %2723 = vadd.xlane.f32.xlu0 %v2722
    %v2724 = vpop.xlane.xlu0 %2723
    %v2725 = vsel %vm567, %v2675, 0.0
    %2726 = vadd.xlane.f32.xlu0 %v2725
    %v2727 = vpop.xlane.xlu0 %2726
    %v2728 = vsel %vm567, %v2676, 0.0
    %2729 = vadd.xlane.f32.xlu0 %v2728
    %v2730 = vpop.xlane.xlu0 %2729
    %v2731 = vsel %vm567, %v2677, 0.0
    %2732 = vadd.xlane.f32.xlu0 %v2731
    %v2733 = vpop.xlane.xlu0 %2732
    %v2734 = vsel %vm567, %v2678, 0.0
    %2735 = vadd.xlane.f32.xlu0 %v2734
    %v2736 = vpop.xlane.xlu0 %2735
    %v2737 = vsel %vm567, %v2679, 0.0
    %2738 = vadd.xlane.f32.xlu0 %v2737
    %v2739 = vpop.xlane.xlu0 %2738
    %v2740 = vsel %vm567, %v2680, 0.0
    %2741 = vadd.xlane.f32.xlu0 %v2740
    %v2742 = vpop.xlane.xlu0 %2741
    %v2743 = vsel %vm567, %v2681, 0.0
    %2744 = vadd.xlane.f32.xlu0 %v2743
    %v2745 = vpop.xlane.xlu0 %2744
    %v2746 = vsel %vm567, %v2682, 0.0
    %2747 = vadd.xlane.f32.xlu0 %v2746
    %v2748 = vpop.xlane.xlu0 %2747
    %v2749 = vsel %vm567, %v2683, 0.0
    %2750 = vadd.xlane.f32.xlu0 %v2749
    %v2751 = vpop.xlane.xlu0 %2750
    %v2752 = vsel %vm567, %v2684, 0.0
    %2753 = vadd.xlane.f32.xlu0 %v2752
    %v2754 = vpop.xlane.xlu0 %2753
    %v2755 = vsel %vm567, %v2685, 0.0
    %2756 = vadd.xlane.f32.xlu0 %v2755
    %v2757 = vpop.xlane.xlu0 %2756
    %v2758 = vsel %vm567, %v2686, 0.0
    %2759 = vadd.xlane.f32.xlu0 %v2758
    %v2760 = vpop.xlane.xlu0 %2759
    %v2761 = vsel %vm567, %v2687, 0.0
    %2762 = vadd.xlane.f32.xlu0 %v2761
    %v2763 = vpop.xlane.xlu0 %2762
    %v2764 = vsel %vm567, %v2688, 0.0
    %2765 = vadd.xlane.f32.xlu0 %v2764
    %v2766 = vpop.xlane.xlu0 %2765
    %v2767 = vsel %vm567, %v2689, 0.0
    %2768 = vadd.xlane.f32.xlu0 %v2767
    %v2769 = vpop.xlane.xlu0 %2768
    %v2770 = vsel %vm567, %v2690, 0.0
    %2771 = vadd.xlane.f32.xlu0 %v2770
    %v2772 = vpop.xlane.xlu0 %2771
    %v2773 = vsel %vm567, %v2691, 0.0
    %2774 = vadd.xlane.f32.xlu0 %v2773
    %v2775 = vpop.xlane.xlu0 %2774
    %v2776 = vsel %vm567, %v2692, 0.0
    %2777 = vadd.xlane.f32.xlu0 %v2776
    %v2778 = vpop.xlane.xlu0 %2777
    %v2779 = vsel %vm567, %v2693, 0.0
    %2780 = vadd.xlane.f32.xlu0 %v2779
    %v2781 = vpop.xlane.xlu0 %2780
    %v2782 = vsel %vm567, %v2694, 0.0
    %2783 = vadd.xlane.f32.xlu0 %v2782
    %v2784 = vpop.xlane.xlu0 %2783
    %v2785 = vsel %vm567, %v2695, 0.0
    %2786 = vadd.xlane.f32.xlu0 %v2785
    %v2787 = vpop.xlane.xlu0 %2786
    %v2788 = vsel %vm567, %v2696, 0.0
    %2789 = vadd.xlane.f32.xlu0 %v2788
    %v2790 = vpop.xlane.xlu0 %2789
    %v2791 = vsel %vm567, %v2697, 0.0
    %2792 = vadd.xlane.f32.xlu0 %v2791
    %v2793 = vpop.xlane.xlu0 %2792
    %v2794 = vadd.f32 %v2700, %v672
    %v2795 = vadd.f32 %v2703, %v676
    %v2796 = vadd.f32 %v2706, %v683
    %v2797 = vadd.f32 %v2709, %v687
    %v2798 = vadd.f32 %v2712, %v694
    %v2799 = vadd.f32 %v2715, %v698
    %v2800 = vadd.f32 %v2718, %v705
    %v2801 = vadd.f32 %v2721, %v709
    %v2802 = vadd.f32 %v2724, %v716
    %v2803 = vadd.f32 %v2727, %v720
    %v2804 = vadd.f32 %v2730, %v727
    %v2805 = vadd.f32 %v2733, %v731
    %v2806 = vadd.f32 %v2736, %v738
    %v2807 = vadd.f32 %v2739, %v742
    %v2808 = vadd.f32 %v2742, %v749
    %v2809 = vadd.f32 %v2745, %v753
    %v2810 = vadd.f32 %v2748, %v760
    %v2811 = vadd.f32 %v2751, %v764
    %v2812 = vadd.f32 %v2754, %v771
    %v2813 = vadd.f32 %v2757, %v775
    %v2814 = vadd.f32 %v2760, %v782
    %v2815 = vadd.f32 %v2763, %v786
    %v2816 = vadd.f32 %v2766, %v793
    %v2817 = vadd.f32 %v2769, %v797
    %v2818 = vadd.f32 %v2772, %v804
    %v2819 = vadd.f32 %v2775, %v808
    %v2820 = vadd.f32 %v2778, %v815
    %v2821 = vadd.f32 %v2781, %v819
    %v2822 = vadd.f32 %v2784, %v826
    %v2823 = vadd.f32 %v2787, %v830
    %v2824 = vadd.f32 %v2790, %v837
    %v2825 = vadd.f32 %v2793, %v841
    %2858 = vset.pattern.permute.xlu0 0
    %2859 = vperm.xlu0 %2858, %v2794
    %v2860 = vpop.permute.xlu0 %2859
    %2861 = vset.pattern.permute.xlu0 0
    %2862 = vperm.xlu0 %2861, %v2795
    %v2863 = vpop.permute.xlu0 %2862
    %2864 = vset.pattern.permute.xlu0 0
    %2865 = vperm.xlu0 %2864, %v2796
    %v2866 = vpop.permute.xlu0 %2865
    %2867 = vset.pattern.permute.xlu0 0
    %2868 = vperm.xlu0 %2867, %v2797
    %v2869 = vpop.permute.xlu0 %2868
    %2870 = vset.pattern.permute.xlu0 0
    %2871 = vperm.xlu0 %2870, %v2798
    %v2872 = vpop.permute.xlu0 %2871
    %2873 = vset.pattern.permute.xlu0 0
    %2874 = vperm.xlu0 %2873, %v2799
    %v2875 = vpop.permute.xlu0 %2874
    %2876 = vset.pattern.permute.xlu0 0
    %2877 = vperm.xlu0 %2876, %v2800
    %v2878 = vpop.permute.xlu0 %2877
    %2879 = vset.pattern.permute.xlu0 0
    %2880 = vperm.xlu0 %2879, %v2801
    %v2881 = vpop.permute.xlu0 %2880
    %2882 = vset.pattern.permute.xlu0 0
    %2883 = vperm.xlu0 %2882, %v2802
    %v2884 = vpop.permute.xlu0 %2883
    %2885 = vset.pattern.permute.xlu0 0
    %2886 = vperm.xlu0 %2885, %v2803
    %v2887 = vpop.permute.xlu0 %2886
    %2888 = vset.pattern.permute.xlu0 0
    %2889 = vperm.xlu0 %2888, %v2804
    %v2890 = vpop.permute.xlu0 %2889
    %2891 = vset.pattern.permute.xlu0 0
    %2892 = vperm.xlu0 %2891, %v2805
    %v2893 = vpop.permute.xlu0 %2892
    %2894 = vset.pattern.permute.xlu0 0
    %2895 = vperm.xlu0 %2894, %v2806
    %v2896 = vpop.permute.xlu0 %2895
    %2897 = vset.pattern.permute.xlu0 0
    %2898 = vperm.xlu0 %2897, %v2807
    %v2899 = vpop.permute.xlu0 %2898
    %2900 = vset.pattern.permute.xlu0 0
    %2901 = vperm.xlu0 %2900, %v2808
    %v2902 = vpop.permute.xlu0 %2901
    %2903 = vset.pattern.permute.xlu0 0
    %2904 = vperm.xlu0 %2903, %v2809
    %v2905 = vpop.permute.xlu0 %2904
    %2906 = vset.pattern.permute.xlu0 0
    %2907 = vperm.xlu0 %2906, %v2810
    %v2908 = vpop.permute.xlu0 %2907
    %2909 = vset.pattern.permute.xlu0 0
    %2910 = vperm.xlu0 %2909, %v2811
    %v2911 = vpop.permute.xlu0 %2910
    %2912 = vset.pattern.permute.xlu0 0
    %2913 = vperm.xlu0 %2912, %v2812
    %v2914 = vpop.permute.xlu0 %2913
    %2915 = vset.pattern.permute.xlu0 0
    %2916 = vperm.xlu0 %2915, %v2813
    %v2917 = vpop.permute.xlu0 %2916
    %2918 = vset.pattern.permute.xlu0 0
    %2919 = vperm.xlu0 %2918, %v2814
    %v2920 = vpop.permute.xlu0 %2919
    %2921 = vset.pattern.permute.xlu0 0
    %2922 = vperm.xlu0 %2921, %v2815
    %v2923 = vpop.permute.xlu0 %2922
    %2924 = vset.pattern.permute.xlu0 0
    %2925 = vperm.xlu0 %2924, %v2816
    %v2926 = vpop.permute.xlu0 %2925
    %2927 = vset.pattern.permute.xlu0 0
    %2928 = vperm.xlu0 %2927, %v2817
    %v2929 = vpop.permute.xlu0 %2928
    %2930 = vset.pattern.permute.xlu0 0
    %2931 = vperm.xlu0 %2930, %v2818
    %v2932 = vpop.permute.xlu0 %2931
    %2933 = vset.pattern.permute.xlu0 0
    %2934 = vperm.xlu0 %2933, %v2819
    %v2935 = vpop.permute.xlu0 %2934
    %2936 = vset.pattern.permute.xlu0 0
    %2937 = vperm.xlu0 %2936, %v2820
    %v2938 = vpop.permute.xlu0 %2937
    %2939 = vset.pattern.permute.xlu0 0
    %2940 = vperm.xlu0 %2939, %v2821
    %v2941 = vpop.permute.xlu0 %2940
    %2942 = vset.pattern.permute.xlu0 0
    %2943 = vperm.xlu0 %2942, %v2822
    %v2944 = vpop.permute.xlu0 %2943
    %2945 = vset.pattern.permute.xlu0 0
    %2946 = vperm.xlu0 %2945, %v2823
    %v2947 = vpop.permute.xlu0 %2946
    %2948 = vset.pattern.permute.xlu0 0
    %2949 = vperm.xlu0 %2948, %v2824
    %v2950 = vpop.permute.xlu0 %2949
    %2951 = vset.pattern.permute.xlu0 0
    %2952 = vperm.xlu0 %2951, %v2825
    %v2953 = vpop.permute.xlu0 %2952
    %v2954 = vlaneseq
    %v2955 = vshrl.u32 %v2954, 7
    %v2956 = vsub.s32 %v1035, %v2955
    %v2957 = vrot.slane %v2860, %v2956
    %v2958 = vlaneseq
    %v2959 = vshrl.u32 %v2958, 7
    %v2960 = vsub.s32 %v1040, %v2959
    %v2961 = vrot.slane %v2863, %v2960
    %v2962 = vsel %vm1045, %v2961, %v2957
    %v2963 = vlaneseq
    %v2964 = vshrl.u32 %v2963, 7
    %v2965 = vsub.s32 %v1035, %v2964
    %v2966 = vrot.slane %v2866, %v2965
    %v2967 = vlaneseq
    %v2968 = vshrl.u32 %v2967, 7
    %v2969 = vsub.s32 %v1040, %v2968
    %v2970 = vrot.slane %v2869, %v2969
    %v2971 = vsel %vm1045, %v2970, %v2966
    %v2972 = vlaneseq
    %v2973 = vshrl.u32 %v2972, 7
    %v2974 = vsub.s32 %v1035, %v2973
    %v2975 = vrot.slane %v2872, %v2974
    %v2976 = vlaneseq
    %v2977 = vshrl.u32 %v2976, 7
    %v2978 = vsub.s32 %v1040, %v2977
    %v2979 = vrot.slane %v2875, %v2978
    %v2980 = vsel %vm1045, %v2979, %v2975
    %v2981 = vlaneseq
    %v2982 = vshrl.u32 %v2981, 7
    %v2983 = vsub.s32 %v1035, %v2982
    %v2984 = vrot.slane %v2878, %v2983
    %v2985 = vlaneseq
    %v2986 = vshrl.u32 %v2985, 7
    %v2987 = vsub.s32 %v1040, %v2986
    %v2988 = vrot.slane %v2881, %v2987
    %v2989 = vsel %vm1045, %v2988, %v2984
    %v2990 = vlaneseq
    %v2991 = vshrl.u32 %v2990, 7
    %v2992 = vsub.s32 %v1035, %v2991
    %v2993 = vrot.slane %v2884, %v2992
    %v2994 = vlaneseq
    %v2995 = vshrl.u32 %v2994, 7
    %v2996 = vsub.s32 %v1040, %v2995
    %v2997 = vrot.slane %v2887, %v2996
    %v2998 = vsel %vm1045, %v2997, %v2993
    %v2999 = vlaneseq
    %v3000 = vshrl.u32 %v2999, 7
    %v3001 = vsub.s32 %v1035, %v3000
    %v3002 = vrot.slane %v2890, %v3001
    %v3003 = vlaneseq
    %v3004 = vshrl.u32 %v3003, 7
    %v3005 = vsub.s32 %v1040, %v3004
    %v3006 = vrot.slane %v2893, %v3005
    %v3007 = vsel %vm1045, %v3006, %v3002
    %v3008 = vlaneseq
    %v3009 = vshrl.u32 %v3008, 7
    %v3010 = vsub.s32 %v1035, %v3009
    %v3011 = vrot.slane %v2896, %v3010
    %v3012 = vlaneseq
    %v3013 = vshrl.u32 %v3012, 7
    %v3014 = vsub.s32 %v1040, %v3013
    %v3015 = vrot.slane %v2899, %v3014
    %v3016 = vsel %vm1045, %v3015, %v3011
    %v3017 = vlaneseq
    %v3018 = vshrl.u32 %v3017, 7
    %v3019 = vsub.s32 %v1035, %v3018
    %v3020 = vrot.slane %v2902, %v3019
    %v3021 = vlaneseq
    %v3022 = vshrl.u32 %v3021, 7
    %v3023 = vsub.s32 %v1040, %v3022
    %v3024 = vrot.slane %v2905, %v3023
    %v3025 = vsel %vm1045, %v3024, %v3020
    %v3026 = vlaneseq
    %v3027 = vshrl.u32 %v3026, 7
    %v3028 = vsub.s32 %v1035, %v3027
    %v3029 = vrot.slane %v2908, %v3028
    %v3030 = vlaneseq
    %v3031 = vshrl.u32 %v3030, 7
    %v3032 = vsub.s32 %v1040, %v3031
    %v3033 = vrot.slane %v2911, %v3032
    %v3034 = vsel %vm1045, %v3033, %v3029
    %v3035 = vlaneseq
    %v3036 = vshrl.u32 %v3035, 7
    %v3037 = vsub.s32 %v1035, %v3036
    %v3038 = vrot.slane %v2914, %v3037
    %v3039 = vlaneseq
    %v3040 = vshrl.u32 %v3039, 7
    %v3041 = vsub.s32 %v1040, %v3040
    %v3042 = vrot.slane %v2917, %v3041
    %v3043 = vsel %vm1045, %v3042, %v3038
    %v3044 = vlaneseq
    %v3045 = vshrl.u32 %v3044, 7
    %v3046 = vsub.s32 %v1035, %v3045
    %v3047 = vrot.slane %v2920, %v3046
    %v3048 = vlaneseq
    %v3049 = vshrl.u32 %v3048, 7
    %v3050 = vsub.s32 %v1040, %v3049
    %v3051 = vrot.slane %v2923, %v3050
    %v3052 = vsel %vm1045, %v3051, %v3047
    %v3053 = vlaneseq
    %v3054 = vshrl.u32 %v3053, 7
    %v3055 = vsub.s32 %v1035, %v3054
    %v3056 = vrot.slane %v2926, %v3055
    %v3057 = vlaneseq
    %v3058 = vshrl.u32 %v3057, 7
    %v3059 = vsub.s32 %v1040, %v3058
    %v3060 = vrot.slane %v2929, %v3059
    %v3061 = vsel %vm1045, %v3060, %v3056
    %v3062 = vlaneseq
    %v3063 = vshrl.u32 %v3062, 7
    %v3064 = vsub.s32 %v1035, %v3063
    %v3065 = vrot.slane %v2932, %v3064
    %v3066 = vlaneseq
    %v3067 = vshrl.u32 %v3066, 7
    %v3068 = vsub.s32 %v1040, %v3067
    %v3069 = vrot.slane %v2935, %v3068
    %v3070 = vsel %vm1045, %v3069, %v3065
    %v3071 = vlaneseq
    %v3072 = vshrl.u32 %v3071, 7
    %v3073 = vsub.s32 %v1035, %v3072
    %v3074 = vrot.slane %v2938, %v3073
    %v3075 = vlaneseq
    %v3076 = vshrl.u32 %v3075, 7
    %v3077 = vsub.s32 %v1040, %v3076
    %v3078 = vrot.slane %v2941, %v3077
    %v3079 = vsel %vm1045, %v3078, %v3074
    %v3080 = vlaneseq
    %v3081 = vshrl.u32 %v3080, 7
    %v3082 = vsub.s32 %v1035, %v3081
    %v3083 = vrot.slane %v2944, %v3082
    %v3084 = vlaneseq
    %v3085 = vshrl.u32 %v3084, 7
    %v3086 = vsub.s32 %v1040, %v3085
    %v3087 = vrot.slane %v2947, %v3086
    %v3088 = vsel %vm1045, %v3087, %v3083
    %v3089 = vlaneseq
    %v3090 = vshrl.u32 %v3089, 7
    %v3091 = vsub.s32 %v1035, %v3090
    %v3092 = vrot.slane %v2950, %v3091
    %v3093 = vlaneseq
    %v3094 = vshrl.u32 %v3093, 7
    %v3095 = vsub.s32 %v1040, %v3094
    %v3096 = vrot.slane %v2953, %v3095
    %v3097 = vsel %vm1045, %v3096, %v3092
    %v3098 = vsel %vm1182, %v2971, %v2962
    %v3099 = vsel %vm1184, %v2980, %v3098
    %v3100 = vsel %vm1186, %v2989, %v3099
    %v3101 = vsel %vm1188, %v2998, %v3100
    %v3102 = vsel %vm1190, %v3007, %v3101
    %v3103 = vsel %vm1192, %v3016, %v3102
    %v3104 = vsel %vm1194, %v3025, %v3103
    %v3105 = vsel %vm1182, %v3043, %v3034
    %v3106 = vsel %vm1184, %v3052, %v3105
    %v3107 = vsel %vm1186, %v3061, %v3106
    %v3108 = vsel %vm1188, %v3070, %v3107
    %v3109 = vsel %vm1190, %v3079, %v3108
    %v3110 = vsel %vm1192, %v3088, %v3109
    %v3111 = vsel %vm1194, %v3097, %v3110
    %v3114 = vsel %vm567, %v3104, -inf
    %3115 = vmax.xlane.f32.xlu0 %v3114
    %v3116 = vpop.xlane.xlu0 %3115
    %v3117 = vsel %vm567, %v3111, -inf
    %3118 = vmax.xlane.f32.xlu0 %v3117
    %v3119 = vpop.xlane.xlu0 %3118
    %v3122 = vlaneseq
    %v3123 = vshrl.u32 %v3122, 7
    %v3124 = vsub.s32 0, %v3123
    %v3125 = vrot.slane %v3116, %v3124
    %v3126 = vlaneseq
    %v3127 = vshrl.u32 %v3126, 7
    %v3128 = vsub.s32 1, %v3127
    %v3129 = vrot.slane %v3116, %v3128
    %v3130 = vlaneseq
    %v3131 = vshrl.u32 %v3130, 7
    %v3132 = vsub.s32 2, %v3131
    %v3133 = vrot.slane %v3116, %v3132
    %v3134 = vlaneseq
    %v3135 = vshrl.u32 %v3134, 7
    %v3136 = vsub.s32 3, %v3135
    %v3137 = vrot.slane %v3116, %v3136
    %v3138 = vlaneseq
    %v3139 = vshrl.u32 %v3138, 7
    %v3140 = vsub.s32 4, %v3139
    %v3141 = vrot.slane %v3116, %v3140
    %v3142 = vlaneseq
    %v3143 = vshrl.u32 %v3142, 7
    %v3144 = vsub.s32 5, %v3143
    %v3145 = vrot.slane %v3116, %v3144
    %v3146 = vlaneseq
    %v3147 = vshrl.u32 %v3146, 7
    %v3148 = vsub.s32 6, %v3147
    %v3149 = vrot.slane %v3116, %v3148
    %v3150 = vlaneseq
    %v3151 = vshrl.u32 %v3150, 7
    %v3152 = vsub.s32 7, %v3151
    %v3153 = vrot.slane %v3116, %v3152
    %v3154 = vlaneseq
    %v3155 = vshrl.u32 %v3154, 7
    %v3156 = vsub.s32 0, %v3155
    %v3157 = vrot.slane %v3119, %v3156
    %v3158 = vlaneseq
    %v3159 = vshrl.u32 %v3158, 7
    %v3160 = vsub.s32 1, %v3159
    %v3161 = vrot.slane %v3119, %v3160
    %v3162 = vlaneseq
    %v3163 = vshrl.u32 %v3162, 7
    %v3164 = vsub.s32 2, %v3163
    %v3165 = vrot.slane %v3119, %v3164
    %v3166 = vlaneseq
    %v3167 = vshrl.u32 %v3166, 7
    %v3168 = vsub.s32 3, %v3167
    %v3169 = vrot.slane %v3119, %v3168
    %v3170 = vlaneseq
    %v3171 = vshrl.u32 %v3170, 7
    %v3172 = vsub.s32 4, %v3171
    %v3173 = vrot.slane %v3119, %v3172
    %v3174 = vlaneseq
    %v3175 = vshrl.u32 %v3174, 7
    %v3176 = vsub.s32 5, %v3175
    %v3177 = vrot.slane %v3119, %v3176
    %v3178 = vlaneseq
    %v3179 = vshrl.u32 %v3178, 7
    %v3180 = vsub.s32 6, %v3179
    %v3181 = vrot.slane %v3119, %v3180
    %v3182 = vlaneseq
    %v3183 = vshrl.u32 %v3182, 7
    %v3184 = vsub.s32 7, %v3183
    %v3185 = vrot.slane %v3119, %v3184
    %v3202 = vsub.f32 %v2794, %v3125
    %v3203 = vsub.f32 %v2795, %v3125
    %v3204 = vsub.f32 %v2796, %v3129
    %v3205 = vsub.f32 %v2797, %v3129
    %v3206 = vsub.f32 %v2798, %v3133
    %v3207 = vsub.f32 %v2799, %v3133
    %v3208 = vsub.f32 %v2800, %v3137
    %v3209 = vsub.f32 %v2801, %v3137
    %v3210 = vsub.f32 %v2802, %v3141
    %v3211 = vsub.f32 %v2803, %v3141
    %v3212 = vsub.f32 %v2804, %v3145
    %v3213 = vsub.f32 %v2805, %v3145
    %v3214 = vsub.f32 %v2806, %v3149
    %v3215 = vsub.f32 %v2807, %v3149
    %v3216 = vsub.f32 %v2808, %v3153
    %v3217 = vsub.f32 %v2809, %v3153
    %v3218 = vsub.f32 %v2810, %v3157
    %v3219 = vsub.f32 %v2811, %v3157
    %v3220 = vsub.f32 %v2812, %v3161
    %v3221 = vsub.f32 %v2813, %v3161
    %v3222 = vsub.f32 %v2814, %v3165
    %v3223 = vsub.f32 %v2815, %v3165
    %v3224 = vsub.f32 %v2816, %v3169
    %v3225 = vsub.f32 %v2817, %v3169
    %v3226 = vsub.f32 %v2818, %v3173
    %v3227 = vsub.f32 %v2819, %v3173
    %v3228 = vsub.f32 %v2820, %v3177
    %v3229 = vsub.f32 %v2821, %v3177
    %v3230 = vsub.f32 %v2822, %v3181
    %v3231 = vsub.f32 %v2823, %v3181
    %v3232 = vsub.f32 %v2824, %v3185
    %v3233 = vsub.f32 %v2825, %v3185
    %v3234 = vmul.f32 %v3202, 1.442695
    %v3235 = vpow.pop %v3234
    %v3236 = vmul.f32 %v3203, 1.442695
    %v3237 = vpow.pop %v3236
    %v3238 = vmul.f32 %v3204, 1.442695
    %v3239 = vpow.pop %v3238
    %v3240 = vmul.f32 %v3205, 1.442695
    %v3241 = vpow.pop %v3240
    %v3242 = vmul.f32 %v3206, 1.442695
    %v3243 = vpow.pop %v3242
    %v3244 = vmul.f32 %v3207, 1.442695
    %v3245 = vpow.pop %v3244
    %v3246 = vmul.f32 %v3208, 1.442695
    %v3247 = vpow.pop %v3246
    %v3248 = vmul.f32 %v3209, 1.442695
    %v3249 = vpow.pop %v3248
    %v3250 = vmul.f32 %v3210, 1.442695
    %v3251 = vpow.pop %v3250
    %v3252 = vmul.f32 %v3211, 1.442695
    %v3253 = vpow.pop %v3252
    %v3254 = vmul.f32 %v3212, 1.442695
    %v3255 = vpow.pop %v3254
    %v3256 = vmul.f32 %v3213, 1.442695
    %v3257 = vpow.pop %v3256
    %v3258 = vmul.f32 %v3214, 1.442695
    %v3259 = vpow.pop %v3258
    %v3260 = vmul.f32 %v3215, 1.442695
    %v3261 = vpow.pop %v3260
    %v3262 = vmul.f32 %v3216, 1.442695
    %v3263 = vpow.pop %v3262
    %v3264 = vmul.f32 %v3217, 1.442695
    %v3265 = vpow.pop %v3264
    %v3266 = vmul.f32 %v3218, 1.442695
    %v3267 = vpow.pop %v3266
    %v3268 = vmul.f32 %v3219, 1.442695
    %v3269 = vpow.pop %v3268
    %v3270 = vmul.f32 %v3220, 1.442695
    %v3271 = vpow.pop %v3270
    %v3272 = vmul.f32 %v3221, 1.442695
    %v3273 = vpow.pop %v3272
    %v3274 = vmul.f32 %v3222, 1.442695
    %v3275 = vpow.pop %v3274
    %v3276 = vmul.f32 %v3223, 1.442695
    %v3277 = vpow.pop %v3276
    %v3278 = vmul.f32 %v3224, 1.442695
    %v3279 = vpow.pop %v3278
    %v3280 = vmul.f32 %v3225, 1.442695
    %v3281 = vpow.pop %v3280
    %v3282 = vmul.f32 %v3226, 1.442695
    %v3283 = vpow.pop %v3282
    %v3284 = vmul.f32 %v3227, 1.442695
    %v3285 = vpow.pop %v3284
    %v3286 = vmul.f32 %v3228, 1.442695
    %v3287 = vpow.pop %v3286
    %v3288 = vmul.f32 %v3229, 1.442695
    %v3289 = vpow.pop %v3288
    %v3290 = vmul.f32 %v3230, 1.442695
    %v3291 = vpow.pop %v3290
    %v3292 = vmul.f32 %v3231, 1.442695
    %v3293 = vpow.pop %v3292
    %v3294 = vmul.f32 %v3232, 1.442695
    %v3295 = vpow.pop %v3294
    %v3296 = vmul.f32 %v3233, 1.442695
    %v3297 = vpow.pop %v3296
    %3330 = vset.pattern.permute.xlu0 0
    %3331 = vperm.xlu0 %3330, %v3235
    %v3332 = vpop.permute.xlu0 %3331
    %3333 = vset.pattern.permute.xlu0 0
    %3334 = vperm.xlu0 %3333, %v3237
    %v3335 = vpop.permute.xlu0 %3334
    %3336 = vset.pattern.permute.xlu0 0
    %3337 = vperm.xlu0 %3336, %v3239
    %v3338 = vpop.permute.xlu0 %3337
    %3339 = vset.pattern.permute.xlu0 0
    %3340 = vperm.xlu0 %3339, %v3241
    %v3341 = vpop.permute.xlu0 %3340
    %3342 = vset.pattern.permute.xlu0 0
    %3343 = vperm.xlu0 %3342, %v3243
    %v3344 = vpop.permute.xlu0 %3343
    %3345 = vset.pattern.permute.xlu0 0
    %3346 = vperm.xlu0 %3345, %v3245
    %v3347 = vpop.permute.xlu0 %3346
    %3348 = vset.pattern.permute.xlu0 0
    %3349 = vperm.xlu0 %3348, %v3247
    %v3350 = vpop.permute.xlu0 %3349
    %3351 = vset.pattern.permute.xlu0 0
    %3352 = vperm.xlu0 %3351, %v3249
    %v3353 = vpop.permute.xlu0 %3352
    %3354 = vset.pattern.permute.xlu0 0
    %3355 = vperm.xlu0 %3354, %v3251
    %v3356 = vpop.permute.xlu0 %3355
    %3357 = vset.pattern.permute.xlu0 0
    %3358 = vperm.xlu0 %3357, %v3253
    %v3359 = vpop.permute.xlu0 %3358
    %3360 = vset.pattern.permute.xlu0 0
    %3361 = vperm.xlu0 %3360, %v3255
    %v3362 = vpop.permute.xlu0 %3361
    %3363 = vset.pattern.permute.xlu0 0
    %3364 = vperm.xlu0 %3363, %v3257
    %v3365 = vpop.permute.xlu0 %3364
    %3366 = vset.pattern.permute.xlu0 0
    %3367 = vperm.xlu0 %3366, %v3259
    %v3368 = vpop.permute.xlu0 %3367
    %3369 = vset.pattern.permute.xlu0 0
    %3370 = vperm.xlu0 %3369, %v3261
    %v3371 = vpop.permute.xlu0 %3370
    %3372 = vset.pattern.permute.xlu0 0
    %3373 = vperm.xlu0 %3372, %v3263
    %v3374 = vpop.permute.xlu0 %3373
    %3375 = vset.pattern.permute.xlu0 0
    %3376 = vperm.xlu0 %3375, %v3265
    %v3377 = vpop.permute.xlu0 %3376
    %3378 = vset.pattern.permute.xlu0 0
    %3379 = vperm.xlu0 %3378, %v3267
    %v3380 = vpop.permute.xlu0 %3379
    %3381 = vset.pattern.permute.xlu0 0
    %3382 = vperm.xlu0 %3381, %v3269
    %v3383 = vpop.permute.xlu0 %3382
    %3384 = vset.pattern.permute.xlu0 0
    %3385 = vperm.xlu0 %3384, %v3271
    %v3386 = vpop.permute.xlu0 %3385
    %3387 = vset.pattern.permute.xlu0 0
    %3388 = vperm.xlu0 %3387, %v3273
    %v3389 = vpop.permute.xlu0 %3388
    %3390 = vset.pattern.permute.xlu0 0
    %3391 = vperm.xlu0 %3390, %v3275
    %v3392 = vpop.permute.xlu0 %3391
    %3393 = vset.pattern.permute.xlu0 0
    %3394 = vperm.xlu0 %3393, %v3277
    %v3395 = vpop.permute.xlu0 %3394
    %3396 = vset.pattern.permute.xlu0 0
    %3397 = vperm.xlu0 %3396, %v3279
    %v3398 = vpop.permute.xlu0 %3397
    %3399 = vset.pattern.permute.xlu0 0
    %3400 = vperm.xlu0 %3399, %v3281
    %v3401 = vpop.permute.xlu0 %3400
    %3402 = vset.pattern.permute.xlu0 0
    %3403 = vperm.xlu0 %3402, %v3283
    %v3404 = vpop.permute.xlu0 %3403
    %3405 = vset.pattern.permute.xlu0 0
    %3406 = vperm.xlu0 %3405, %v3285
    %v3407 = vpop.permute.xlu0 %3406
    %3408 = vset.pattern.permute.xlu0 0
    %3409 = vperm.xlu0 %3408, %v3287
    %v3410 = vpop.permute.xlu0 %3409
    %3411 = vset.pattern.permute.xlu0 0
    %3412 = vperm.xlu0 %3411, %v3289
    %v3413 = vpop.permute.xlu0 %3412
    %3414 = vset.pattern.permute.xlu0 0
    %3415 = vperm.xlu0 %3414, %v3291
    %v3416 = vpop.permute.xlu0 %3415
    %3417 = vset.pattern.permute.xlu0 0
    %3418 = vperm.xlu0 %3417, %v3293
    %v3419 = vpop.permute.xlu0 %3418
    %3420 = vset.pattern.permute.xlu0 0
    %3421 = vperm.xlu0 %3420, %v3295
    %v3422 = vpop.permute.xlu0 %3421
    %3423 = vset.pattern.permute.xlu0 0
    %3424 = vperm.xlu0 %3423, %v3297
    %v3425 = vpop.permute.xlu0 %3424
    %v3426 = vlaneseq
    %v3427 = vshrl.u32 %v3426, 7
    %v3428 = vsub.s32 %v1035, %v3427
    %v3429 = vrot.slane %v3332, %v3428
    %v3430 = vlaneseq
    %v3431 = vshrl.u32 %v3430, 7
    %v3432 = vsub.s32 %v1040, %v3431
    %v3433 = vrot.slane %v3335, %v3432
    %v3434 = vsel %vm1045, %v3433, %v3429
    %v3435 = vlaneseq
    %v3436 = vshrl.u32 %v3435, 7
    %v3437 = vsub.s32 %v1035, %v3436
    %v3438 = vrot.slane %v3338, %v3437
    %v3439 = vlaneseq
    %v3440 = vshrl.u32 %v3439, 7
    %v3441 = vsub.s32 %v1040, %v3440
    %v3442 = vrot.slane %v3341, %v3441
    %v3443 = vsel %vm1045, %v3442, %v3438
    %v3444 = vlaneseq
    %v3445 = vshrl.u32 %v3444, 7
    %v3446 = vsub.s32 %v1035, %v3445
    %v3447 = vrot.slane %v3344, %v3446
    %v3448 = vlaneseq
    %v3449 = vshrl.u32 %v3448, 7
    %v3450 = vsub.s32 %v1040, %v3449
    %v3451 = vrot.slane %v3347, %v3450
    %v3452 = vsel %vm1045, %v3451, %v3447
    %v3453 = vlaneseq
    %v3454 = vshrl.u32 %v3453, 7
    %v3455 = vsub.s32 %v1035, %v3454
    %v3456 = vrot.slane %v3350, %v3455
    %v3457 = vlaneseq
    %v3458 = vshrl.u32 %v3457, 7
    %v3459 = vsub.s32 %v1040, %v3458
    %v3460 = vrot.slane %v3353, %v3459
    %v3461 = vsel %vm1045, %v3460, %v3456
    %v3462 = vlaneseq
    %v3463 = vshrl.u32 %v3462, 7
    %v3464 = vsub.s32 %v1035, %v3463
    %v3465 = vrot.slane %v3356, %v3464
    %v3466 = vlaneseq
    %v3467 = vshrl.u32 %v3466, 7
    %v3468 = vsub.s32 %v1040, %v3467
    %v3469 = vrot.slane %v3359, %v3468
    %v3470 = vsel %vm1045, %v3469, %v3465
    %v3471 = vlaneseq
    %v3472 = vshrl.u32 %v3471, 7
    %v3473 = vsub.s32 %v1035, %v3472
    %v3474 = vrot.slane %v3362, %v3473
    %v3475 = vlaneseq
    %v3476 = vshrl.u32 %v3475, 7
    %v3477 = vsub.s32 %v1040, %v3476
    %v3478 = vrot.slane %v3365, %v3477
    %v3479 = vsel %vm1045, %v3478, %v3474
    %v3480 = vlaneseq
    %v3481 = vshrl.u32 %v3480, 7
    %v3482 = vsub.s32 %v1035, %v3481
    %v3483 = vrot.slane %v3368, %v3482
    %v3484 = vlaneseq
    %v3485 = vshrl.u32 %v3484, 7
    %v3486 = vsub.s32 %v1040, %v3485
    %v3487 = vrot.slane %v3371, %v3486
    %v3488 = vsel %vm1045, %v3487, %v3483
    %v3489 = vlaneseq
    %v3490 = vshrl.u32 %v3489, 7
    %v3491 = vsub.s32 %v1035, %v3490
    %v3492 = vrot.slane %v3374, %v3491
    %v3493 = vlaneseq
    %v3494 = vshrl.u32 %v3493, 7
    %v3495 = vsub.s32 %v1040, %v3494
    %v3496 = vrot.slane %v3377, %v3495
    %v3497 = vsel %vm1045, %v3496, %v3492
    %v3498 = vlaneseq
    %v3499 = vshrl.u32 %v3498, 7
    %v3500 = vsub.s32 %v1035, %v3499
    %v3501 = vrot.slane %v3380, %v3500
    %v3502 = vlaneseq
    %v3503 = vshrl.u32 %v3502, 7
    %v3504 = vsub.s32 %v1040, %v3503
    %v3505 = vrot.slane %v3383, %v3504
    %v3506 = vsel %vm1045, %v3505, %v3501
    %v3507 = vlaneseq
    %v3508 = vshrl.u32 %v3507, 7
    %v3509 = vsub.s32 %v1035, %v3508
    %v3510 = vrot.slane %v3386, %v3509
    %v3511 = vlaneseq
    %v3512 = vshrl.u32 %v3511, 7
    %v3513 = vsub.s32 %v1040, %v3512
    %v3514 = vrot.slane %v3389, %v3513
    %v3515 = vsel %vm1045, %v3514, %v3510
    %v3516 = vlaneseq
    %v3517 = vshrl.u32 %v3516, 7
    %v3518 = vsub.s32 %v1035, %v3517
    %v3519 = vrot.slane %v3392, %v3518
    %v3520 = vlaneseq
    %v3521 = vshrl.u32 %v3520, 7
    %v3522 = vsub.s32 %v1040, %v3521
    %v3523 = vrot.slane %v3395, %v3522
    %v3524 = vsel %vm1045, %v3523, %v3519
    %v3525 = vlaneseq
    %v3526 = vshrl.u32 %v3525, 7
    %v3527 = vsub.s32 %v1035, %v3526
    %v3528 = vrot.slane %v3398, %v3527
    %v3529 = vlaneseq
    %v3530 = vshrl.u32 %v3529, 7
    %v3531 = vsub.s32 %v1040, %v3530
    %v3532 = vrot.slane %v3401, %v3531
    %v3533 = vsel %vm1045, %v3532, %v3528
    %v3534 = vlaneseq
    %v3535 = vshrl.u32 %v3534, 7
    %v3536 = vsub.s32 %v1035, %v3535
    %v3537 = vrot.slane %v3404, %v3536
    %v3538 = vlaneseq
    %v3539 = vshrl.u32 %v3538, 7
    %v3540 = vsub.s32 %v1040, %v3539
    %v3541 = vrot.slane %v3407, %v3540
    %v3542 = vsel %vm1045, %v3541, %v3537
    %v3543 = vlaneseq
    %v3544 = vshrl.u32 %v3543, 7
    %v3545 = vsub.s32 %v1035, %v3544
    %v3546 = vrot.slane %v3410, %v3545
    %v3547 = vlaneseq
    %v3548 = vshrl.u32 %v3547, 7
    %v3549 = vsub.s32 %v1040, %v3548
    %v3550 = vrot.slane %v3413, %v3549
    %v3551 = vsel %vm1045, %v3550, %v3546
    %v3552 = vlaneseq
    %v3553 = vshrl.u32 %v3552, 7
    %v3554 = vsub.s32 %v1035, %v3553
    %v3555 = vrot.slane %v3416, %v3554
    %v3556 = vlaneseq
    %v3557 = vshrl.u32 %v3556, 7
    %v3558 = vsub.s32 %v1040, %v3557
    %v3559 = vrot.slane %v3419, %v3558
    %v3560 = vsel %vm1045, %v3559, %v3555
    %v3561 = vlaneseq
    %v3562 = vshrl.u32 %v3561, 7
    %v3563 = vsub.s32 %v1035, %v3562
    %v3564 = vrot.slane %v3422, %v3563
    %v3565 = vlaneseq
    %v3566 = vshrl.u32 %v3565, 7
    %v3567 = vsub.s32 %v1040, %v3566
    %v3568 = vrot.slane %v3425, %v3567
    %v3569 = vsel %vm1045, %v3568, %v3564
    %v3570 = vsel %vm1182, %v3443, %v3434
    %v3571 = vsel %vm1184, %v3452, %v3570
    %v3572 = vsel %vm1186, %v3461, %v3571
    %v3573 = vsel %vm1188, %v3470, %v3572
    %v3574 = vsel %vm1190, %v3479, %v3573
    %v3575 = vsel %vm1192, %v3488, %v3574
    %v3576 = vsel %vm1194, %v3497, %v3575
    %v3577 = vsel %vm1182, %v3515, %v3506
    %v3578 = vsel %vm1184, %v3524, %v3577
    %v3579 = vsel %vm1186, %v3533, %v3578
    %v3580 = vsel %vm1188, %v3542, %v3579
    %v3581 = vsel %vm1190, %v3551, %v3580
    %v3582 = vsel %vm1192, %v3560, %v3581
    %v3583 = vsel %vm1194, %v3569, %v3582
    %v3586 = vsel %vm567, %v3576, 0.0
    %3587 = vadd.xlane.f32.xlu0 %v3586
    %v3588 = vpop.xlane.xlu0 %3587
    %v3589 = vsel %vm567, %v3583, 0.0
    %3590 = vadd.xlane.f32.xlu0 %v3589
    %v3591 = vpop.xlane.xlu0 %3590
    %v3592 = vmax.f32 %v3588, 1e-20
    %v3593 = vmax.f32 %v3591, 1e-20
    %v3594 = vrcp.pop %v3592
    %v3595 = vrcp.pop %v3593
    %v3598 = vlaneseq
    %v3599 = vshrl.u32 %v3598, 7
    %v3600 = vsub.s32 0, %v3599
    %v3601 = vrot.slane %v3594, %v3600
    %v3602 = vlaneseq
    %v3603 = vshrl.u32 %v3602, 7
    %v3604 = vsub.s32 1, %v3603
    %v3605 = vrot.slane %v3594, %v3604
    %v3606 = vlaneseq
    %v3607 = vshrl.u32 %v3606, 7
    %v3608 = vsub.s32 2, %v3607
    %v3609 = vrot.slane %v3594, %v3608
    %v3610 = vlaneseq
    %v3611 = vshrl.u32 %v3610, 7
    %v3612 = vsub.s32 3, %v3611
    %v3613 = vrot.slane %v3594, %v3612
    %v3614 = vlaneseq
    %v3615 = vshrl.u32 %v3614, 7
    %v3616 = vsub.s32 4, %v3615
    %v3617 = vrot.slane %v3594, %v3616
    %v3618 = vlaneseq
    %v3619 = vshrl.u32 %v3618, 7
    %v3620 = vsub.s32 5, %v3619
    %v3621 = vrot.slane %v3594, %v3620
    %v3622 = vlaneseq
    %v3623 = vshrl.u32 %v3622, 7
    %v3624 = vsub.s32 6, %v3623
    %v3625 = vrot.slane %v3594, %v3624
    %v3626 = vlaneseq
    %v3627 = vshrl.u32 %v3626, 7
    %v3628 = vsub.s32 7, %v3627
    %v3629 = vrot.slane %v3594, %v3628
    %v3630 = vlaneseq
    %v3631 = vshrl.u32 %v3630, 7
    %v3632 = vsub.s32 0, %v3631
    %v3633 = vrot.slane %v3595, %v3632
    %v3634 = vlaneseq
    %v3635 = vshrl.u32 %v3634, 7
    %v3636 = vsub.s32 1, %v3635
    %v3637 = vrot.slane %v3595, %v3636
    %v3638 = vlaneseq
    %v3639 = vshrl.u32 %v3638, 7
    %v3640 = vsub.s32 2, %v3639
    %v3641 = vrot.slane %v3595, %v3640
    %v3642 = vlaneseq
    %v3643 = vshrl.u32 %v3642, 7
    %v3644 = vsub.s32 3, %v3643
    %v3645 = vrot.slane %v3595, %v3644
    %v3646 = vlaneseq
    %v3647 = vshrl.u32 %v3646, 7
    %v3648 = vsub.s32 4, %v3647
    %v3649 = vrot.slane %v3595, %v3648
    %v3650 = vlaneseq
    %v3651 = vshrl.u32 %v3650, 7
    %v3652 = vsub.s32 5, %v3651
    %v3653 = vrot.slane %v3595, %v3652
    %v3654 = vlaneseq
    %v3655 = vshrl.u32 %v3654, 7
    %v3656 = vsub.s32 6, %v3655
    %v3657 = vrot.slane %v3595, %v3656
    %v3658 = vlaneseq
    %v3659 = vshrl.u32 %v3658, 7
    %v3660 = vsub.s32 7, %v3659
    %v3661 = vrot.slane %v3595, %v3660
    %v3678 = vmul.f32 %v3235, %v3601
    %v3679 = vmul.f32 %v3237, %v3601
    %v3680 = vmul.f32 %v3239, %v3605
    %v3681 = vmul.f32 %v3241, %v3605
    %v3682 = vmul.f32 %v3243, %v3609
    %v3683 = vmul.f32 %v3245, %v3609
    %v3684 = vmul.f32 %v3247, %v3613
    %v3685 = vmul.f32 %v3249, %v3613
    %v3686 = vmul.f32 %v3251, %v3617
    %v3687 = vmul.f32 %v3253, %v3617
    %v3688 = vmul.f32 %v3255, %v3621
    %v3689 = vmul.f32 %v3257, %v3621
    %v3690 = vmul.f32 %v3259, %v3625
    %v3691 = vmul.f32 %v3261, %v3625
    %v3692 = vmul.f32 %v3263, %v3629
    %v3693 = vmul.f32 %v3265, %v3629
    %v3694 = vmul.f32 %v3267, %v3633
    %v3695 = vmul.f32 %v3269, %v3633
    %v3696 = vmul.f32 %v3271, %v3637
    %v3697 = vmul.f32 %v3273, %v3637
    %v3698 = vmul.f32 %v3275, %v3641
    %v3699 = vmul.f32 %v3277, %v3641
    %v3700 = vmul.f32 %v3279, %v3645
    %v3701 = vmul.f32 %v3281, %v3645
    %v3702 = vmul.f32 %v3283, %v3649
    %v3703 = vmul.f32 %v3285, %v3649
    %v3704 = vmul.f32 %v3287, %v3653
    %v3705 = vmul.f32 %v3289, %v3653
    %v3706 = vmul.f32 %v3291, %v3657
    %v3707 = vmul.f32 %v3293, %v3657
    %v3708 = vmul.f32 %v3295, %v3661
    %v3709 = vmul.f32 %v3297, %v3661
    %3742 = vset.pattern.permute.xlu0 0
    %3743 = vperm.xlu0 %3742, %v3678
    %v3744 = vpop.permute.xlu0 %3743
    %3745 = vset.pattern.permute.xlu0 0
    %3746 = vperm.xlu0 %3745, %v3679
    %v3747 = vpop.permute.xlu0 %3746
    %3748 = vset.pattern.permute.xlu0 0
    %3749 = vperm.xlu0 %3748, %v3680
    %v3750 = vpop.permute.xlu0 %3749
    %3751 = vset.pattern.permute.xlu0 0
    %3752 = vperm.xlu0 %3751, %v3681
    %v3753 = vpop.permute.xlu0 %3752
    %3754 = vset.pattern.permute.xlu0 0
    %3755 = vperm.xlu0 %3754, %v3682
    %v3756 = vpop.permute.xlu0 %3755
    %3757 = vset.pattern.permute.xlu0 0
    %3758 = vperm.xlu0 %3757, %v3683
    %v3759 = vpop.permute.xlu0 %3758
    %3760 = vset.pattern.permute.xlu0 0
    %3761 = vperm.xlu0 %3760, %v3684
    %v3762 = vpop.permute.xlu0 %3761
    %3763 = vset.pattern.permute.xlu0 0
    %3764 = vperm.xlu0 %3763, %v3685
    %v3765 = vpop.permute.xlu0 %3764
    %3766 = vset.pattern.permute.xlu0 0
    %3767 = vperm.xlu0 %3766, %v3686
    %v3768 = vpop.permute.xlu0 %3767
    %3769 = vset.pattern.permute.xlu0 0
    %3770 = vperm.xlu0 %3769, %v3687
    %v3771 = vpop.permute.xlu0 %3770
    %3772 = vset.pattern.permute.xlu0 0
    %3773 = vperm.xlu0 %3772, %v3688
    %v3774 = vpop.permute.xlu0 %3773
    %3775 = vset.pattern.permute.xlu0 0
    %3776 = vperm.xlu0 %3775, %v3689
    %v3777 = vpop.permute.xlu0 %3776
    %3778 = vset.pattern.permute.xlu0 0
    %3779 = vperm.xlu0 %3778, %v3690
    %v3780 = vpop.permute.xlu0 %3779
    %3781 = vset.pattern.permute.xlu0 0
    %3782 = vperm.xlu0 %3781, %v3691
    %v3783 = vpop.permute.xlu0 %3782
    %3784 = vset.pattern.permute.xlu0 0
    %3785 = vperm.xlu0 %3784, %v3692
    %v3786 = vpop.permute.xlu0 %3785
    %3787 = vset.pattern.permute.xlu0 0
    %3788 = vperm.xlu0 %3787, %v3693
    %v3789 = vpop.permute.xlu0 %3788
    %3790 = vset.pattern.permute.xlu0 0
    %3791 = vperm.xlu0 %3790, %v3694
    %v3792 = vpop.permute.xlu0 %3791
    %3793 = vset.pattern.permute.xlu0 0
    %3794 = vperm.xlu0 %3793, %v3695
    %v3795 = vpop.permute.xlu0 %3794
    %3796 = vset.pattern.permute.xlu0 0
    %3797 = vperm.xlu0 %3796, %v3696
    %v3798 = vpop.permute.xlu0 %3797
    %3799 = vset.pattern.permute.xlu0 0
    %3800 = vperm.xlu0 %3799, %v3697
    %v3801 = vpop.permute.xlu0 %3800
    %3802 = vset.pattern.permute.xlu0 0
    %3803 = vperm.xlu0 %3802, %v3698
    %v3804 = vpop.permute.xlu0 %3803
    %3805 = vset.pattern.permute.xlu0 0
    %3806 = vperm.xlu0 %3805, %v3699
    %v3807 = vpop.permute.xlu0 %3806
    %3808 = vset.pattern.permute.xlu0 0
    %3809 = vperm.xlu0 %3808, %v3700
    %v3810 = vpop.permute.xlu0 %3809
    %3811 = vset.pattern.permute.xlu0 0
    %3812 = vperm.xlu0 %3811, %v3701
    %v3813 = vpop.permute.xlu0 %3812
    %3814 = vset.pattern.permute.xlu0 0
    %3815 = vperm.xlu0 %3814, %v3702
    %v3816 = vpop.permute.xlu0 %3815
    %3817 = vset.pattern.permute.xlu0 0
    %3818 = vperm.xlu0 %3817, %v3703
    %v3819 = vpop.permute.xlu0 %3818
    %3820 = vset.pattern.permute.xlu0 0
    %3821 = vperm.xlu0 %3820, %v3704
    %v3822 = vpop.permute.xlu0 %3821
    %3823 = vset.pattern.permute.xlu0 0
    %3824 = vperm.xlu0 %3823, %v3705
    %v3825 = vpop.permute.xlu0 %3824
    %3826 = vset.pattern.permute.xlu0 0
    %3827 = vperm.xlu0 %3826, %v3706
    %v3828 = vpop.permute.xlu0 %3827
    %3829 = vset.pattern.permute.xlu0 0
    %3830 = vperm.xlu0 %3829, %v3707
    %v3831 = vpop.permute.xlu0 %3830
    %3832 = vset.pattern.permute.xlu0 0
    %3833 = vperm.xlu0 %3832, %v3708
    %v3834 = vpop.permute.xlu0 %3833
    %3835 = vset.pattern.permute.xlu0 0
    %3836 = vperm.xlu0 %3835, %v3709
    %v3837 = vpop.permute.xlu0 %3836
    %v3838 = vlaneseq
    %v3839 = vshrl.u32 %v3838, 7
    %v3840 = vsub.s32 %v1035, %v3839
    %v3841 = vrot.slane %v3744, %v3840
    %v3842 = vlaneseq
    %v3843 = vshrl.u32 %v3842, 7
    %v3844 = vsub.s32 %v1040, %v3843
    %v3845 = vrot.slane %v3747, %v3844
    %v3846 = vsel %vm1045, %v3845, %v3841
    %v3847 = vlaneseq
    %v3848 = vshrl.u32 %v3847, 7
    %v3849 = vsub.s32 %v1035, %v3848
    %v3850 = vrot.slane %v3750, %v3849
    %v3851 = vlaneseq
    %v3852 = vshrl.u32 %v3851, 7
    %v3853 = vsub.s32 %v1040, %v3852
    %v3854 = vrot.slane %v3753, %v3853
    %v3855 = vsel %vm1045, %v3854, %v3850
    %v3856 = vlaneseq
    %v3857 = vshrl.u32 %v3856, 7
    %v3858 = vsub.s32 %v1035, %v3857
    %v3859 = vrot.slane %v3756, %v3858
    %v3860 = vlaneseq
    %v3861 = vshrl.u32 %v3860, 7
    %v3862 = vsub.s32 %v1040, %v3861
    %v3863 = vrot.slane %v3759, %v3862
    %v3864 = vsel %vm1045, %v3863, %v3859
    %v3865 = vlaneseq
    %v3866 = vshrl.u32 %v3865, 7
    %v3867 = vsub.s32 %v1035, %v3866
    %v3868 = vrot.slane %v3762, %v3867
    %v3869 = vlaneseq
    %v3870 = vshrl.u32 %v3869, 7
    %v3871 = vsub.s32 %v1040, %v3870
    %v3872 = vrot.slane %v3765, %v3871
    %v3873 = vsel %vm1045, %v3872, %v3868
    %v3874 = vlaneseq
    %v3875 = vshrl.u32 %v3874, 7
    %v3876 = vsub.s32 %v1035, %v3875
    %v3877 = vrot.slane %v3768, %v3876
    %v3878 = vlaneseq
    %v3879 = vshrl.u32 %v3878, 7
    %v3880 = vsub.s32 %v1040, %v3879
    %v3881 = vrot.slane %v3771, %v3880
    %v3882 = vsel %vm1045, %v3881, %v3877
    %v3883 = vlaneseq
    %v3884 = vshrl.u32 %v3883, 7
    %v3885 = vsub.s32 %v1035, %v3884
    %v3886 = vrot.slane %v3774, %v3885
    %v3887 = vlaneseq
    %v3888 = vshrl.u32 %v3887, 7
    %v3889 = vsub.s32 %v1040, %v3888
    %v3890 = vrot.slane %v3777, %v3889
    %v3891 = vsel %vm1045, %v3890, %v3886
    %v3892 = vlaneseq
    %v3893 = vshrl.u32 %v3892, 7
    %v3894 = vsub.s32 %v1035, %v3893
    %v3895 = vrot.slane %v3780, %v3894
    %v3896 = vlaneseq
    %v3897 = vshrl.u32 %v3896, 7
    %v3898 = vsub.s32 %v1040, %v3897
    %v3899 = vrot.slane %v3783, %v3898
    %v3900 = vsel %vm1045, %v3899, %v3895
    %v3901 = vlaneseq
    %v3902 = vshrl.u32 %v3901, 7
    %v3903 = vsub.s32 %v1035, %v3902
    %v3904 = vrot.slane %v3786, %v3903
    %v3905 = vlaneseq
    %v3906 = vshrl.u32 %v3905, 7
    %v3907 = vsub.s32 %v1040, %v3906
    %v3908 = vrot.slane %v3789, %v3907
    %v3909 = vsel %vm1045, %v3908, %v3904
    %v3910 = vlaneseq
    %v3911 = vshrl.u32 %v3910, 7
    %v3912 = vsub.s32 %v1035, %v3911
    %v3913 = vrot.slane %v3792, %v3912
    %v3914 = vlaneseq
    %v3915 = vshrl.u32 %v3914, 7
    %v3916 = vsub.s32 %v1040, %v3915
    %v3917 = vrot.slane %v3795, %v3916
    %v3918 = vsel %vm1045, %v3917, %v3913
    %v3919 = vlaneseq
    %v3920 = vshrl.u32 %v3919, 7
    %v3921 = vsub.s32 %v1035, %v3920
    %v3922 = vrot.slane %v3798, %v3921
    %v3923 = vlaneseq
    %v3924 = vshrl.u32 %v3923, 7
    %v3925 = vsub.s32 %v1040, %v3924
    %v3926 = vrot.slane %v3801, %v3925
    %v3927 = vsel %vm1045, %v3926, %v3922
    %v3928 = vlaneseq
    %v3929 = vshrl.u32 %v3928, 7
    %v3930 = vsub.s32 %v1035, %v3929
    %v3931 = vrot.slane %v3804, %v3930
    %v3932 = vlaneseq
    %v3933 = vshrl.u32 %v3932, 7
    %v3934 = vsub.s32 %v1040, %v3933
    %v3935 = vrot.slane %v3807, %v3934
    %v3936 = vsel %vm1045, %v3935, %v3931
    %v3937 = vlaneseq
    %v3938 = vshrl.u32 %v3937, 7
    %v3939 = vsub.s32 %v1035, %v3938
    %v3940 = vrot.slane %v3810, %v3939
    %v3941 = vlaneseq
    %v3942 = vshrl.u32 %v3941, 7
    %v3943 = vsub.s32 %v1040, %v3942
    %v3944 = vrot.slane %v3813, %v3943
    %v3945 = vsel %vm1045, %v3944, %v3940
    %v3946 = vlaneseq
    %v3947 = vshrl.u32 %v3946, 7
    %v3948 = vsub.s32 %v1035, %v3947
    %v3949 = vrot.slane %v3816, %v3948
    %v3950 = vlaneseq
    %v3951 = vshrl.u32 %v3950, 7
    %v3952 = vsub.s32 %v1040, %v3951
    %v3953 = vrot.slane %v3819, %v3952
    %v3954 = vsel %vm1045, %v3953, %v3949
    %v3955 = vlaneseq
    %v3956 = vshrl.u32 %v3955, 7
    %v3957 = vsub.s32 %v1035, %v3956
    %v3958 = vrot.slane %v3822, %v3957
    %v3959 = vlaneseq
    %v3960 = vshrl.u32 %v3959, 7
    %v3961 = vsub.s32 %v1040, %v3960
    %v3962 = vrot.slane %v3825, %v3961
    %v3963 = vsel %vm1045, %v3962, %v3958
    %v3964 = vlaneseq
    %v3965 = vshrl.u32 %v3964, 7
    %v3966 = vsub.s32 %v1035, %v3965
    %v3967 = vrot.slane %v3828, %v3966
    %v3968 = vlaneseq
    %v3969 = vshrl.u32 %v3968, 7
    %v3970 = vsub.s32 %v1040, %v3969
    %v3971 = vrot.slane %v3831, %v3970
    %v3972 = vsel %vm1045, %v3971, %v3967
    %v3973 = vlaneseq
    %v3974 = vshrl.u32 %v3973, 7
    %v3975 = vsub.s32 %v1035, %v3974
    %v3976 = vrot.slane %v3834, %v3975
    %v3977 = vlaneseq
    %v3978 = vshrl.u32 %v3977, 7
    %v3979 = vsub.s32 %v1040, %v3978
    %v3980 = vrot.slane %v3837, %v3979
    %v3981 = vsel %vm1045, %v3980, %v3976
    %v3982 = vsel %vm1182, %v3855, %v3846
    %v3983 = vsel %vm1184, %v3864, %v3982
    %v3984 = vsel %vm1186, %v3873, %v3983
    %v3985 = vsel %vm1188, %v3882, %v3984
    %v3986 = vsel %vm1190, %v3891, %v3985
    %v3987 = vsel %vm1192, %v3900, %v3986
    %v3988 = vsel %vm1194, %v3909, %v3987
    %v3989 = vsel %vm1182, %v3927, %v3918
    %v3990 = vsel %vm1184, %v3936, %v3989
    %v3991 = vsel %vm1186, %v3945, %v3990
    %v3992 = vsel %vm1188, %v3954, %v3991
    %v3993 = vsel %vm1190, %v3963, %v3992
    %v3994 = vsel %vm1192, %v3972, %v3993
    %v3995 = vsel %vm1194, %v3981, %v3994
    %v3996 = vsel %vm567, %v3988, 0
    %v3998 = vsel %vm567, %v3995, 0
    %4000 = vmatprep.subr.mxu0 0.0
    %4001 = vmatpush1.msra.mxu0 %v2247
    %4002 = vmatprep.subr.mxu0 0.0
    %4003 = vmatpush1.msra.mxu0 %v2252
    %4004 = vmatprep.subr.mxu0 0.0
    %4005 = vmatpush1.msra.mxu0 0.0
    %4006 = vmatprep.subr.mxu0 0.0
    %4007 = vmatpush1.msra.mxu0 0.0
    %4008 = vmatprep.subr.mxu0 0.0
    %4009 = vmatpush1.msra.mxu0 0.0
    %4010 = vmatprep.subr.mxu0 0.0
    %4011 = vmatpush1.msra.mxu0 0.0
    %4012 = vmatprep.subr.mxu0 0.0
    %4013 = vmatpush1.msra.mxu0 0.0
    %4014 = vmatprep.subr.mxu0 0.0
    %4015 = vmatpush1.msra.mxu0 0.0
    %4016 = vmatprep.subr.mxu0 0.0
    %4017 = vmatpush1.msra.mxu0 0.0
    %4018 = vmatprep.subr.mxu0 0.0
    %4019 = vmatpush1.msra.mxu0 0.0
    %4020 = vmatprep.subr.mxu0 0.0
    %4021 = vmatpush1.msra.mxu0 0.0
    %4022 = vmatprep.subr.mxu0 0.0
    %4023 = vmatpush1.msra.mxu0 0.0
    %4024 = vmatprep.subr.mxu0 0.0
    %4025 = vmatpush1.msra.mxu0 0.0
    %4026 = vmatprep.subr.mxu0 0.0
    %4027 = vmatpush1.msra.mxu0 0.0
    %4028 = vmatprep.subr.mxu0 0.0
    %4029 = vmatpush1.msra.mxu0 0.0
    %4030 = vmatprep.subr.mxu0 0.0
    %4031 = vmatpush1.msra.mxu0 0.0
    %4032 = vmatprep.subr.mxu0 0.0
    %4033 = vmatpush1.msra.mxu0 0.0
    %4034 = vmatprep.subr.mxu0 0.0
    %4035 = vmatpush1.msra.mxu0 0.0
    %4036 = vmatprep.subr.mxu0 0.0
    %4037 = vmatpush1.msra.mxu0 0.0
    %4038 = vmatprep.subr.mxu0 0.0
    %4039 = vmatpush1.msra.mxu0 0.0
    %4040 = vmatprep.subr.mxu0 0.0
    %4041 = vmatpush1.msra.mxu0 0.0
    %4042 = vmatprep.subr.mxu0 0.0
    %4043 = vmatpush1.msra.mxu0 0.0
    %4044 = vmatprep.subr.mxu0 0.0
    %4045 = vmatpush1.msra.mxu0 0.0
    %4046 = vmatprep.subr.mxu0 0.0
    %4047 = vmatpush1.msra.mxu0 0.0
    %4048 = vmatprep.subr.mxu0 0.0
    %4049 = vmatpush1.msra.mxu0 0.0
    %4050 = vmatprep.subr.mxu0 0.0
    %4051 = vmatpush1.msra.mxu0 0.0
    %4052 = vmatprep.subr.mxu0 0.0
    %4053 = vmatpush1.msra.mxu0 0.0
    %4054 = vmatprep.subr.mxu0 0.0
    %4055 = vmatpush1.msra.mxu0 0.0
    %4056 = vmatprep.subr.mxu0 0.0
    %4057 = vmatpush1.msra.mxu0 0.0
    %4058 = vmatprep.subr.mxu0 0.0
    %4059 = vmatpush1.msra.mxu0 0.0
    %4060 = vmatprep.subr.mxu0 0.0
    %4061 = vmatpush1.msra.mxu0 0.0
    %4062 = vmatprep.subr.mxu0 0.0
    %4063 = vmatpush1.msra.mxu0 0.0
    %4064 = vmatprep.mubr.f32.mxu0 0.0
    %4065 = vmatmul.mubr.f32.gmra.mrb[0].mxu0 %v3996
    %v4066 = vpop.f32.mrb[0].mxu0
    %v4067 = vadd.f32 0.0, %v4066
    %v4068 = vpop.f32.mrb[0].mxu0
    %4069 = vmatprep.mubr.f32.mxu0 0.0
    %4070 = vmatmul.mubr.f32.gmra.mrb[0].mxu0 %v3998
    %v4071 = vpop.f32.mrb[0].mxu0
    %v4072 = vadd.f32 0.0, %v4071
    %v4073 = vpop.f32.mrb[0].mxu0
    %4074 = vdwg.mxu0
    %v4075 = vsel %vm567, %v4067, 0.0
    %v4076 = vsel %vm567, %v4072, 0.0
    %v4077 = vadd.f32 %v4075, %v4076
    %v4078 = vrot.slane %v4077, 4
    %v4079 = vadd.f32 %v4077, %v4078
    %v4080 = vrot.slane %v4079, 2
    %v4081 = vadd.f32 %v4079, %v4080
    %v4082 = vrot.slane %v4081, 1
    %v4083 = vadd.f32 %v4081, %v4082
    %v4084 = vmul.f32 %v4083, 0.0625
    %v4085 = vxor.u32 %v4084, 2147483648
    %v4086 = vmul.f32 %v4085, 1.442695
    %v4087 = vpow.pop %v4086
    %v4088 = vadd.f32 %v4087, 1.0
    %v4089 = vrcp.pop %v4088
    %v4090 = vmul.f32 1.0, %v4089
    %v4091 = vld [vmem:[#allocation2 + $0x18] sm:$0xff]
    %v4092 = vld [vmem:[#allocation2 + $0x20] sm:$0xff]
    %v4093 = vld [vmem:[#allocation2 + $0x2c] sm:$0x1]
    %v4095 = vsel %vm567, %v4090, 0
    %4097 = vmatprep.subr.mxu0 0.0
    %4098 = vmatpush1.msra.mxu0 %v4091
    %4099 = vmatprep.subr.mxu0 0.0
    %4100 = vmatpush1.msra.mxu0 %v4092
    %4101 = vmatprep.subr.mxu0 0.0
    %4102 = vmatpush1.msra.mxu0 0.0
    %4103 = vmatprep.subr.mxu0 0.0
    %4104 = vmatpush1.msra.mxu0 0.0
    %4105 = vmatprep.subr.mxu0 0.0
    %4106 = vmatpush1.msra.mxu0 0.0
    %4107 = vmatprep.subr.mxu0 0.0
    %4108 = vmatpush1.msra.mxu0 0.0
    %4109 = vmatprep.subr.mxu0 0.0
    %4110 = vmatpush1.msra.mxu0 0.0
    %4111 = vmatprep.subr.mxu0 0.0
    %4112 = vmatpush1.msra.mxu0 0.0
    %4113 = vmatprep.subr.mxu0 0.0
    %4114 = vmatpush1.msra.mxu0 0.0
    %4115 = vmatprep.subr.mxu0 0.0
    %4116 = vmatpush1.msra.mxu0 0.0
    %4117 = vmatprep.subr.mxu0 0.0
    %4118 = vmatpush1.msra.mxu0 0.0
    %4119 = vmatprep.subr.mxu0 0.0
    %4120 = vmatpush1.msra.mxu0 0.0
    %4121 = vmatprep.subr.mxu0 0.0
    %4122 = vmatpush1.msra.mxu0 0.0
    %4123 = vmatprep.subr.mxu0 0.0
    %4124 = vmatpush1.msra.mxu0 0.0
    %4125 = vmatprep.subr.mxu0 0.0
    %4126 = vmatpush1.msra.mxu0 0.0
    %4127 = vmatprep.subr.mxu0 0.0
    %4128 = vmatpush1.msra.mxu0 0.0
    %4129 = vmatprep.subr.mxu0 0.0
    %4130 = vmatpush1.msra.mxu0 0.0
    %4131 = vmatprep.subr.mxu0 0.0
    %4132 = vmatpush1.msra.mxu0 0.0
    %4133 = vmatprep.subr.mxu0 0.0
    %4134 = vmatpush1.msra.mxu0 0.0
    %4135 = vmatprep.subr.mxu0 0.0
    %4136 = vmatpush1.msra.mxu0 0.0
    %4137 = vmatprep.subr.mxu0 0.0
    %4138 = vmatpush1.msra.mxu0 0.0
    %4139 = vmatprep.subr.mxu0 0.0
    %4140 = vmatpush1.msra.mxu0 0.0
    %4141 = vmatprep.subr.mxu0 0.0
    %4142 = vmatpush1.msra.mxu0 0.0
    %4143 = vmatprep.subr.mxu0 0.0
    %4144 = vmatpush1.msra.mxu0 0.0
    %4145 = vmatprep.subr.mxu0 0.0
    %4146 = vmatpush1.msra.mxu0 0.0
    %4147 = vmatprep.subr.mxu0 0.0
    %4148 = vmatpush1.msra.mxu0 0.0
    %4149 = vmatprep.subr.mxu0 0.0
    %4150 = vmatpush1.msra.mxu0 0.0
    %4151 = vmatprep.subr.mxu0 0.0
    %4152 = vmatpush1.msra.mxu0 0.0
    %4153 = vmatprep.subr.mxu0 0.0
    %4154 = vmatpush1.msra.mxu0 0.0
    %4155 = vmatprep.subr.mxu0 0.0
    %4156 = vmatpush1.msra.mxu0 0.0
    %4157 = vmatprep.subr.mxu0 0.0
    %4158 = vmatpush1.msra.mxu0 0.0
    %4159 = vmatprep.subr.mxu0 0.0
    %4160 = vmatpush1.msra.mxu0 0.0
    %4161 = vmatprep.mubr.f32.mxu0 0.0
    %4162 = vmatmul.mubr.f32.gmra.mrb[0].mxu0 %v4095
    %v4163 = vpop.f32.mrb[0].mxu0
    %v4164 = vadd.f32 %v4093, %v4163
    %v4165 = vpop.f32.mrb[0].mxu0
    %4166 = vdwg.mxu0
    %v4167 = vxor.u32 %v4164, 2147483648
    %v4168 = vmul.f32 %v4167, 1.442695
    %v4169 = vpow.pop %v4168
    %v4170 = vadd.f32 %v4169, 1.0
    %v4171 = vrcp.pop %v4170
    %v4172 = vmul.f32 1.0, %v4171
    %vm4173 = vcmask 24576
    %4174 = vst.msk [vmem:[#allocation5] sm:$0x1] %vm4173, %v4172
    // Predicated region
    $region18: #{fwd.1} parent=1 // pred_check
      _
    $region19: #{fwd.1} parent=1 // pred_check_branch
      %4176 = sbr.rel (0) target = $region21
    $region20: #{fwd.1} parent=1 // pred_region
      %s4178 = ssub.s32 16, 16
      %4179 = vsyncadd [#allocation4], %s4178
      %s4181 = sshll.u32 [#allocation5], 4
      %s4182 = int_to_ptr.vmem [resolvable:$true] %s4181
      %4184 = dma.vmem_to_hbm [thread:$0]  %s4182, 16, %s3, [#allocation4]
    $region21: #{fwd.1} parent=1 // pred_fallthru
      _
    // Predicated region
    $region22: #{fwd.1} parent=1 // pred_check
      _
    $region23: #{fwd.1} parent=1 // pred_check_branch
      %4186 = sbr.rel (0) target = $region25
    $region24: #{fwd.1} parent=1 // pred_region
      %4187 = dma.done [#allocation4], 16
    $region25: #{fwd.1} parent=1 // pred_fallthru
      _
    %4188 = vsyncpa [#allocation3], 1
    %4189 = vsyncpa [#allocation4], 1

</llo_original>
